<compile_context>
chip_gen: v7x
topology: tpu7x:2x2x1
jax: 0.10.0
libtpu: 0.0.40
codegen_flags: <defaults>
</compile_context>

<pallas_src>
import math
import functools

import jax
import jax.numpy as jnp
from jax.experimental import pallas as pl
from jax.experimental.pallas import tpu as pltpu

EPS = 1e-5
LANE = 128
VMEM_LIMIT = 48 * 1024 * 1024  # explicit budget; safe on v5e/v6e (128 MiB) and v7x (64 MiB)


# ---------------------------------------------------------------------------
# small helpers
# ---------------------------------------------------------------------------
def _num_chunks(planes, chunks=16):
    # mirrors normalization_q()
    return 16 if planes % (16 * 8) == 0 else chunks


def _scale_fix(chunk_size):
    return (0.5 * 0.35) * (1 + (math.pi * math.log(4)) ** 0.5) / ((2 * math.log(chunk_size)) ** 0.5)


def _pad_to(n, m):
    return ((n + m - 1) // m) * m


def _pad_last(x, target):
    pad = target - x.shape[-1]
    if pad == 0:
        return x
    cfg = [(0, 0)] * (x.ndim - 1) + [(0, pad)]
    return jnp.pad(x, cfg)


def _pad2(w, rows, cols):
    return jnp.pad(w, ((0, rows - w.shape[0]), (0, cols - w.shape[1])))


def _row_spec(rows, cols):
    return pl.BlockSpec((rows, cols), lambda k: (k, 0))


def _rep_spec(shape):
    nd = len(shape)
    return pl.BlockSpec(shape, lambda k, _nd=nd: (0,) * _nd)


# ---------------------------------------------------------------------------
# Kernels
# ---------------------------------------------------------------------------
def _pwconv_stats_kernel(x_ref, w_ref, bias_ref, y_ref, stats_ref):
    """One RangeBN chunk per grid step: y = x @ w + bias (raw), accumulate per-channel
    sum-of-chunk-max / sum-of-chunk-min / sum into the resident stats output block."""
    k = pl.program_id(0)
    y = jnp.dot(x_ref[...], w_ref[...], preferred_element_type=jnp.float32) + bias_ref[...]

    @pl.when(k == 0)
    def _init():
        stats_ref[...] = jnp.zeros_like(stats_ref)

    stats_ref[0:1, :] += jnp.max(y, axis=0, keepdims=True)
    stats_ref[1:2, :] += jnp.min(y, axis=0, keepdims=True)
    stats_ref[2:3, :] += jnp.sum(y, axis=0, keepdims=True)

    y_ref[...] = y.astype(y_ref.dtype)


def _stats_kernel(y_ref, stats_ref):
    """Per-channel RangeBN statistics over an existing tensor, one chunk per grid step."""
    k = pl.program_id(0)
    y = y_ref[...].astype(jnp.float32)

    @pl.when(k == 0)
    def _init():
        stats_ref[...] = jnp.zeros_like(stats_ref)

    stats_ref[0:1, :] += jnp.max(y, axis=0, keepdims=True)
    stats_ref[1:2, :] += jnp.min(y, axis=0, keepdims=True)
    stats_ref[2:3, :] += jnp.sum(y, axis=0, keepdims=True)


def _dwconv3x3_kernel(x_ref, a_ref, b_ref, w_ref, o_ref, xp_ref, *, stride):
    """Depthwise 3x3 with stride. The bn1 affine (a,b) is applied to the raw conv1 output
    BEFORE the zero halo is built (matching conv2's zero padding of bn1's output). The halo
    is built in a VMEM scratch; stride is handled with (strided) reads of that scratch."""
    H, W, C = x_ref.shape[1], x_ref.shape[2], x_ref.shape[3]
    Ho, Wo = o_ref.shape[1], o_ref.shape[2]

    a = a_ref[...].reshape(1, 1, C)
    b = b_ref[...].reshape(1, 1, C)

    xp_ref[...] = jnp.zeros_like(xp_ref)                       # zero halo
    xp_ref[1:H + 1, 1:W + 1, :] = x_ref[0].astype(jnp.float32) * a + b

    w = w_ref[...].astype(jnp.float32)                         # (9, C)
    acc = jnp.zeros((Ho, Wo, C), jnp.float32)
    for kh in range(3):
        for kw in range(3):
            if stride == 1:
                window = xp_ref[kh:kh + Ho, kw:kw + Wo, :]
            else:
                window = xp_ref[pl.ds(kh, Ho, stride=stride),
                                pl.ds(kw, Wo, stride=stride), :]
            acc = acc + window * w[kh * 3 + kw].reshape(1, 1, C)
    o_ref[0] = acc.astype(o_ref.dtype)


def _norm_kernel(y_ref, a_ref, b_ref, o_ref):
    o_ref[...] = (y_ref[...].astype(jnp.float32) * a_ref[...] + b_ref[...]).astype(o_ref.dtype)


def _norm_add_kernel(y_ref, a_ref, b_ref, r_ref, ar_ref, br_ref, o_ref):
    out = y_ref[...].astype(jnp.float32) * a_ref[...] + b_ref[...]
    out = out + r_ref[...].astype(jnp.float32) * ar_ref[...] + br_ref[...]
    o_ref[...] = out.astype(o_ref.dtype)


# ---------------------------------------------------------------------------
# Wrappers (pallas_call glue)
# ---------------------------------------------------------------------------
def pwconv_stats(x, w, bias, num_chunks):
    M, Cin = x.shape
    Cout = w.shape[1]
    # RangeBN (like PyTorch's .view(C, num_chunks, -1)) requires divisibility.
    assert M % num_chunks == 0, "RangeBN: M must be divisible by num_chunks"
    cs = M // num_chunks
    assert cs % 8 == 0, "chunk size must be a multiple of 8 rows"
    y, stats = pl.pallas_call(
        _pwconv_stats_kernel,
        grid=(num_chunks,),
        in_specs=[_row_spec(cs, Cin), _rep_spec((Cin, Cout)), _rep_spec((1, Cout))],
        out_specs=(_row_spec(cs, Cout), _rep_spec((8, Cout))),
        out_shape=(jax.ShapeDtypeStruct((M, Cout), jnp.bfloat16),
                   jax.ShapeDtypeStruct((8, Cout), jnp.float32)),
        compiler_params=pltpu.CompilerParams(
            dimension_semantics=("arbitrary",), vmem_limit_bytes=VMEM_LIMIT),
    )(x, w, bias)
    return y, stats


def channel_stats(y, num_chunks):
    M, C = y.shape
    assert M % num_chunks == 0
    cs = M // num_chunks
    assert cs % 8 == 0
    return pl.pallas_call(
        _stats_kernel,
        grid=(num_chunks,),
        in_specs=[_row_spec(cs, C)],
        out_specs=_rep_spec((8, C)),
        out_shape=jax.ShapeDtypeStruct((8, C), jnp.float32),
        compiler_params=pltpu.CompilerParams(
            dimension_semantics=("arbitrary",), vmem_limit_bytes=VMEM_LIMIT),
    )(y)


def affine_from_stats(stats, gamma, beta, num_chunks, M):
    """Turn accumulated RangeBN stats into a per-channel affine: out = y*a + b."""
    mean_max = stats[0:1, :] / num_chunks
    mean_min = stats[1:2, :] / num_chunks
    mean = stats[2:3, :] / M
    scale = (mean_max - mean_min) * _scale_fix(M // num_chunks)
    a = gamma / (scale + EPS)
    b = beta - mean * a
    return a, b


def dwconv3x3_bn_in(y1_nhwc, a1, b1, w9c, stride):
    B, H, W, C = y1_nhwc.shape
    Ho = (H - 1) // stride + 1
    Wo = (W - 1) // stride + 1
    return pl.pallas_call(
        functools.partial(_dwconv3x3_kernel, stride=stride),
        grid=(B,),
        in_specs=[pl.BlockSpec((1, H, W, C), lambda bb: (bb, 0, 0, 0)),
                  _rep_spec((1, C)), _rep_spec((1, C)), _rep_spec((9, C))],
        out_specs=pl.BlockSpec((1, Ho, Wo, C), lambda bb: (bb, 0, 0, 0)),
        out_shape=jax.ShapeDtypeStruct((B, Ho, Wo, C), jnp.bfloat16),
        scratch_shapes=[pltpu.VMEM((H + 2, W + 2, C), jnp.float32)],
        compiler_params=pltpu.CompilerParams(
            dimension_semantics=("parallel",), vmem_limit_bytes=VMEM_LIMIT),
    )(y1_nhwc, a1, b1, w9c)


def normalize(y, a, b, num_tiles):
    M, C = y.shape
    assert M % num_tiles == 0
    cs = M // num_tiles
    return pl.pallas_call(
        _norm_kernel,
        grid=(num_tiles,),
        in_specs=[_row_spec(cs, C), _rep_spec((1, C)), _rep_spec((1, C))],
        out_specs=_row_spec(cs, C),
        out_shape=jax.ShapeDtypeStruct((M, C), jnp.float32),
        compiler_params=pltpu.CompilerParams(
            dimension_semantics=("parallel",), vmem_limit_bytes=VMEM_LIMIT),
    )(y, a, b)


def normalize_add(y, a, b, r, ar, br, num_tiles):
    M, C = y.shape
    assert M % num_tiles == 0
    cs = M // num_tiles
    return pl.pallas_call(
        _norm_add_kernel,
        grid=(num_tiles,),
        in_specs=[_row_spec(cs, C), _rep_spec((1, C)), _rep_spec((1, C)),
                  _row_spec(cs, C), _rep_spec((1, C)), _rep_spec((1, C))],
        out_specs=_row_spec(cs, C),
        out_shape=jax.ShapeDtypeStruct((M, C), jnp.float32),
        compiler_params=pltpu.CompilerParams(
            dimension_semantics=("parallel",), vmem_limit_bytes=VMEM_LIMIT),
    )(y, a, b, r, ar, br)


# ---------------------------------------------------------------------------
# Block_mq forward
# ---------------------------------------------------------------------------
def block_mq_forward(x_nchw, params, stride, chunks=16):
    B, Cin, H, W = x_nchw.shape
    planes = params["w1"].shape[1]
    out_planes = params["w3"].shape[1]
    nc_mid = _num_chunks(planes, chunks)
    nc_out = _num_chunks(out_planes, chunks)

    Cin_p = _pad_to(Cin, LANE)
    P_p = _pad_to(planes, LANE)
    O_p = _pad_to(out_planes, LANE)

    # ---- layout: NCHW -> NHWC, channel pad to 128 lanes, bf16 for HBM/matmul traffic ----
    x_nhwc = jnp.transpose(x_nchw, (0, 2, 3, 1)).astype(jnp.float32)
    x_nhwc = _pad_last(x_nhwc, Cin_p)
    M1 = B * H * W
    x_flat = x_nhwc.reshape(M1, Cin_p).astype(jnp.bfloat16)

    # ---- padded parameters ----
    w1 = _pad2(params["w1"], Cin_p, P_p).astype(jnp.bfloat16)
    g1, be1 = _pad_last(params["g1"], P_p), _pad_last(params["b1"], P_p)
    w2 = _pad_last(params["w2"], P_p).astype(jnp.float32)
    g2, be2 = _pad_last(params["g2"], P_p), _pad_last(params["b2"], P_p)
    w3 = _pad2(params["w3"], P_p, O_p).astype(jnp.float32)
    g3, be3 = _pad_last(params["g3"], O_p), _pad_last(params["b3"], O_p)

    zero_bias_p = jnp.zeros((1, P_p), jnp.float32)
    zero_bias_o = jnp.zeros((1, O_p), jnp.float32)

    # ---- stage 1: conv1 (1x1 expand) + RangeBN-1 statistics (fused, one chunk per step) ----
    y1_raw, st1 = pwconv_stats(x_flat, w1, zero_bias_p, nc_mid)
    a1, b1 = affine_from_stats(st1, g1, be1, nc_mid, M1)

    # ---- stage 2: depthwise 3x3 (stride); bn1 affine applied in-kernel before zero halo ----
    h2_nhwc = dwconv3x3_bn_in(y1_raw.reshape(B, H, W, P_p), a1, b1, w2, stride)
    Ho, Wo = h2_nhwc.shape[1], h2_nhwc.shape[2]
    M2 = B * Ho * Wo
    h2_flat = h2_nhwc.reshape(M2, P_p)

    # RangeBN-2 statistics; fold the bn2 affine into conv3's weights and bias (exact for 1x1).
    st2 = channel_stats(h2_flat, nc_mid)
    a2, b2 = affine_from_stats(st2, g2, be2, nc_mid, M2)
    w3f = (w3 * a2.reshape(P_p, 1)).astype(jnp.bfloat16)
    bias3 = jnp.dot(b2, w3)                                   # (1, O_p) f32

    # ---- stage 3: conv3 (1x1 project, bn2 folded) + RangeBN-3 statistics ----
    y3_raw, st3 = pwconv_stats(h2_flat, w3f, bias3, nc_out)
    a3, b3 = affine_from_stats(st3, g3, be3, nc_out, M2)

    # ---- bn3 (+ shortcut) applied in a final tiled affine(+add) kernel ----
    if stride == 1:
        if Cin != out_planes:
            wsc = _pad2(params["wsc"], Cin_p, O_p).astype(jnp.bfloat16)
            gsc, besc = _pad_last(params["gsc"], O_p), _pad_last(params["bsc"], O_p)
            ysc_raw, stsc = pwconv_stats(x_flat, wsc, zero_bias_o, nc_out)
            asc, bsc = affine_from_stats(stsc, gsc, besc, nc_out, M1)
            out_flat = normalize_add(y3_raw, a3, b3, ysc_raw, asc, bsc, nc_out)
        else:
            ones = jnp.ones((1, O_p), jnp.float32)
            out_flat = normalize_add(y3_raw, a3, b3, x_flat, ones, zero_bias_o, nc_out)
    else:
        out_flat = normalize(y3_raw, a3, b3, nc_out)

    out_nhwc = out_flat[:, :out_planes].reshape(B, Ho, Wo, out_planes)
    return jnp.transpose(out_nhwc, (0, 3, 1, 2))              # back to NCHW


# ---------------------------------------------------------------------------
# Deterministic parameter init (synthetic; shapes follow Block_mq.__init__)
# ---------------------------------------------------------------------------
def init_params(key, in_planes, out_planes, expansion):
    planes = expansion * in_planes
    ks = jax.random.split(key, 10)

    def conv_init(k, shape, fan_in):
        bound = 1.0 / math.sqrt(fan_in)
        return jax.random.uniform(k, shape, jnp.float32, -bound, bound)

    params = {
        # conv1: (planes, in_planes, 1, 1) -> matmul matrix (in_planes, planes)
        "w1": conv_init(ks[0], (in_planes, planes), in_planes),
        "g1": jax.random.uniform(ks[1], (1, planes), jnp.float32, 0.5, 1.5),
        "b1": 0.1 * jax.random.normal(ks[2], (1, planes), jnp.float32),
        # conv2: depthwise (planes, 1, 3, 3) -> (9, planes)
        "w2": conv_init(ks[3], (9, planes), 9),
        "g2": jax.random.uniform(ks[4], (1, planes), jnp.float32, 0.5, 1.5),
        "b2": 0.1 * jax.random.normal(ks[5], (1, planes), jnp.float32),
        # conv3: (out_planes, planes, 1, 1) -> (planes, out_planes)
        "w3": conv_init(ks[6], (planes, out_planes), planes),
        "g3": jax.random.uniform(ks[7], (1, out_planes), jnp.float32, 0.5, 1.5),
        "b3": 0.1 * jax.random.normal(ks[8], (1, out_planes), jnp.float32),
        # shortcut conv (only used when stride==1 and in_planes != out_planes)
        "wsc": conv_init(ks[9], (in_planes, out_planes), in_planes),
        "gsc": jnp.ones((1, out_planes), jnp.float32),
        "bsc": jnp.zeros((1, out_planes), jnp.float32),
    }
    return params


if __name__ == "__main__":
    key = jax.random.PRNGKey(0)
    kx, kp = jax.random.split(key)

    B, in_planes, H, W = 2, 8, 16, 16
    out_planes, expansion, stride = 16, 6, 1  # stride=1 -> conv shortcut branch active

    x = jax.random.normal(kx, (B, in_planes, H, W), jnp.float32)
    params = init_params(kp, in_planes, out_planes, expansion)

    fwd = jax.jit(functools.partial(block_mq_forward, stride=stride))
    out = fwd(x, params)
    out = jax.block_until_ready(out)

    assert out.shape == (B, out_planes, H, W), out.shape
    assert bool(jnp.all(jnp.isfinite(out)))
    print("KERNEL_OK")
</pallas_src>

<mosaic_0001>
module attributes {stable_mosaic.version = 11 : i64} {
  func.func @_pwconv_stats_kernel(%arg0: i32, %arg1: memref<32x128xbf16, #tpu.memory_space<vmem>>, %arg2: memref<128x128xbf16, #tpu.memory_space<vmem>>, %arg3: memref<1x128xf32, #tpu.memory_space<vmem>>, %arg4: memref<32x128xbf16, #tpu.memory_space<vmem>>, %arg5: memref<8x128xf32, #tpu.memory_space<vmem>>) attributes {dimension_semantics = [#tpu.dimension_semantics<arbitrary>], iteration_bounds = array<i64: 16>, scalar_prefetch = 0 : i64, scratch_operands = 0 : i64, tpu.core_type = #tpu.core_type<tc>, window_params = [{transform_indices = @transform_0, window_bounds = array<i64: 32, 128>}, {pipeline_mode = #tpu.pipeline_mode<synchronous>, transform_indices = @transform_1, window_bounds = array<i64: 128, 128>}, {pipeline_mode = #tpu.pipeline_mode<synchronous>, transform_indices = @transform_2, window_bounds = array<i64: 1, 128>}, {transform_indices = @transform_3, window_bounds = array<i64: 32, 128>}, {pipeline_mode = #tpu.pipeline_mode<synchronous>, transform_indices = @transform_4, window_bounds = array<i64: 8, 128>}]} {
    %c0 = arith.constant 0 : index
    %c0_0 = arith.constant 0 : index
    %0 = vector.load %arg1[%c0, %c0_0] : memref<32x128xbf16, #tpu.memory_space<vmem>>, vector<32x128xbf16>
    %c0_1 = arith.constant 0 : index
    %c0_2 = arith.constant 0 : index
    %1 = vector.load %arg2[%c0_1, %c0_2] : memref<128x128xbf16, #tpu.memory_space<vmem>>, vector<128x128xbf16>
    %cst = arith.constant dense<0.000000e+00> : vector<32x128xf32>
    %2 = tpu.matmul %0, %1, %cst {dimension_numbers = #tpu.dot_dimension_numbers<[1], [0], [0], [1], [0, 0, 1, 1], [], []>} : vector<32x128xbf16>, vector<128x128xbf16>, vector<32x128xf32> -> vector<32x128xf32>
    %c0_3 = arith.constant 0 : index
    %c0_4 = arith.constant 0 : index
    %3 = vector.load %arg3[%c0_3, %c0_4] : memref<1x128xf32, #tpu.memory_space<vmem>>, vector<1x128xf32>
    %4 = vector.broadcast %3 : vector<1x128xf32> to vector<32x128xf32>
    %5 = arith.addf %2, %4 : vector<32x128xf32>
    %c0_i32 = arith.constant 0 : i32
    %6 = arith.cmpi eq, %arg0, %c0_i32 : i32
    %7 = arith.extui %6 : i1 to i32
    %c0_i32_5 = arith.constant 0 : i32
    %8 = arith.cmpi ne, %7, %c0_i32_5 : i32
    scf.if %8 {
      %cst_21 = arith.constant 0.000000e+00 : f32
      %26 = vector.broadcast %cst_21 : f32 to vector<8x128xf32>
      %c0_22 = arith.constant 0 : index
      %c0_23 = arith.constant 0 : index
      %27 = vector.load %arg5[%c0_22, %c0_23] : memref<8x128xf32, #tpu.memory_space<vmem>>, vector<8x128xf32>
      tpu.vector_store %arg5[%c0_22, %c0_23], %26 {strides = array<i32>} : memref<8x128xf32, #tpu.memory_space<vmem>>, vector<8x128xf32>,
    } else {
    }
    %c0_6 = arith.constant 0 : index
    %c0_7 = arith.constant 0 : index
    %9 = vector.load %arg5[%c0_6, %c0_7] : memref<8x128xf32, #tpu.memory_space<vmem>>, vector<1x128xf32>
    %cst_8 = arith.constant dense<0xFF800000> : vector<128xf32>
    %10 = vector.multi_reduction <maximumf>, %5, %cst_8 [0] : vector<32x128xf32> to vector<128xf32>
    %11 = vector.shape_cast %10 : vector<128xf32> to vector<1x128xf32>
    %12 = arith.addf %9, %11 : vector<1x128xf32>
    %c0_9 = arith.constant 0 : index
    %c0_10 = arith.constant 0 : index
    %13 = vector.load %arg5[%c0_9, %c0_10] : memref<8x128xf32, #tpu.memory_space<vmem>>, vector<1x128xf32>
    tpu.vector_store %arg5[%c0_9, %c0_10], %12 {strides = array<i32>} : memref<8x128xf32, #tpu.memory_space<vmem>>, vector<1x128xf32>,
    %c1 = arith.constant 1 : index
    %c0_11 = arith.constant 0 : index
    %14 = vector.load %arg5[%c1, %c0_11] : memref<8x128xf32, #tpu.memory_space<vmem>>, vector<1x128xf32>
    %cst_12 = arith.constant dense<0x7F800000> : vector<128xf32>
    %15 = vector.multi_reduction <minimumf>, %5, %cst_12 [0] : vector<32x128xf32> to vector<128xf32>
    %16 = vector.shape_cast %15 : vector<128xf32> to vector<1x128xf32>
    %17 = arith.addf %14, %16 : vector<1x128xf32>
    %c1_13 = arith.constant 1 : index
    %c0_14 = arith.constant 0 : index
    %18 = vector.load %arg5[%c1_13, %c0_14] : memref<8x128xf32, #tpu.memory_space<vmem>>, vector<1x128xf32>
    tpu.vector_store %arg5[%c1_13, %c0_14], %17 {strides = array<i32>} : memref<8x128xf32, #tpu.memory_space<vmem>>, vector<1x128xf32>,
    %c2 = arith.constant 2 : index
    %c0_15 = arith.constant 0 : index
    %19 = vector.load %arg5[%c2, %c0_15] : memref<8x128xf32, #tpu.memory_space<vmem>>, vector<1x128xf32>
    %cst_16 = arith.constant dense<0.000000e+00> : vector<128xf32>
    %20 = vector.multi_reduction <add>, %5, %cst_16 [0] : vector<32x128xf32> to vector<128xf32>
    %21 = vector.shape_cast %20 : vector<128xf32> to vector<1x128xf32>
    %22 = arith.addf %19, %21 : vector<1x128xf32>
    %c2_17 = arith.constant 2 : index
    %c0_18 = arith.constant 0 : index
    %23 = vector.load %arg5[%c2_17, %c0_18] : memref<8x128xf32, #tpu.memory_space<vmem>>, vector<1x128xf32>
    tpu.vector_store %arg5[%c2_17, %c0_18], %22 {strides = array<i32>} : memref<8x128xf32, #tpu.memory_space<vmem>>, vector<1x128xf32>,
    %24 = arith.truncf %5 : vector<32x128xf32> to vector<32x128xbf16>
    %c0_19 = arith.constant 0 : index
    %c0_20 = arith.constant 0 : index
    %25 = vector.load %arg4[%c0_19, %c0_20] : memref<32x128xbf16, #tpu.memory_space<vmem>>, vector<32x128xbf16>
    tpu.vector_store %arg4[%c0_19, %c0_20], %24 {strides = array<i32>} : memref<32x128xbf16, #tpu.memory_space<vmem>>, vector<32x128xbf16>,
    return
  }
  func.func @transform_0(%arg0: i32) -> (i32, i32) {
    %c0_i32 = arith.constant 0 : i32
    %c0_i32_0 = arith.constant 0 : i32
    return %arg0, %c0_i32 : i32, i32
  }
  func.func @transform_1(%arg0: i32) -> (i32, i32) {
    %c0_i32 = arith.constant 0 : i32
    %c0_i32_0 = arith.constant 0 : i32
    %c0_i32_1 = arith.constant 0 : i32
    return %c0_i32, %c0_i32_0 : i32, i32
  }
  func.func @transform_2(%arg0: i32) -> (i32, i32) {
    %c0_i32 = arith.constant 0 : i32
    %c0_i32_0 = arith.constant 0 : i32
    %c0_i32_1 = arith.constant 0 : i32
    return %c0_i32, %c0_i32_0 : i32, i32
  }
  func.func @transform_3(%arg0: i32) -> (i32, i32) {
    %c0_i32 = arith.constant 0 : i32
    %c0_i32_0 = arith.constant 0 : i32
    return %arg0, %c0_i32 : i32, i32
  }
  func.func @transform_4(%arg0: i32) -> (i32, i32) {
    %c0_i32 = arith.constant 0 : i32
    %c0_i32_0 = arith.constant 0 : i32
    %c0_i32_1 = arith.constant 0 : i32
    return %c0_i32, %c0_i32_0 : i32, i32
  }
}

module attributes {stable_mosaic.version = 11 : i64} {
  func.func @_dwconv3x3_kernel(%arg0: i32, %arg1: memref<1x16x16x128xbf16, #tpu.memory_space<vmem>>, %arg2: memref<1x128xf32, #tpu.memory_space<vmem>>, %arg3: memref<1x128xf32, #tpu.memory_space<vmem>>, %arg4: memref<9x128xf32, #tpu.memory_space<vmem>>, %arg5: memref<1x16x16x128xbf16, #tpu.memory_space<vmem>>, %arg6: memref<18x18x128xf32, #tpu.memory_space<vmem>>) attributes {dimension_semantics = [#tpu.dimension_semantics<parallel>], iteration_bounds = array<i64: 2>, scalar_prefetch = 0 : i64, scratch_operands = 1 : i64, tpu.core_type = #tpu.core_type<tc>, window_params = [{transform_indices = @transform_0, window_bounds = array<i64: 1, 16, 16, 128>}, {pipeline_mode = #tpu.pipeline_mode<synchronous>, transform_indices = @transform_1, window_bounds = array<i64: 1, 128>}, {pipeline_mode = #tpu.pipeline_mode<synchronous>, transform_indices = @transform_2, window_bounds = array<i64: 1, 128>}, {pipeline_mode = #tpu.pipeline_mode<synchronous>, transform_indices = @transform_3, window_bounds = array<i64: 9, 128>}, {transform_indices = @transform_4, window_bounds = array<i64: 1, 16, 16, 128>}]} {
    %c0 = arith.constant 0 : index
    %c0_0 = arith.constant 0 : index
    %0 = vector.load %arg2[%c0, %c0_0] : memref<1x128xf32, #tpu.memory_space<vmem>>, vector<1x128xf32>
    %1 = vector.shape_cast %0 : vector<1x128xf32> to vector<1x1x128xf32>
    %c0_1 = arith.constant 0 : index
    %c0_2 = arith.constant 0 : index
    %2 = vector.load %arg3[%c0_1, %c0_2] : memref<1x128xf32, #tpu.memory_space<vmem>>, vector<1x128xf32>
    %3 = vector.shape_cast %2 : vector<1x128xf32> to vector<1x1x128xf32>
    %cst = arith.constant 0.000000e+00 : f32
    %4 = vector.broadcast %cst : f32 to vector<18x18x128xf32>
    %c0_3 = arith.constant 0 : index
    %c0_4 = arith.constant 0 : index
    %c0_5 = arith.constant 0 : index
    %5 = vector.load %arg6[%c0_3, %c0_4, %c0_5] : memref<18x18x128xf32, #tpu.memory_space<vmem>>, vector<18x18x128xf32>
    tpu.vector_store %arg6[%c0_3, %c0_4, %c0_5], %4 {strides = array<i32>} : memref<18x18x128xf32, #tpu.memory_space<vmem>>, vector<18x18x128xf32>,
    %c0_6 = arith.constant 0 : index
    %c0_7 = arith.constant 0 : index
    %c0_8 = arith.constant 0 : index
    %c0_9 = arith.constant 0 : index
    %6 = vector.load %arg1[%c0_6, %c0_7, %c0_8, %c0_9] : memref<1x16x16x128xbf16, #tpu.memory_space<vmem>>, vector<1x16x16x128xbf16>
    %7 = vector.shape_cast %6 : vector<1x16x16x128xbf16> to vector<16x16x128xbf16>
    %8 = arith.extf %7 : vector<16x16x128xbf16> to vector<16x16x128xf32>
    %9 = vector.broadcast %1 : vector<1x1x128xf32> to vector<16x16x128xf32>
    %10 = arith.mulf %8, %9 : vector<16x16x128xf32>
    %11 = vector.broadcast %3 : vector<1x1x128xf32> to vector<16x16x128xf32>
    %12 = arith.addf %10, %11 : vector<16x16x128xf32>
    %c1 = arith.constant 1 : index
    %c1_10 = arith.constant 1 : index
    %c0_11 = arith.constant 0 : index
    %13 = vector.load %arg6[%c1, %c1_10, %c0_11] : memref<18x18x128xf32, #tpu.memory_space<vmem>>, vector<16x16x128xf32>
    tpu.vector_store %arg6[%c1, %c1_10, %c0_11], %12 {strides = array<i32>} : memref<18x18x128xf32, #tpu.memory_space<vmem>>, vector<16x16x128xf32>,
    %c0_12 = arith.constant 0 : index
    %c0_13 = arith.constant 0 : index
    %14 = vector.load %arg4[%c0_12, %c0_13] : memref<9x128xf32, #tpu.memory_space<vmem>>, vector<9x128xf32>
    %cst_14 = arith.constant 0.000000e+00 : f32
    %15 = vector.broadcast %cst_14 : f32 to vector<16x16x128xf32>
    %c0_15 = arith.constant 0 : index
    %c0_16 = arith.constant 0 : index
    %c0_17 = arith.constant 0 : index
    %16 = vector.load %arg6[%c0_15, %c0_16, %c0_17] : memref<18x18x128xf32, #tpu.memory_space<vmem>>, vector<16x16x128xf32>
    %17 = vector.extract_strided_slice %14 {offsets = [0, 0], sizes = [1, 128], strides = [1, 1]} : vector<9x128xf32> to vector<1x128xf32>
    %18 = vector.shape_cast %17 : vector<1x128xf32> to vector<128xf32>
    %19 = vector.shape_cast %18 : vector<128xf32> to vector<1x1x128xf32>
    %20 = vector.broadcast %19 : vector<1x1x128xf32> to vector<16x16x128xf32>
    %21 = arith.mulf %16, %20 : vector<16x16x128xf32>
    %22 = arith.addf %15, %21 : vector<16x16x128xf32>
    %c0_18 = arith.constant 0 : index
    %c1_19 = arith.constant 1 : index
    %c0_20 = arith.constant 0 : index
    %23 = vector.load %arg6[%c0_18, %c1_19, %c0_20] : memref<18x18x128xf32, #tpu.memory_space<vmem>>, vector<16x16x128xf32>
    %24 = vector.extract_strided_slice %14 {offsets = [1, 0], sizes = [1, 128], strides = [1, 1]} : vector<9x128xf32> to vector<1x128xf32>
    %25 = vector.shape_cast %24 : vector<1x128xf32> to vector<128xf32>
    %26 = vector.shape_cast %25 : vector<128xf32> to vector<1x1x128xf32>
    %27 = vector.broadcast %26 : vector<1x1x128xf32> to vector<16x16x128xf32>
    %28 = arith.mulf %23, %27 : vector<16x16x128xf32>
    %29 = arith.addf %22, %28 : vector<16x16x128xf32>
    %c0_21 = arith.constant 0 : index
    %c2 = arith.constant 2 : index
    %c0_22 = arith.constant 0 : index
    %30 = vector.load %arg6[%c0_21, %c2, %c0_22] : memref<18x18x128xf32, #tpu.memory_space<vmem>>, vector<16x16x128xf32>
    %31 = vector.extract_strided_slice %14 {offsets = [2, 0], sizes = [1, 128], strides = [1, 1]} : vector<9x128xf32> to vector<1x128xf32>
    %32 = vector.shape_cast %31 : vector<1x128xf32> to vector<128xf32>
    %33 = vector.shape_cast %32 : vector<128xf32> to vector<1x1x128xf32>
    %34 = vector.broadcast %33 : vector<1x1x128xf32> to vector<16x16x128xf32>
    %35 = arith.mulf %30, %34 : vector<16x16x128xf32>
    %36 = arith.addf %29, %35 : vector<16x16x128xf32>
    %c1_23 = arith.constant 1 : index
    %c0_24 = arith.constant 0 : index
    %c0_25 = arith.constant 0 : index
    %37 = vector.load %arg6[%c1_23, %c0_24, %c0_25] : memref<18x18x128xf32, #tpu.memory_space<vmem>>, vector<16x16x128xf32>
    %38 = vector.extract_strided_slice %14 {offsets = [3, 0], sizes = [1, 128], strides = [1, 1]} : vector<9x128xf32> to vector<1x128xf32>
    %39 = vector.shape_cast %38 : vector<1x128xf32> to vector<128xf32>
    %40 = vector.shape_cast %39 : vector<128xf32> to vector<1x1x128xf32>
    %41 = vector.broadcast %40 : vector<1x1x128xf32> to vector<16x16x128xf32>
    %42 = arith.mulf %37, %41 : vector<16x16x128xf32>
    %43 = arith.addf %36, %42 : vector<16x16x128xf32>
    %c1_26 = arith.constant 1 : index
    %c1_27 = arith.constant 1 : index
    %c0_28 = arith.constant 0 : index
    %44 = vector.load %arg6[%c1_26, %c1_27, %c0_28] : memref<18x18x128xf32, #tpu.memory_space<vmem>>, vector<16x16x128xf32>
    %45 = vector.extract_strided_slice %14 {offsets = [4, 0], sizes = [1, 128], strides = [1, 1]} : vector<9x128xf32> to vector<1x128xf32>
    %46 = vector.shape_cast %45 : vector<1x128xf32> to vector<128xf32>
    %47 = vector.shape_cast %46 : vector<128xf32> to vector<1x1x128xf32>
    %48 = vector.broadcast %47 : vector<1x1x128xf32> to vector<16x16x128xf32>
    %49 = arith.mulf %44, %48 : vector<16x16x128xf32>
    %50 = arith.addf %43, %49 : vector<16x16x128xf32>
    %c1_29 = arith.constant 1 : index
    %c2_30 = arith.constant 2 : index
    %c0_31 = arith.constant 0 : index
    %51 = vector.load %arg6[%c1_29, %c2_30, %c0_31] : memref<18x18x128xf32, #tpu.memory_space<vmem>>, vector<16x16x128xf32>
    %52 = vector.extract_strided_slice %14 {offsets = [5, 0], sizes = [1, 128], strides = [1, 1]} : vector<9x128xf32> to vector<1x128xf32>
    %53 = vector.shape_cast %52 : vector<1x128xf32> to vector<128xf32>
    %54 = vector.shape_cast %53 : vector<128xf32> to vector<1x1x128xf32>
    %55 = vector.broadcast %54 : vector<1x1x128xf32> to vector<16x16x128xf32>
    %56 = arith.mulf %51, %55 : vector<16x16x128xf32>
    %57 = arith.addf %50, %56 : vector<16x16x128xf32>
    %c2_32 = arith.constant 2 : index
    %c0_33 = arith.constant 0 : index
    %c0_34 = arith.constant 0 : index
    %58 = vector.load %arg6[%c2_32, %c0_33, %c0_34] : memref<18x18x128xf32, #tpu.memory_space<vmem>>, vector<16x16x128xf32>
    %59 = vector.extract_strided_slice %14 {offsets = [6, 0], sizes = [1, 128], strides = [1, 1]} : vector<9x128xf32> to vector<1x128xf32>
    %60 = vector.shape_cast %59 : vector<1x128xf32> to vector<128xf32>
    %61 = vector.shape_cast %60 : vector<128xf32> to vector<1x1x128xf32>
    %62 = vector.broadcast %61 : vector<1x1x128xf32> to vector<16x16x128xf32>
    %63 = arith.mulf %58, %62 : vector<16x16x128xf32>
    %64 = arith.addf %57, %63 : vector<16x16x128xf32>
    %c2_35 = arith.constant 2 : index
    %c1_36 = arith.constant 1 : index
    %c0_37 = arith.constant 0 : index
    %65 = vector.load %arg6[%c2_35, %c1_36, %c0_37] : memref<18x18x128xf32, #tpu.memory_space<vmem>>, vector<16x16x128xf32>
    %66 = vector.extract_strided_slice %14 {offsets = [7, 0], sizes = [1, 128], strides = [1, 1]} : vector<9x128xf32> to vector<1x128xf32>
    %67 = vector.shape_cast %66 : vector<1x128xf32> to vector<128xf32>
    %68 = vector.shape_cast %67 : vector<128xf32> to vector<1x1x128xf32>
    %69 = vector.broadcast %68 : vector<1x1x128xf32> to vector<16x16x128xf32>
    %70 = arith.mulf %65, %69 : vector<16x16x128xf32>
    %71 = arith.addf %64, %70 : vector<16x16x128xf32>
    %c2_38 = arith.constant 2 : index
    %c2_39 = arith.constant 2 : index
    %c0_40 = arith.constant 0 : index
    %72 = vector.load %arg6[%c2_38, %c2_39, %c0_40] : memref<18x18x128xf32, #tpu.memory_space<vmem>>, vector<16x16x128xf32>
    %73 = vector.extract_strided_slice %14 {offsets = [8, 0], sizes = [1, 128], strides = [1, 1]} : vector<9x128xf32> to vector<1x128xf32>
    %74 = vector.shape_cast %73 : vector<1x128xf32> to vector<128xf32>
    %75 = vector.shape_cast %74 : vector<128xf32> to vector<1x1x128xf32>
    %76 = vector.broadcast %75 : vector<1x1x128xf32> to vector<16x16x128xf32>
    %77 = arith.mulf %72, %76 : vector<16x16x128xf32>
    %78 = arith.addf %71, %77 : vector<16x16x128xf32>
    %79 = arith.truncf %78 : vector<16x16x128xf32> to vector<16x16x128xbf16>
    %c0_41 = arith.constant 0 : index
    %c0_42 = arith.constant 0 : index
    %c0_43 = arith.constant 0 : index
    %c0_44 = arith.constant 0 : index
    %80 = vector.load %arg5[%c0_41, %c0_42, %c0_43, %c0_44] : memref<1x16x16x128xbf16, #tpu.memory_space<vmem>>, vector<1x16x16x128xbf16>
    %81 = vector.shape_cast %80 : vector<1x16x16x128xbf16> to vector<16x16x128xbf16>
    %82 = vector.shape_cast %79 : vector<16x16x128xbf16> to vector<1x16x16x128xbf16>
    tpu.vector_store %arg5[%c0_41, %c0_42, %c0_43, %c0_44], %82 {strides = array<i32>} : memref<1x16x16x128xbf16, #tpu.memory_space<vmem>>, vector<1x16x16x128xbf16>,
    return
  }
  func.func @transform_0(%arg0: i32) -> (i32, i32, i32, i32) {
    %c0_i32 = arith.constant 0 : i32
    %c0_i32_0 = arith.constant 0 : i32
    %c0_i32_1 = arith.constant 0 : i32
    %c0_i32_2 = arith.constant 0 : i32
    return %arg0, %c0_i32, %c0_i32_0, %c0_i32_1 : i32, i32, i32, i32
  }
  func.func @transform_1(%arg0: i32) -> (i32, i32) {
    %c0_i32 = arith.constant 0 : i32
    %c0_i32_0 = arith.constant 0 : i32
    %c0_i32_1 = arith.constant 0 : i32
    return %c0_i32, %c0_i32_0 : i32, i32
  }
  func.func @transform_2(%arg0: i32) -> (i32, i32) {
    %c0_i32 = arith.constant 0 : i32
    %c0_i32_0 = arith.constant 0 : i32
    %c0_i32_1 = arith.constant 0 : i32
    return %c0_i32, %c0_i32_0 : i32, i32
  }
  func.func @transform_3(%arg0: i32) -> (i32, i32) {
    %c0_i32 = arith.constant 0 : i32
    %c0_i32_0 = arith.constant 0 : i32
    %c0_i32_1 = arith.constant 0 : i32
    return %c0_i32, %c0_i32_0 : i32, i32
  }
  func.func @transform_4(%arg0: i32) -> (i32, i32, i32, i32) {
    %c0_i32 = arith.constant 0 : i32
    %c0_i32_0 = arith.constant 0 : i32
    %c0_i32_1 = arith.constant 0 : i32
    %c0_i32_2 = arith.constant 0 : i32
    return %arg0, %c0_i32, %c0_i32_0, %c0_i32_1 : i32, i32, i32, i32
  }
}

module attributes {stable_mosaic.version = 11 : i64} {
  func.func @_stats_kernel(%arg0: i32, %arg1: memref<32x128xbf16, #tpu.memory_space<vmem>>, %arg2: memref<8x128xf32, #tpu.memory_space<vmem>>) attributes {dimension_semantics = [#tpu.dimension_semantics<arbitrary>], iteration_bounds = array<i64: 16>, scalar_prefetch = 0 : i64, scratch_operands = 0 : i64, tpu.core_type = #tpu.core_type<tc>, window_params = [{transform_indices = @transform_0, window_bounds = array<i64: 32, 128>}, {pipeline_mode = #tpu.pipeline_mode<synchronous>, transform_indices = @transform_1, window_bounds = array<i64: 8, 128>}]} {
    %c0 = arith.constant 0 : index
    %c0_0 = arith.constant 0 : index
    %0 = vector.load %arg1[%c0, %c0_0] : memref<32x128xbf16, #tpu.memory_space<vmem>>, vector<32x128xbf16>
    %1 = arith.extf %0 : vector<32x128xbf16> to vector<32x128xf32>
    %c0_i32 = arith.constant 0 : i32
    %2 = arith.cmpi eq, %arg0, %c0_i32 : i32
    %3 = arith.extui %2 : i1 to i32
    %c0_i32_1 = arith.constant 0 : i32
    %4 = arith.cmpi ne, %3, %c0_i32_1 : i32
    scf.if %4 {
      %cst_14 = arith.constant 0.000000e+00 : f32
      %20 = vector.broadcast %cst_14 : f32 to vector<8x128xf32>
      %c0_15 = arith.constant 0 : index
      %c0_16 = arith.constant 0 : index
      %21 = vector.load %arg2[%c0_15, %c0_16] : memref<8x128xf32, #tpu.memory_space<vmem>>, vector<8x128xf32>
      tpu.vector_store %arg2[%c0_15, %c0_16], %20 {strides = array<i32>} : memref<8x128xf32, #tpu.memory_space<vmem>>, vector<8x128xf32>,
    } else {
    }
    %c0_2 = arith.constant 0 : index
    %c0_3 = arith.constant 0 : index
    %5 = vector.load %arg2[%c0_2, %c0_3] : memref<8x128xf32, #tpu.memory_space<vmem>>, vector<1x128xf32>
    %cst = arith.constant dense<0xFF800000> : vector<128xf32>
    %6 = vector.multi_reduction <maximumf>, %1, %cst [0] : vector<32x128xf32> to vector<128xf32>
    %7 = vector.shape_cast %6 : vector<128xf32> to vector<1x128xf32>
    %8 = arith.addf %5, %7 : vector<1x128xf32>
    %c0_4 = arith.constant 0 : index
    %c0_5 = arith.constant 0 : index
    %9 = vector.load %arg2[%c0_4, %c0_5] : memref<8x128xf32, #tpu.memory_space<vmem>>, vector<1x128xf32>
    tpu.vector_store %arg2[%c0_4, %c0_5], %8 {strides = array<i32>} : memref<8x128xf32, #tpu.memory_space<vmem>>, vector<1x128xf32>,
    %c1 = arith.constant 1 : index
    %c0_6 = arith.constant 0 : index
    %10 = vector.load %arg2[%c1, %c0_6] : memref<8x128xf32, #tpu.memory_space<vmem>>, vector<1x128xf32>
    %cst_7 = arith.constant dense<0x7F800000> : vector<128xf32>
    %11 = vector.multi_reduction <minimumf>, %1, %cst_7 [0] : vector<32x128xf32> to vector<128xf32>
    %12 = vector.shape_cast %11 : vector<128xf32> to vector<1x128xf32>
    %13 = arith.addf %10, %12 : vector<1x128xf32>
    %c1_8 = arith.constant 1 : index
    %c0_9 = arith.constant 0 : index
    %14 = vector.load %arg2[%c1_8, %c0_9] : memref<8x128xf32, #tpu.memory_space<vmem>>, vector<1x128xf32>
    tpu.vector_store %arg2[%c1_8, %c0_9], %13 {strides = array<i32>} : memref<8x128xf32, #tpu.memory_space<vmem>>, vector<1x128xf32>,
    %c2 = arith.constant 2 : index
    %c0_10 = arith.constant 0 : index
    %15 = vector.load %arg2[%c2, %c0_10] : memref<8x128xf32, #tpu.memory_space<vmem>>, vector<1x128xf32>
    %cst_11 = arith.constant dense<0.000000e+00> : vector<128xf32>
    %16 = vector.multi_reduction <add>, %1, %cst_11 [0] : vector<32x128xf32> to vector<128xf32>
    %17 = vector.shape_cast %16 : vector<128xf32> to vector<1x128xf32>
    %18 = arith.addf %15, %17 : vector<1x128xf32>
    %c2_12 = arith.constant 2 : index
    %c0_13 = arith.constant 0 : index
    %19 = vector.load %arg2[%c2_12, %c0_13] : memref<8x128xf32, #tpu.memory_space<vmem>>, vector<1x128xf32>
    tpu.vector_store %arg2[%c2_12, %c0_13], %18 {strides = array<i32>} : memref<8x128xf32, #tpu.memory_space<vmem>>, vector<1x128xf32>,
    return
  }
  func.func @transform_0(%arg0: i32) -> (i32, i32) {
    %c0_i32 = arith.constant 0 : i32
    %c0_i32_0 = arith.constant 0 : i32
    return %arg0, %c0_i32 : i32, i32
  }
  func.func @transform_1(%arg0: i32) -> (i32, i32) {
    %c0_i32 = arith.constant 0 : i32
    %c0_i32_0 = arith.constant 0 : i32
    %c0_i32_1 = arith.constant 0 : i32
    return %c0_i32, %c0_i32_0 : i32, i32
  }
}

module attributes {stable_mosaic.version = 11 : i64} {
  func.func @_norm_add_kernel(%arg0: i32, %arg1: memref<32x128xbf16, #tpu.memory_space<vmem>>, %arg2: memref<1x128xf32, #tpu.memory_space<vmem>>, %arg3: memref<1x128xf32, #tpu.memory_space<vmem>>, %arg4: memref<32x128xbf16, #tpu.memory_space<vmem>>, %arg5: memref<1x128xf32, #tpu.memory_space<vmem>>, %arg6: memref<1x128xf32, #tpu.memory_space<vmem>>, %arg7: memref<32x128xf32, #tpu.memory_space<vmem>>) attributes {dimension_semantics = [#tpu.dimension_semantics<parallel>], iteration_bounds = array<i64: 16>, scalar_prefetch = 0 : i64, scratch_operands = 0 : i64, tpu.core_type = #tpu.core_type<tc>, window_params = [{transform_indices = @transform_0, window_bounds = array<i64: 32, 128>}, {pipeline_mode = #tpu.pipeline_mode<synchronous>, transform_indices = @transform_1, window_bounds = array<i64: 1, 128>}, {pipeline_mode = #tpu.pipeline_mode<synchronous>, transform_indices = @transform_2, window_bounds = array<i64: 1, 128>}, {transform_indices = @transform_3, window_bounds = array<i64: 32, 128>}, {pipeline_mode = #tpu.pipeline_mode<synchronous>, transform_indices = @transform_4, window_bounds = array<i64: 1, 128>}, {pipeline_mode = #tpu.pipeline_mode<synchronous>, transform_indices = @transform_5, window_bounds = array<i64: 1, 128>}, {transform_indices = @transform_6, window_bounds = array<i64: 32, 128>}]} {
    %c0 = arith.constant 0 : index
    %c0_0 = arith.constant 0 : index
    %0 = vector.load %arg1[%c0, %c0_0] : memref<32x128xbf16, #tpu.memory_space<vmem>>, vector<32x128xbf16>
    %1 = arith.extf %0 : vector<32x128xbf16> to vector<32x128xf32>
    %c0_1 = arith.constant 0 : index
    %c0_2 = arith.constant 0 : index
    %2 = vector.load %arg2[%c0_1, %c0_2] : memref<1x128xf32, #tpu.memory_space<vmem>>, vector<1x128xf32>
    %3 = vector.broadcast %2 : vector<1x128xf32> to vector<32x128xf32>
    %4 = arith.mulf %1, %3 : vector<32x128xf32>
    %c0_3 = arith.constant 0 : index
    %c0_4 = arith.constant 0 : index
    %5 = vector.load %arg3[%c0_3, %c0_4] : memref<1x128xf32, #tpu.memory_space<vmem>>, vector<1x128xf32>
    %6 = vector.broadcast %5 : vector<1x128xf32> to vector<32x128xf32>
    %7 = arith.addf %4, %6 : vector<32x128xf32>
    %c0_5 = arith.constant 0 : index
    %c0_6 = arith.constant 0 : index
    %8 = vector.load %arg4[%c0_5, %c0_6] : memref<32x128xbf16, #tpu.memory_space<vmem>>, vector<32x128xbf16>
    %9 = arith.extf %8 : vector<32x128xbf16> to vector<32x128xf32>
    %c0_7 = arith.constant 0 : index
    %c0_8 = arith.constant 0 : index
    %10 = vector.load %arg5[%c0_7, %c0_8] : memref<1x128xf32, #tpu.memory_space<vmem>>, vector<1x128xf32>
    %11 = vector.broadcast %10 : vector<1x128xf32> to vector<32x128xf32>
    %12 = arith.mulf %9, %11 : vector<32x128xf32>
    %13 = arith.addf %7, %12 : vector<32x128xf32>
    %c0_9 = arith.constant 0 : index
    %c0_10 = arith.constant 0 : index
    %14 = vector.load %arg6[%c0_9, %c0_10] : memref<1x128xf32, #tpu.memory_space<vmem>>, vector<1x128xf32>
    %15 = vector.broadcast %14 : vector<1x128xf32> to vector<32x128xf32>
    %16 = arith.addf %13, %15 : vector<32x128xf32>
    %c0_11 = arith.constant 0 : index
    %c0_12 = arith.constant 0 : index
    %17 = vector.load %arg7[%c0_11, %c0_12] : memref<32x128xf32, #tpu.memory_space<vmem>>, vector<32x128xf32>
    tpu.vector_store %arg7[%c0_11, %c0_12], %16 {strides = array<i32>} : memref<32x128xf32, #tpu.memory_space<vmem>>, vector<32x128xf32>,
    return
  }
  func.func @transform_0(%arg0: i32) -> (i32, i32) {
    %c0_i32 = arith.constant 0 : i32
    %c0_i32_0 = arith.constant 0 : i32
    return %arg0, %c0_i32 : i32, i32
  }
  func.func @transform_1(%arg0: i32) -> (i32, i32) {
    %c0_i32 = arith.constant 0 : i32
    %c0_i32_0 = arith.constant 0 : i32
    %c0_i32_1 = arith.constant 0 : i32
    return %c0_i32, %c0_i32_0 : i32, i32
  }
  func.func @transform_2(%arg0: i32) -> (i32, i32) {
    %c0_i32 = arith.constant 0 : i32
    %c0_i32_0 = arith.constant 0 : i32
    %c0_i32_1 = arith.constant 0 : i32
    return %c0_i32, %c0_i32_0 : i32, i32
  }
  func.func @transform_3(%arg0: i32) -> (i32, i32) {
    %c0_i32 = arith.constant 0 : i32
    %c0_i32_0 = arith.constant 0 : i32
    return %arg0, %c0_i32 : i32, i32
  }
  func.func @transform_4(%arg0: i32) -> (i32, i32) {
    %c0_i32 = arith.constant 0 : i32
    %c0_i32_0 = arith.constant 0 : i32
    %c0_i32_1 = arith.constant 0 : i32
    return %c0_i32, %c0_i32_0 : i32, i32
  }
  func.func @transform_5(%arg0: i32) -> (i32, i32) {
    %c0_i32 = arith.constant 0 : i32
    %c0_i32_0 = arith.constant 0 : i32
    %c0_i32_1 = arith.constant 0 : i32
    return %c0_i32, %c0_i32_0 : i32, i32
  }
  func.func @transform_6(%arg0: i32) -> (i32, i32) {
    %c0_i32 = arith.constant 0 : i32
    %c0_i32_0 = arith.constant 0 : i32
    return %arg0, %c0_i32 : i32, i32
  }
}

</mosaic_0001>

<llo_original>
// kernel: block_mq_forward.8
$region0: #{block_mq_forward.8}
  #allocation0 [shape = 'u32[]', space=smem, size = 0x4, offset = 0x4, fixed_abs, tag = 'smem constant byte address 0x4 - core index']
  #allocation1 [shape = 'u32[144,128]{1,0:T(1,128)}', space=vmem, size = 0x12000, scoped, tag = 'internal scratch']
  %s0 = inlined_call_operand.vmem [shape: bf16[512,128], index: 0, kind: input, shape index: {}]
  %s1 = inlined_call_operand.vmem [shape: f32[8,128], index: 1, kind: output, shape index: {}]
  %s2 = sld [smem:[#allocation0]]
  $region41: #{block_mq_forward.8} parent=0
    _
  %s4 = ssub.s32 1, %s2
  %s5 = scalar_select 0, %s4, %s2
  loop: start=0, step=1, limit=18
  $region2: #{block_mq_forward.8} parent=0 // loop_pre_header
    _
  $region3: #{block_mq_forward.8} parent=0 // loop_header
    %s7 = sphi 0, %s11
    %p8 = scmp.ge.s32.totalorder %s7, 18
    %s17 = sphi 0, %s19
    %s20 = sphi 0, %s17
    %s21 = sphi 0, %s20
    %s37 = sphi 0, %s21
    %s41 = sphi 0, %s41
    %s43 = sphi 0, %s41
    %s44 = sphi 0, %s43
    %s58 = sphi 0, %s44
  $region4: #{block_mq_forward.8} parent=0 // loop_header_branch
    %10 = sbr.rel (%p8) target = $region8
  $region5: #{block_mq_forward.8} parent=0 // loop_body
    %s12 = ssub.s32 %s7, 1
    %s13 = ssub.s32 %s7, 2
    %s14 = sadd.s32 %s7, 1
    %s15 = ssub.s32 %s7, %s14
    %p16 = scmp.eq.s32.totalorder %s15, 0
    %s18 = sadd.s32 %s17, 1
    %s19 = scalar_select %p16, %s17, %s18
    %p22 = pneg %p16
    %p23 = scmp.eq.s32.totalorder %s7, 15
    %p24 = por %p22, %p23
    %p25 = scmp.ne.s32.totalorder %s17, %s20
    %p26 = scmp.eq.s32.totalorder %s7, 0
    %p27 = por %p25, %p26
    %p28 = scmp.ne.s32.totalorder %s17, %s20
    %p29 = scmp.eq.s32.totalorder %s12, 15
    %p30 = por %p28, %p29
    %p31 = scmp.ne.s32.totalorder %s20, %s21
    %p32 = scmp.eq.s32.totalorder %s12, 0
    %p33 = por %p31, %p32
    %p34 = scmp.ne.s32.totalorder %s20, %s21
    %p35 = scmp.eq.s32.totalorder %s13, 15
    %p36 = por %p34, %p35
    %p38 = scmp.ne.s32.totalorder %s21, %s37
    %p39 = scmp.eq.s32.totalorder %s13, 0
    %p40 = por %p38, %p39
    %s42 = sadd.s32 %s41, 1
    %p45 = scmp.eq.s32.totalorder %s7, 15
    %p46 = scmp.ne.s32.totalorder %s41, %s43
    %p47 = scmp.eq.s32.totalorder %s7, 0
    %p48 = por %p46, %p47
    %p49 = scmp.ne.s32.totalorder %s41, %s43
    %p50 = scmp.eq.s32.totalorder %s12, 15
    %p51 = por %p49, %p50
    %p52 = scmp.ne.s32.totalorder %s43, %s44
    %p53 = scmp.eq.s32.totalorder %s12, 0
    %p54 = por %p52, %p53
    %p55 = scmp.ne.s32.totalorder %s43, %s44
    %p56 = scmp.eq.s32.totalorder %s13, 15
    %p57 = por %p55, %p56
    %p59 = scmp.ne.s32.totalorder %s44, %s58
    %p60 = scmp.eq.s32.totalorder %s13, 0
    %p61 = por %p59, %p60
    %p62 = scmp.le.s32.totalorder 1, %s7
    %p63 = scmp.lt.s32.totalorder %s7, 17
    %p64 = pnand %p62, %p63
    %p65 = pneg %p64
    // Predicated region
    $region9: #{block_mq_forward.8} parent=5 // pred_check
      _
    $region10: #{block_mq_forward.8} parent=5 // pred_check_branch
      %67 = sbr.rel (%p64) target = $region12
    $region11: #{block_mq_forward.8} parent=5 // pred_region
      %s68 = ssub.s32 %s7, 1
    $region12: #{block_mq_forward.8} parent=5 // pred_fallthru
      _
    %p69 = scmp.lt.s32.totalorder %s7, 16
    // Predicated region
    $region13: #{block_mq_forward.8} parent=5 // pred_check
      %p70 = pneg %p69
    $region14: #{block_mq_forward.8} parent=5 // pred_check_branch
      %72 = sbr.rel (%p70) target = $region16
    $region15: #{block_mq_forward.8} parent=5 // pred_region
      // Predicated region
      $region17: #{block_mq_forward.8} parent=15 // pred_check
        %p73 = pneg %p27
      $region18: #{block_mq_forward.8} parent=15 // pred_check_branch
        %75 = sbr.rel (%p73) target = $region20
      $region19: #{block_mq_forward.8} parent=15 // pred_region
        %s76 = smul.u32 4, %s7
        %p77 = scmp.lt.s32.totalorder %s76, 63
        %s78 = scalar_select %p77, %s76, 63
        %s79 = smul.addr %s78, 4
        %s80 = scalar_lea.vmem %s0, %s79
        %s81 = smul.u32 4, %s7
      $region20: #{block_mq_forward.8} parent=15 // pred_fallthru
        _
    $region16: #{block_mq_forward.8} parent=5 // pred_fallthru
      _
    %p82 = scmp.le.s32.totalorder 1, %s7
    %p83 = scmp.lt.s32.totalorder %s7, 17
    %p84 = pnand %p82, %p83
    %p85 = pneg %p84
    // Predicated region
    $region21: #{block_mq_forward.8} parent=5 // pred_check
      _
    $region22: #{block_mq_forward.8} parent=5 // pred_check_branch
      %87 = sbr.rel (%p84) target = $region24
    $region23: #{block_mq_forward.8} parent=5 // pred_region
      %s88 = ssub.s32 %s7, 1
      %s89 = smul.u32 4, %s12
      %p90 = scmp.lt.s32.totalorder %s89, 63
      %s91 = scalar_select %p90, %s89, 63
      %s92 = smul.addr %s91, 4
      %s93 = scalar_lea.vmem %s0, %s92
      %p94 = pneg %p33
      %p95 = pneg %p30
      %p96 = pneg %p54
      %p97 = pneg %p51
      %s98 = smul.u32 4, %s12
      %p99 = scmp.lt.s32.totalorder %s98, 63
      %s100 = scalar_select %p99, %s98, 63
      %s101 = smul.addr %s100, 4
      %s102 = scalar_lea.vmem %s0, %s101
      %s103 = smul.u32 4, %s12
      %v104 = vld [vmem:[%s102] sm:$0xf]
      %v105 = vld [vmem:[%s102 + $0x4] sm:$0xf]
      %v106 = vld [vmem:[%s102 + $0x8] sm:$0xf]
      %v107 = vld [vmem:[%s102 + $0xc] sm:$0xf]
      %v108 = vunpack.c.l.bf16 %v104
      %v109 = vunpack.c.l.bf16 %v105
      %v110 = vunpack.c.l.bf16 %v106
      %v111 = vunpack.c.l.bf16 %v107
      %p112 = scmp.eq.s32.totalorder %s12, 0
      // Predicated region
      $region25: #{block_mq_forward.8} parent=23 // pred_check
        %p113 = pneg %p112
      $region26: #{block_mq_forward.8} parent=23 // pred_check_branch
        %115 = sbr.rel (%p113) target = $region28
      $region27: #{block_mq_forward.8} parent=23 // pred_region
        %116 = vst [vmem:[%s1] sm:$0xff] 0.0
      $region28: #{block_mq_forward.8} parent=23 // pred_fallthru
        _
      %v117 = vld [vmem:[%s1] sm:$0x1]
      %v118 = vmax.f32 %v108, %v109
      %v119 = vmax.f32 %v110, %v111
      %v120 = vmax.f32 %v118, %v119
      %v121 = vrot.slane %v120, 4
      %v122 = vmax.f32 %v120, %v121
      %v123 = vrot.slane %v122, 2
      %v124 = vmax.f32 %v122, %v123
      %v125 = vrot.slane %v124, 1
      %v126 = vmax.f32 %v124, %v125
      %v127 = vadd.f32 %v117, %v126
      %128 = vst [vmem:[%s1] sm:$0x1] %v127
      %v129 = vld [vmem:[%s1 + $0x1] sm:$0x1]
      %v130 = vmin.f32 %v108, %v109
      %v131 = vmin.f32 %v110, %v111
      %v132 = vmin.f32 %v130, %v131
      %v133 = vrot.slane %v132, 4
      %v134 = vmin.f32 %v132, %v133
      %v135 = vrot.slane %v134, 2
      %v136 = vmin.f32 %v134, %v135
      %v137 = vrot.slane %v136, 1
      %v138 = vmin.f32 %v136, %v137
      %v139 = vadd.f32 %v129, %v138
      %140 = vst [vmem:[%s1 + $0x1] sm:$0x1] %v139
      %v141 = vld [vmem:[%s1 + $0x2] sm:$0x1]
      %v142 = vadd.f32 %v108, %v109
      %v143 = vadd.f32 %v142, %v110
      %v144 = vadd.f32 %v143, %v111
      %v145 = vrot.slane %v144, 4
      %v146 = vadd.f32 %v144, %v145
      %v147 = vrot.slane %v146, 2
      %v148 = vadd.f32 %v146, %v147
      %v149 = vrot.slane %v148, 1
      %v150 = vadd.f32 %v148, %v149
      %v151 = vadd.f32 %v141, %v150
      %152 = vst [vmem:[%s1 + $0x2] sm:$0x1] %v151
      // Predicated region
      $region29: #{block_mq_forward.8} parent=23 // pred_check
        %p153 = pneg %p51
      $region30: #{block_mq_forward.8} parent=23 // pred_check_branch
        %155 = sbr.rel (%p153) target = $region32
      $region31: #{block_mq_forward.8} parent=23 // pred_region
        _
      $region32: #{block_mq_forward.8} parent=23 // pred_fallthru
        _
      // Predicated region
      $region33: #{block_mq_forward.8} parent=23 // pred_check
        %p156 = pneg %p51
      $region34: #{block_mq_forward.8} parent=23 // pred_check_branch
        %158 = sbr.rel (%p156) target = $region36
      $region35: #{block_mq_forward.8} parent=23 // pred_region
        _
      $region36: #{block_mq_forward.8} parent=23 // pred_fallthru
        _
    $region24: #{block_mq_forward.8} parent=5 // pred_fallthru
      _
    %p159 = scmp.le.s32.totalorder 2, %s7
    // Predicated region
    $region37: #{block_mq_forward.8} parent=5 // pred_check
      %p160 = pneg %p159
    $region38: #{block_mq_forward.8} parent=5 // pred_check_branch
      %162 = sbr.rel (%p160) target = $region40
    $region39: #{block_mq_forward.8} parent=5 // pred_region
      %s163 = ssub.s32 %s7, 2
    $region40: #{block_mq_forward.8} parent=5 // pred_fallthru
      _
  $region6: #{block_mq_forward.8} parent=0 // loop_footer
    %s11 = sadd.s32 1, %s7
  $region7: #{block_mq_forward.8} parent=0 // loop_footer_branch
    %6 = sbr.rel target = $region3
  $region8: #{block_mq_forward.8} parent=0 // loop_exit
    _

// kernel: block_mq_forward.10
$region0: #{block_mq_forward.10}
  #allocation0 [shape = 'u32[]', space=smem, size = 0x4, offset = 0x4, fixed_abs, tag = 'smem constant byte address 0x4 - core index']
  #allocation1 [shape = 'u32[144,128]{1,0:T(1,128)}', space=vmem, size = 0x12000, scoped, tag = 'internal scratch']
  %s0 = inlined_call_operand.vmem [shape: bf16[512,128], index: 0, kind: input, shape index: {}]
  %s1 = inlined_call_operand.vmem [shape: bf16[128,128], index: 1, kind: input, shape index: {}]
  %s2 = inlined_call_operand.vmem [shape: f32[1,128], index: 2, kind: input, shape index: {}]
  %s3 = inlined_call_operand.vmem [shape: bf16[512,128], index: 3, kind: output, shape index: {0}]
  %s4 = inlined_call_operand.vmem [shape: f32[8,128], index: 4, kind: output, shape index: {1}]
  %5 = xla_tuple %s3, %s4
  %s6 = sld [smem:[#allocation0]]
  $region57: #{block_mq_forward.10} parent=0
    _
  %s8 = ssub.s32 1, %s6
  %s9 = scalar_select 0, %s8, %s6
  loop: start=0, step=1, limit=18
  $region2: #{block_mq_forward.10} parent=0 // loop_pre_header
    _
  $region3: #{block_mq_forward.10} parent=0 // loop_header
    %s11 = sphi 0, %s15
    %p12 = scmp.ge.s32.totalorder %s11, 18
    %s21 = sphi 0, %s23
    %s24 = sphi 0, %s21
    %s25 = sphi 0, %s24
    %s41 = sphi 0, %s25
    %s45 = sphi 0, %s45
    %s47 = sphi 0, %s45
    %s48 = sphi 0, %s47
    %s62 = sphi 0, %s48
    %s66 = sphi 0, %s66
    %s68 = sphi 0, %s66
    %s69 = sphi 0, %s68
    %s83 = sphi 0, %s69
    %s89 = sphi 0, %s91
    %s92 = sphi 0, %s89
    %s93 = sphi 0, %s92
    %s109 = sphi 0, %s93
    %s113 = sphi 0, %s113
    %s115 = sphi 0, %s113
    %s116 = sphi 0, %s115
    %s130 = sphi 0, %s116
  $region4: #{block_mq_forward.10} parent=0 // loop_header_branch
    %14 = sbr.rel (%p12) target = $region8
  $region5: #{block_mq_forward.10} parent=0 // loop_body
    %s16 = ssub.s32 %s11, 1
    %s17 = ssub.s32 %s11, 2
    %s18 = sadd.s32 %s11, 1
    %s19 = ssub.s32 %s11, %s18
    %p20 = scmp.eq.s32.totalorder %s19, 0
    %s22 = sadd.s32 %s21, 1
    %s23 = scalar_select %p20, %s21, %s22
    %p26 = pneg %p20
    %p27 = scmp.eq.s32.totalorder %s11, 15
    %p28 = por %p26, %p27
    %p29 = scmp.ne.s32.totalorder %s21, %s24
    %p30 = scmp.eq.s32.totalorder %s11, 0
    %p31 = por %p29, %p30
    %p32 = scmp.ne.s32.totalorder %s21, %s24
    %p33 = scmp.eq.s32.totalorder %s16, 15
    %p34 = por %p32, %p33
    %p35 = scmp.ne.s32.totalorder %s24, %s25
    %p36 = scmp.eq.s32.totalorder %s16, 0
    %p37 = por %p35, %p36
    %p38 = scmp.ne.s32.totalorder %s24, %s25
    %p39 = scmp.eq.s32.totalorder %s17, 15
    %p40 = por %p38, %p39
    %p42 = scmp.ne.s32.totalorder %s25, %s41
    %p43 = scmp.eq.s32.totalorder %s17, 0
    %p44 = por %p42, %p43
    %s46 = sadd.s32 %s45, 1
    %p49 = scmp.eq.s32.totalorder %s11, 15
    %p50 = scmp.ne.s32.totalorder %s45, %s47
    %p51 = scmp.eq.s32.totalorder %s11, 0
    %p52 = por %p50, %p51
    %p53 = scmp.ne.s32.totalorder %s45, %s47
    %p54 = scmp.eq.s32.totalorder %s16, 15
    %p55 = por %p53, %p54
    %p56 = scmp.ne.s32.totalorder %s47, %s48
    %p57 = scmp.eq.s32.totalorder %s16, 0
    %p58 = por %p56, %p57
    %p59 = scmp.ne.s32.totalorder %s47, %s48
    %p60 = scmp.eq.s32.totalorder %s17, 15
    %p61 = por %p59, %p60
    %p63 = scmp.ne.s32.totalorder %s48, %s62
    %p64 = scmp.eq.s32.totalorder %s17, 0
    %p65 = por %p63, %p64
    %s67 = sadd.s32 %s66, 1
    %p70 = scmp.eq.s32.totalorder %s11, 15
    %p71 = scmp.ne.s32.totalorder %s66, %s68
    %p72 = scmp.eq.s32.totalorder %s11, 0
    %p73 = por %p71, %p72
    %p74 = scmp.ne.s32.totalorder %s66, %s68
    %p75 = scmp.eq.s32.totalorder %s16, 15
    %p76 = por %p74, %p75
    %p77 = scmp.ne.s32.totalorder %s68, %s69
    %p78 = scmp.eq.s32.totalorder %s16, 0
    %p79 = por %p77, %p78
    %p80 = scmp.ne.s32.totalorder %s68, %s69
    %p81 = scmp.eq.s32.totalorder %s17, 15
    %p82 = por %p80, %p81
    %p84 = scmp.ne.s32.totalorder %s69, %s83
    %p85 = scmp.eq.s32.totalorder %s17, 0
    %p86 = por %p84, %p85
    %s87 = ssub.s32 %s11, %s18
    %p88 = scmp.eq.s32.totalorder %s87, 0
    %s90 = sadd.s32 %s89, 1
    %s91 = scalar_select %p88, %s89, %s90
    %p94 = pneg %p88
    %p95 = scmp.eq.s32.totalorder %s11, 15
    %p96 = por %p94, %p95
    %p97 = scmp.ne.s32.totalorder %s89, %s92
    %p98 = scmp.eq.s32.totalorder %s11, 0
    %p99 = por %p97, %p98
    %p100 = scmp.ne.s32.totalorder %s89, %s92
    %p101 = scmp.eq.s32.totalorder %s16, 15
    %p102 = por %p100, %p101
    %p103 = scmp.ne.s32.totalorder %s92, %s93
    %p104 = scmp.eq.s32.totalorder %s16, 0
    %p105 = por %p103, %p104
    %p106 = scmp.ne.s32.totalorder %s92, %s93
    %p107 = scmp.eq.s32.totalorder %s17, 15
    %p108 = por %p106, %p107
    %p110 = scmp.ne.s32.totalorder %s93, %s109
    %p111 = scmp.eq.s32.totalorder %s17, 0
    %p112 = por %p110, %p111
    %s114 = sadd.s32 %s113, 1
    %p117 = scmp.eq.s32.totalorder %s11, 15
    %p118 = scmp.ne.s32.totalorder %s113, %s115
    %p119 = scmp.eq.s32.totalorder %s11, 0
    %p120 = por %p118, %p119
    %p121 = scmp.ne.s32.totalorder %s113, %s115
    %p122 = scmp.eq.s32.totalorder %s16, 15
    %p123 = por %p121, %p122
    %p124 = scmp.ne.s32.totalorder %s115, %s116
    %p125 = scmp.eq.s32.totalorder %s16, 0
    %p126 = por %p124, %p125
    %p127 = scmp.ne.s32.totalorder %s115, %s116
    %p128 = scmp.eq.s32.totalorder %s17, 15
    %p129 = por %p127, %p128
    %p131 = scmp.ne.s32.totalorder %s116, %s130
    %p132 = scmp.eq.s32.totalorder %s17, 0
    %p133 = por %p131, %p132
    %p134 = scmp.le.s32.totalorder 1, %s11
    %p135 = scmp.lt.s32.totalorder %s11, 17
    %p136 = pnand %p134, %p135
    %p137 = pneg %p136
    // Predicated region
    $region9: #{block_mq_forward.10} parent=5 // pred_check
      _
    $region10: #{block_mq_forward.10} parent=5 // pred_check_branch
      %139 = sbr.rel (%p136) target = $region12
    $region11: #{block_mq_forward.10} parent=5 // pred_region
      %s140 = ssub.s32 %s11, 1
      // Predicated region
      $region13: #{block_mq_forward.10} parent=11 // pred_check
        %p141 = pneg %p58
      $region14: #{block_mq_forward.10} parent=11 // pred_check_branch
        %143 = sbr.rel (%p141) target = $region16
      $region15: #{block_mq_forward.10} parent=11 // pred_region
        _
      $region16: #{block_mq_forward.10} parent=11 // pred_fallthru
        _
      // Predicated region
      $region17: #{block_mq_forward.10} parent=11 // pred_check
        %p144 = pneg %p79
      $region18: #{block_mq_forward.10} parent=11 // pred_check_branch
        %146 = sbr.rel (%p144) target = $region20
      $region19: #{block_mq_forward.10} parent=11 // pred_region
        _
      $region20: #{block_mq_forward.10} parent=11 // pred_fallthru
        _
    $region12: #{block_mq_forward.10} parent=5 // pred_fallthru
      _
    %p147 = scmp.lt.s32.totalorder %s11, 16
    // Predicated region
    $region21: #{block_mq_forward.10} parent=5 // pred_check
      %p148 = pneg %p147
    $region22: #{block_mq_forward.10} parent=5 // pred_check_branch
      %150 = sbr.rel (%p148) target = $region24
    $region23: #{block_mq_forward.10} parent=5 // pred_region
      // Predicated region
      $region25: #{block_mq_forward.10} parent=23 // pred_check
        %p151 = pneg %p31
      $region26: #{block_mq_forward.10} parent=23 // pred_check_branch
        %153 = sbr.rel (%p151) target = $region28
      $region27: #{block_mq_forward.10} parent=23 // pred_region
        %s154 = smul.u32 4, %s11
        %p155 = scmp.lt.s32.totalorder %s154, 63
        %s156 = scalar_select %p155, %s154, 63
        %s157 = smul.addr %s156, 4
        %s158 = scalar_lea.vmem %s0, %s157
        %s159 = smul.u32 4, %s11
      $region28: #{block_mq_forward.10} parent=23 // pred_fallthru
        _
    $region24: #{block_mq_forward.10} parent=5 // pred_fallthru
      _
    %p160 = scmp.le.s32.totalorder 1, %s11
    %p161 = scmp.lt.s32.totalorder %s11, 17
    %p162 = pnand %p160, %p161
    %p163 = pneg %p162
    // Predicated region
    $region29: #{block_mq_forward.10} parent=5 // pred_check
      _
    $region30: #{block_mq_forward.10} parent=5 // pred_check_branch
      %165 = sbr.rel (%p162) target = $region32
    $region31: #{block_mq_forward.10} parent=5 // pred_region
      %s166 = ssub.s32 %s11, 1
      %s167 = smul.u32 4, %s16
      %p168 = scmp.lt.s32.totalorder %s167, 63
      %s169 = scalar_select %p168, %s167, 63
      %s170 = smul.addr %s169, 4
      %s171 = scalar_lea.vmem %s0, %s170
      %p172 = pneg %p37
      %p173 = pneg %p34
      %p174 = pneg %p58
      %p175 = pneg %p55
      %p176 = pneg %p79
      %p177 = pneg %p76
      %p178 = pneg %p105
      %p179 = pneg %p102
      %s180 = smul.u32 4, %s16
      %p181 = scmp.lt.s32.totalorder %s180, 63
      %s182 = scalar_select %p181, %s180, 63
      %s183 = smul.addr %s182, 4
      %s184 = scalar_lea.vmem %s3, %s183
      %p185 = pneg %p126
      %p186 = pneg %p123
      %s187 = smul.u32 4, %s16
      %p188 = scmp.lt.s32.totalorder %s187, 63
      %s189 = scalar_select %p188, %s187, 63
      %s190 = smul.addr %s189, 4
      %s191 = scalar_lea.vmem %s0, %s190
      %s192 = smul.u32 4, %s16
      %s193 = smul.u32 4, %s16
      %p194 = scmp.lt.s32.totalorder %s193, 63
      %s195 = scalar_select %p194, %s193, 63
      %s196 = smul.addr %s195, 4
      %s197 = scalar_lea.vmem %s3, %s196
      %s198 = smul.u32 4, %s16
      %v200 = vld [vmem:[%s191] sm:$0xf]
      %v201 = vld [vmem:[%s191 + $0x4] sm:$0xf]
      %v202 = vld [vmem:[%s191 + $0x8] sm:$0xf]
      %v203 = vld [vmem:[%s191 + $0xc] sm:$0xf]
      %v204 = vld [vmem:[%s1] sm:$0xf]
      %v205 = vld [vmem:[%s1 + $0x4] sm:$0xf]
      %v206 = vld [vmem:[%s1 + $0x8] sm:$0xf]
      %v207 = vld [vmem:[%s1 + $0xc] sm:$0xf]
      %v208 = vld [vmem:[%s1 + $0x10] sm:$0xf]
      %v209 = vld [vmem:[%s1 + $0x14] sm:$0xf]
      %v210 = vld [vmem:[%s1 + $0x18] sm:$0xf]
      %v211 = vld [vmem:[%s1 + $0x1c] sm:$0xf]
      %v212 = vld [vmem:[%s1 + $0x20] sm:$0xf]
      %v213 = vld [vmem:[%s1 + $0x24] sm:$0xf]
      %v214 = vld [vmem:[%s1 + $0x28] sm:$0xf]
      %v215 = vld [vmem:[%s1 + $0x2c] sm:$0xf]
      %v216 = vld [vmem:[%s1 + $0x30] sm:$0xf]
      %v217 = vld [vmem:[%s1 + $0x34] sm:$0xf]
      %v218 = vld [vmem:[%s1 + $0x38] sm:$0xf]
      %v219 = vld [vmem:[%s1 + $0x3c] sm:$0xf]
      %v220 = vld [vmem:[%s2] sm:$0x1]
      %v222 = vlaneseq
      %v223 = vshrl.u32 %v222, 7
      %v224 = vsub.s32 0, %v223
      %v225 = vrot.slane %v220, %v224
      %v231 = vunpack.c.l.b16 %v200
      %v232 = vunpack.c.l.b16 %v201
      %v233 = vunpack.c.l.b16 %v202
      %v234 = vunpack.c.l.b16 %v203
      %v235 = vpack.c.b16 %v232, %v231
      %v236 = vpack.c.b16 %v234, %v233
      %v255 = vunpack.c.l.b16 %v204
      %v256 = vunpack.c.l.b16 %v205
      %v257 = vunpack.c.l.b16 %v206
      %v258 = vunpack.c.l.b16 %v207
      %v259 = vunpack.c.l.b16 %v208
      %v260 = vunpack.c.l.b16 %v209
      %v261 = vunpack.c.l.b16 %v210
      %v262 = vunpack.c.l.b16 %v211
      %v263 = vunpack.c.l.b16 %v212
      %v264 = vunpack.c.l.b16 %v213
      %v265 = vunpack.c.l.b16 %v214
      %v266 = vunpack.c.l.b16 %v215
      %v267 = vunpack.c.l.b16 %v216
      %v268 = vunpack.c.l.b16 %v217
      %v269 = vunpack.c.l.b16 %v218
      %v270 = vunpack.c.l.b16 %v219
      %v271 = vpack.c.b16 %v256, %v255
      %v272 = vpack.c.b16 %v258, %v257
      %v273 = vpack.c.b16 %v260, %v259
      %v274 = vpack.c.b16 %v262, %v261
      %v275 = vpack.c.b16 %v264, %v263
      %v276 = vpack.c.b16 %v266, %v265
      %v277 = vpack.c.b16 %v268, %v267
      %v278 = vpack.c.b16 %v270, %v269
      %287 = vmatprep.subr.bf16.mxu0 0
      %288 = vmatpush1.bf16.msra.mxu0 %v271
      %289 = vmatprep.subr.bf16.mxu0 0
      %290 = vmatpush1.bf16.msra.mxu0 %v272
      %291 = vmatprep.subr.bf16.mxu0 0
      %292 = vmatpush1.bf16.msra.mxu0 %v273
      %293 = vmatprep.subr.bf16.mxu0 0
      %294 = vmatpush1.bf16.msra.mxu0 %v274
      %295 = vmatprep.subr.bf16.mxu0 0
      %296 = vmatpush1.bf16.msra.mxu0 %v275
      %297 = vmatprep.subr.bf16.mxu0 0
      %298 = vmatpush1.bf16.msra.mxu0 %v276
      %299 = vmatprep.subr.bf16.mxu0 0
      %300 = vmatpush1.bf16.msra.mxu0 %v277
      %301 = vmatprep.subr.bf16.mxu0 0
      %302 = vmatpush1.bf16.msra.mxu0 %v278
      %303 = vmatprep.subr.bf16.mxu0 0
      %304 = vmatpush1.bf16.msra.mxu0 0
      %305 = vmatprep.subr.bf16.mxu0 0
      %306 = vmatpush1.bf16.msra.mxu0 0
      %307 = vmatprep.subr.bf16.mxu0 0
      %308 = vmatpush1.bf16.msra.mxu0 0
      %309 = vmatprep.subr.bf16.mxu0 0
      %310 = vmatpush1.bf16.msra.mxu0 0
      %311 = vmatprep.subr.bf16.mxu0 0
      %312 = vmatpush1.bf16.msra.mxu0 0
      %313 = vmatprep.subr.bf16.mxu0 0
      %314 = vmatpush1.bf16.msra.mxu0 0
      %315 = vmatprep.subr.bf16.mxu0 0
      %316 = vmatpush1.bf16.msra.mxu0 0
      %317 = vmatprep.subr.bf16.mxu0 0
      %318 = vmatpush1.bf16.msra.mxu0 0
      %319 = vmatprep.mubr.bf16.mxu0 0
      %320 = vmatmul.mubr.bf16.gmra.mrb[0].mxu0 %v235
      %v321 = vpop.f32.mrb[0].mxu0
      %v322 = vadd.f32 %v225, %v321
      %v323 = vpop.f32.mrb[0].mxu0
      %v324 = vpop.f32.mrb[0].mxu0
      %v325 = vadd.f32 %v225, %v324
      %v326 = vpop.f32.mrb[0].mxu0
      %327 = vmatprep.mubr.bf16.mxu0 0
      %328 = vmatmul.mubr.bf16.gmra.mrb[0].mxu0 %v236
      %v329 = vpop.f32.mrb[0].mxu0
      %v330 = vadd.f32 %v225, %v329
      %v331 = vpop.f32.mrb[0].mxu0
      %v332 = vpop.f32.mrb[0].mxu0
      %v333 = vadd.f32 %v225, %v332
      %v334 = vpop.f32.mrb[0].mxu0
      %335 = vdwg.mxu0
      %p336 = scmp.eq.s32.totalorder %s16, 0
      // Predicated region
      $region33: #{block_mq_forward.10} parent=31 // pred_check
        %p337 = pneg %p336
      $region34: #{block_mq_forward.10} parent=31 // pred_check_branch
        %339 = sbr.rel (%p337) target = $region36
      $region35: #{block_mq_forward.10} parent=31 // pred_region
        %340 = vst [vmem:[%s4] sm:$0xff] 0.0
      $region36: #{block_mq_forward.10} parent=31 // pred_fallthru
        _
      %v341 = vld [vmem:[%s4] sm:$0x1]
      %v342 = vmax.f32 %v322, %v325
      %v343 = vmax.f32 %v330, %v333
      %v344 = vmax.f32 %v342, %v343
      %v345 = vrot.slane %v344, 4
      %v346 = vmax.f32 %v344, %v345
      %v347 = vrot.slane %v346, 2
      %v348 = vmax.f32 %v346, %v347
      %v349 = vrot.slane %v348, 1
      %v350 = vmax.f32 %v348, %v349
      %v351 = vadd.f32 %v341, %v350
      %352 = vst [vmem:[%s4] sm:$0x1] %v351
      %v353 = vld [vmem:[%s4 + $0x1] sm:$0x1]
      %v354 = vmin.f32 %v322, %v325
      %v355 = vmin.f32 %v330, %v333
      %v356 = vmin.f32 %v354, %v355
      %v357 = vrot.slane %v356, 4
      %v358 = vmin.f32 %v356, %v357
      %v359 = vrot.slane %v358, 2
      %v360 = vmin.f32 %v358, %v359
      %v361 = vrot.slane %v360, 1
      %v362 = vmin.f32 %v360, %v361
      %v363 = vadd.f32 %v353, %v362
      %364 = vst [vmem:[%s4 + $0x1] sm:$0x1] %v363
      %v365 = vld [vmem:[%s4 + $0x2] sm:$0x1]
      %v366 = vadd.f32 %v322, %v325
      %v367 = vadd.f32 %v366, %v330
      %v368 = vadd.f32 %v367, %v333
      %v369 = vrot.slane %v368, 4
      %v370 = vadd.f32 %v368, %v369
      %v371 = vrot.slane %v370, 2
      %v372 = vadd.f32 %v370, %v371
      %v373 = vrot.slane %v372, 1
      %v374 = vadd.f32 %v372, %v373
      %v375 = vadd.f32 %v365, %v374
      %376 = vst [vmem:[%s4 + $0x2] sm:$0x1] %v375
      %v377 = vpack.c.bf16 %v325, %v322
      %v378 = vpack.c.bf16 %v333, %v330
      %v381 = vunpack.c.l.b16 %v377
      %v382 = vunpack.c.h.b16 %v377
      %v383 = vunpack.c.l.b16 %v378
      %v384 = vunpack.c.h.b16 %v378
      %v385 = vpack.c.b16 %v381, %v381
      %v386 = vpack.c.b16 %v382, %v382
      %v387 = vpack.c.b16 %v383, %v383
      %v388 = vpack.c.b16 %v384, %v384
      %393 = vst [vmem:[%s197] sm:$0xf] %v385
      %394 = vst [vmem:[%s197 + $0x4] sm:$0xf] %v386
      %395 = vst [vmem:[%s197 + $0x8] sm:$0xf] %v387
      %396 = vst [vmem:[%s197 + $0xc] sm:$0xf] %v388
      %s397 = smul.u32 4, %s16
      %p398 = scmp.lt.s32.totalorder %s397, 63
      %s399 = scalar_select %p398, %s397, 63
      %s400 = smul.addr %s399, 4
      %s401 = scalar_lea.vmem %s3, %s400
      // Predicated region
      $region37: #{block_mq_forward.10} parent=31 // pred_check
        %p402 = pneg %p102
      $region38: #{block_mq_forward.10} parent=31 // pred_check_branch
        %404 = sbr.rel (%p402) target = $region40
      $region39: #{block_mq_forward.10} parent=31 // pred_region
        %s405 = smul.u32 4, %s16
      $region40: #{block_mq_forward.10} parent=31 // pred_fallthru
        _
      // Predicated region
      $region41: #{block_mq_forward.10} parent=31 // pred_check
        %p406 = pneg %p123
      $region42: #{block_mq_forward.10} parent=31 // pred_check_branch
        %408 = sbr.rel (%p406) target = $region44
      $region43: #{block_mq_forward.10} parent=31 // pred_region
        _
      $region44: #{block_mq_forward.10} parent=31 // pred_fallthru
        _
      // Predicated region
      $region45: #{block_mq_forward.10} parent=31 // pred_check
        %p409 = pneg %p123
      $region46: #{block_mq_forward.10} parent=31 // pred_check_branch
        %411 = sbr.rel (%p409) target = $region48
      $region47: #{block_mq_forward.10} parent=31 // pred_region
        _
      $region48: #{block_mq_forward.10} parent=31 // pred_fallthru
        _
    $region32: #{block_mq_forward.10} parent=5 // pred_fallthru
      _
    %p412 = scmp.le.s32.totalorder 2, %s11
    // Predicated region
    $region49: #{block_mq_forward.10} parent=5 // pred_check
      %p413 = pneg %p412
    $region50: #{block_mq_forward.10} parent=5 // pred_check_branch
      %415 = sbr.rel (%p413) target = $region52
    $region51: #{block_mq_forward.10} parent=5 // pred_region
      %s416 = ssub.s32 %s11, 2
      // Predicated region
      $region53: #{block_mq_forward.10} parent=51 // pred_check
        %p417 = pneg %p108
      $region54: #{block_mq_forward.10} parent=51 // pred_check_branch
        %419 = sbr.rel (%p417) target = $region56
      $region55: #{block_mq_forward.10} parent=51 // pred_region
        %s420 = smul.u32 4, %s17
        %p421 = scmp.lt.s32.totalorder %s420, 63
        %s422 = scalar_select %p421, %s420, 63
        %s423 = smul.addr %s422, 4
        %s424 = scalar_lea.vmem %s3, %s423
      $region56: #{block_mq_forward.10} parent=51 // pred_fallthru
        _
    $region52: #{block_mq_forward.10} parent=5 // pred_fallthru
      _
  $region6: #{block_mq_forward.10} parent=0 // loop_footer
    %s15 = sadd.s32 1, %s11
  $region7: #{block_mq_forward.10} parent=0 // loop_footer_branch
    %10 = sbr.rel target = $region3
  $region8: #{block_mq_forward.10} parent=0 // loop_exit
    _

// kernel: block_mq_forward.7
$region0: #{block_mq_forward.7}
  #allocation0 [shape = 'u32[]', space=smem, size = 0x4, offset = 0x4, fixed_abs, tag = 'smem constant byte address 0x4 - core index']
  #allocation1 [shape = 'u32[144,128]{1,0:T(1,128)}', space=vmem, size = 0x12000, scoped, tag = 'internal scratch']
  #allocation2 [shape = 'f32[18,18,128]{2,1,0:T(8,128)}', space=vmem, size = 0x36000, scoped, tag = 'scratch operand']
  %s0 = inlined_call_operand.vmem [shape: bf16[2,16,16,128], index: 0, kind: input, shape index: {}]
  %s1 = inlined_call_operand.vmem [shape: f32[1,128], index: 1, kind: input, shape index: {}]
  %s2 = inlined_call_operand.vmem [shape: f32[1,128], index: 2, kind: input, shape index: {}]
  %s3 = inlined_call_operand.vmem [shape: f32[9,128], index: 3, kind: input, shape index: {}]
  %s4 = inlined_call_operand.vmem [shape: bf16[2,16,16,128], index: 4, kind: output, shape index: {}]
  %s5 = sld [smem:[#allocation0]]
  $region49: #{block_mq_forward.7} parent=0
    _
  %s7 = ssub.s32 1, %s5
  %s8 = scalar_select 0, %s7, %s5
  loop: start=0, step=1, limit=4
  $region2: #{block_mq_forward.7} parent=0 // loop_pre_header
    _
  $region3: #{block_mq_forward.7} parent=0 // loop_header
    %s10 = sphi 0, %s14
    %p11 = scmp.ge.s32.totalorder %s10, 4
    %s20 = sphi 0, %s22
    %s23 = sphi 0, %s20
    %s24 = sphi 0, %s23
    %s40 = sphi 0, %s24
    %s44 = sphi 0, %s44
    %s46 = sphi 0, %s44
    %s47 = sphi 0, %s46
    %s61 = sphi 0, %s47
    %s65 = sphi 0, %s65
    %s67 = sphi 0, %s65
    %s68 = sphi 0, %s67
    %s82 = sphi 0, %s68
    %s86 = sphi 0, %s86
    %s88 = sphi 0, %s86
    %s89 = sphi 0, %s88
    %s103 = sphi 0, %s89
    %s109 = sphi 0, %s111
    %s112 = sphi 0, %s109
    %s113 = sphi 0, %s112
    %s129 = sphi 0, %s113
  $region4: #{block_mq_forward.7} parent=0 // loop_header_branch
    %13 = sbr.rel (%p11) target = $region8
  $region5: #{block_mq_forward.7} parent=0 // loop_body
    %s15 = ssub.s32 %s10, 1
    %s16 = ssub.s32 %s10, 2
    %s17 = sadd.s32 %s10, 1
    %s18 = ssub.s32 %s10, %s17
    %p19 = scmp.eq.s32.totalorder %s18, 0
    %s21 = sadd.s32 %s20, 1
    %s22 = scalar_select %p19, %s20, %s21
    %p25 = pneg %p19
    %p26 = scmp.eq.s32.totalorder %s10, 1
    %p27 = por %p25, %p26
    %p28 = scmp.ne.s32.totalorder %s20, %s23
    %p29 = scmp.eq.s32.totalorder %s10, 0
    %p30 = por %p28, %p29
    %p31 = scmp.ne.s32.totalorder %s20, %s23
    %p32 = scmp.eq.s32.totalorder %s15, 1
    %p33 = por %p31, %p32
    %p34 = scmp.ne.s32.totalorder %s23, %s24
    %p35 = scmp.eq.s32.totalorder %s15, 0
    %p36 = por %p34, %p35
    %p37 = scmp.ne.s32.totalorder %s23, %s24
    %p38 = scmp.eq.s32.totalorder %s16, 1
    %p39 = por %p37, %p38
    %p41 = scmp.ne.s32.totalorder %s24, %s40
    %p42 = scmp.eq.s32.totalorder %s16, 0
    %p43 = por %p41, %p42
    %s45 = sadd.s32 %s44, 1
    %p48 = scmp.eq.s32.totalorder %s10, 1
    %p49 = scmp.ne.s32.totalorder %s44, %s46
    %p50 = scmp.eq.s32.totalorder %s10, 0
    %p51 = por %p49, %p50
    %p52 = scmp.ne.s32.totalorder %s44, %s46
    %p53 = scmp.eq.s32.totalorder %s15, 1
    %p54 = por %p52, %p53
    %p55 = scmp.ne.s32.totalorder %s46, %s47
    %p56 = scmp.eq.s32.totalorder %s15, 0
    %p57 = por %p55, %p56
    %p58 = scmp.ne.s32.totalorder %s46, %s47
    %p59 = scmp.eq.s32.totalorder %s16, 1
    %p60 = por %p58, %p59
    %p62 = scmp.ne.s32.totalorder %s47, %s61
    %p63 = scmp.eq.s32.totalorder %s16, 0
    %p64 = por %p62, %p63
    %s66 = sadd.s32 %s65, 1
    %p69 = scmp.eq.s32.totalorder %s10, 1
    %p70 = scmp.ne.s32.totalorder %s65, %s67
    %p71 = scmp.eq.s32.totalorder %s10, 0
    %p72 = por %p70, %p71
    %p73 = scmp.ne.s32.totalorder %s65, %s67
    %p74 = scmp.eq.s32.totalorder %s15, 1
    %p75 = por %p73, %p74
    %p76 = scmp.ne.s32.totalorder %s67, %s68
    %p77 = scmp.eq.s32.totalorder %s15, 0
    %p78 = por %p76, %p77
    %p79 = scmp.ne.s32.totalorder %s67, %s68
    %p80 = scmp.eq.s32.totalorder %s16, 1
    %p81 = por %p79, %p80
    %p83 = scmp.ne.s32.totalorder %s68, %s82
    %p84 = scmp.eq.s32.totalorder %s16, 0
    %p85 = por %p83, %p84
    %s87 = sadd.s32 %s86, 1
    %p90 = scmp.eq.s32.totalorder %s10, 1
    %p91 = scmp.ne.s32.totalorder %s86, %s88
    %p92 = scmp.eq.s32.totalorder %s10, 0
    %p93 = por %p91, %p92
    %p94 = scmp.ne.s32.totalorder %s86, %s88
    %p95 = scmp.eq.s32.totalorder %s15, 1
    %p96 = por %p94, %p95
    %p97 = scmp.ne.s32.totalorder %s88, %s89
    %p98 = scmp.eq.s32.totalorder %s15, 0
    %p99 = por %p97, %p98
    %p100 = scmp.ne.s32.totalorder %s88, %s89
    %p101 = scmp.eq.s32.totalorder %s16, 1
    %p102 = por %p100, %p101
    %p104 = scmp.ne.s32.totalorder %s89, %s103
    %p105 = scmp.eq.s32.totalorder %s16, 0
    %p106 = por %p104, %p105
    %s107 = ssub.s32 %s10, %s17
    %p108 = scmp.eq.s32.totalorder %s107, 0
    %s110 = sadd.s32 %s109, 1
    %s111 = scalar_select %p108, %s109, %s110
    %p114 = pneg %p108
    %p115 = scmp.eq.s32.totalorder %s10, 1
    %p116 = por %p114, %p115
    %p117 = scmp.ne.s32.totalorder %s109, %s112
    %p118 = scmp.eq.s32.totalorder %s10, 0
    %p119 = por %p117, %p118
    %p120 = scmp.ne.s32.totalorder %s109, %s112
    %p121 = scmp.eq.s32.totalorder %s15, 1
    %p122 = por %p120, %p121
    %p123 = scmp.ne.s32.totalorder %s112, %s113
    %p124 = scmp.eq.s32.totalorder %s15, 0
    %p125 = por %p123, %p124
    %p126 = scmp.ne.s32.totalorder %s112, %s113
    %p127 = scmp.eq.s32.totalorder %s16, 1
    %p128 = por %p126, %p127
    %p130 = scmp.ne.s32.totalorder %s113, %s129
    %p131 = scmp.eq.s32.totalorder %s16, 0
    %p132 = por %p130, %p131
    %p133 = scmp.le.s32.totalorder 1, %s10
    %p134 = scmp.lt.s32.totalorder %s10, 3
    %p135 = pnand %p133, %p134
    %p136 = pneg %p135
    // Predicated region
    $region9: #{block_mq_forward.7} parent=5 // pred_check
      _
    $region10: #{block_mq_forward.7} parent=5 // pred_check_branch
      %138 = sbr.rel (%p135) target = $region12
    $region11: #{block_mq_forward.7} parent=5 // pred_region
      %s139 = ssub.s32 %s10, 1
      // Predicated region
      $region13: #{block_mq_forward.7} parent=11 // pred_check
        %p140 = pneg %p57
      $region14: #{block_mq_forward.7} parent=11 // pred_check_branch
        %142 = sbr.rel (%p140) target = $region16
      $region15: #{block_mq_forward.7} parent=11 // pred_region
        _
      $region16: #{block_mq_forward.7} parent=11 // pred_fallthru
        _
      // Predicated region
      $region17: #{block_mq_forward.7} parent=11 // pred_check
        %p143 = pneg %p78
      $region18: #{block_mq_forward.7} parent=11 // pred_check_branch
        %145 = sbr.rel (%p143) target = $region20
      $region19: #{block_mq_forward.7} parent=11 // pred_region
        _
      $region20: #{block_mq_forward.7} parent=11 // pred_fallthru
        _
      // Predicated region
      $region21: #{block_mq_forward.7} parent=11 // pred_check
        %p146 = pneg %p99
      $region22: #{block_mq_forward.7} parent=11 // pred_check_branch
        %148 = sbr.rel (%p146) target = $region24
      $region23: #{block_mq_forward.7} parent=11 // pred_region
        _
      $region24: #{block_mq_forward.7} parent=11 // pred_fallthru
        _
    $region12: #{block_mq_forward.7} parent=5 // pred_fallthru
      _
    %p149 = scmp.lt.s32.totalorder %s10, 2
    // Predicated region
    $region25: #{block_mq_forward.7} parent=5 // pred_check
      %p150 = pneg %p149
    $region26: #{block_mq_forward.7} parent=5 // pred_check_branch
      %152 = sbr.rel (%p150) target = $region28
    $region27: #{block_mq_forward.7} parent=5 // pred_region
      // Predicated region
      $region29: #{block_mq_forward.7} parent=27 // pred_check
        %p153 = pneg %p30
      $region30: #{block_mq_forward.7} parent=27 // pred_check_branch
        %155 = sbr.rel (%p153) target = $region32
      $region31: #{block_mq_forward.7} parent=27 // pred_region
        %p156 = scmp.lt.s32.totalorder %s10, 1
        %s157 = scalar_select %p156, %s10, 1
        %s158 = smul.addr %s157, 32
        %s159 = smul.addr %s158, 4
        %s160 = scalar_lea.vmem %s0, %s159
      $region32: #{block_mq_forward.7} parent=27 // pred_fallthru
        _
    $region28: #{block_mq_forward.7} parent=5 // pred_fallthru
      _
    %p161 = scmp.le.s32.totalorder 1, %s10
    %p162 = scmp.lt.s32.totalorder %s10, 3
    %p163 = pnand %p161, %p162
    %p164 = pneg %p163
    // Predicated region
    $region33: #{block_mq_forward.7} parent=5 // pred_check
      _
    $region34: #{block_mq_forward.7} parent=5 // pred_check_branch
      %166 = sbr.rel (%p163) target = $region36
    $region35: #{block_mq_forward.7} parent=5 // pred_region
      %s167 = ssub.s32 %s10, 1
      %p168 = scmp.lt.s32.totalorder %s15, 1
      %s169 = scalar_select %p168, %s15, 1
      %s170 = smul.addr %s169, 32
      %s171 = smul.addr %s170, 4
      %s172 = scalar_lea.vmem %s0, %s171
      %p173 = pneg %p36
      %p174 = pneg %p33
      %p175 = pneg %p57
      %p176 = pneg %p54
      %p177 = pneg %p78
      %p178 = pneg %p75
      %p179 = pneg %p99
      %p180 = pneg %p96
      %p181 = pneg %p125
      %p182 = pneg %p122
      %p183 = scmp.lt.s32.totalorder %s15, 1
      %s184 = scalar_select %p183, %s15, 1
      %s185 = smul.addr %s184, 32
      %s186 = smul.addr %s185, 4
      %s187 = scalar_lea.vmem %s4, %s186
      %p188 = scmp.lt.s32.totalorder %s15, 1
      %s189 = scalar_select %p188, %s15, 1
      %s190 = smul.addr %s189, 32
      %s191 = smul.addr %s190, 4
      %s192 = scalar_lea.vmem %s0, %s191
      %p193 = scmp.lt.s32.totalorder %s15, 1
      %s194 = scalar_select %p193, %s15, 1
      %s195 = smul.addr %s194, 32
      %s196 = smul.addr %s195, 4
      %s197 = scalar_lea.vmem %s4, %s196
      %v198 = vld [vmem:[%s1] sm:$0x1]
      %v199 = vld [vmem:[%s2] sm:$0x1]
      %200 = vst [vmem:[#allocation2] sm:$0xff] 0.0
      %201 = vst [vmem:[#allocation2 + $0x8] sm:$0xff] 0.0
      %202 = vst [vmem:[#allocation2 + $0x10] sm:$0x3] 0.0
      %203 = vst [vmem:[#allocation2 + $0x18] sm:$0xff] 0.0
      %204 = vst [vmem:[#allocation2 + $0x20] sm:$0xff] 0.0
      %205 = vst [vmem:[#allocation2 + $0x28] sm:$0x3] 0.0
      %206 = vst [vmem:[#allocation2 + $0x30] sm:$0xff] 0.0
      %207 = vst [vmem:[#allocation2 + $0x38] sm:$0xff] 0.0
      %208 = vst [vmem:[#allocation2 + $0x40] sm:$0x3] 0.0
      %209 = vst [vmem:[#allocation2 + $0x48] sm:$0xff] 0.0
      %210 = vst [vmem:[#allocation2 + $0x50] sm:$0xff] 0.0
      %211 = vst [vmem:[#allocation2 + $0x58] sm:$0x3] 0.0
      %212 = vst [vmem:[#allocation2 + $0x60] sm:$0xff] 0.0
      %213 = vst [vmem:[#allocation2 + $0x68] sm:$0xff] 0.0
      %214 = vst [vmem:[#allocation2 + $0x70] sm:$0x3] 0.0
      %215 = vst [vmem:[#allocation2 + $0x78] sm:$0xff] 0.0
      %216 = vst [vmem:[#allocation2 + $0x80] sm:$0xff] 0.0
      %217 = vst [vmem:[#allocation2 + $0x88] sm:$0x3] 0.0
      %218 = vst [vmem:[#allocation2 + $0x90] sm:$0xff] 0.0
      %219 = vst [vmem:[#allocation2 + $0x98] sm:$0xff] 0.0
      %220 = vst [vmem:[#allocation2 + $0xa0] sm:$0x3] 0.0
      %221 = vst [vmem:[#allocation2 + $0xa8] sm:$0xff] 0.0
      %222 = vst [vmem:[#allocation2 + $0xb0] sm:$0xff] 0.0
      %223 = vst [vmem:[#allocation2 + $0xb8] sm:$0x3] 0.0
      %224 = vst [vmem:[#allocation2 + $0xc0] sm:$0xff] 0.0
      %225 = vst [vmem:[#allocation2 + $0xc8] sm:$0xff] 0.0
      %226 = vst [vmem:[#allocation2 + $0xd0] sm:$0x3] 0.0
      %227 = vst [vmem:[#allocation2 + $0xd8] sm:$0xff] 0.0
      %228 = vst [vmem:[#allocation2 + $0xe0] sm:$0xff] 0.0
      %229 = vst [vmem:[#allocation2 + $0xe8] sm:$0x3] 0.0
      %230 = vst [vmem:[#allocation2 + $0xf0] sm:$0xff] 0.0
      %231 = vst [vmem:[#allocation2 + $0xf8] sm:$0xff] 0.0
      %232 = vst [vmem:[#allocation2 + $0x100] sm:$0x3] 0.0
      %233 = vst [vmem:[#allocation2 + $0x108] sm:$0xff] 0.0
      %234 = vst [vmem:[#allocation2 + $0x110] sm:$0xff] 0.0
      %235 = vst [vmem:[#allocation2 + $0x118] sm:$0x3] 0.0
      %236 = vst [vmem:[#allocation2 + $0x120] sm:$0xff] 0.0
      %237 = vst [vmem:[#allocation2 + $0x128] sm:$0xff] 0.0
      %238 = vst [vmem:[#allocation2 + $0x130] sm:$0x3] 0.0
      %239 = vst [vmem:[#allocation2 + $0x138] sm:$0xff] 0.0
      %240 = vst [vmem:[#allocation2 + $0x140] sm:$0xff] 0.0
      %241 = vst [vmem:[#allocation2 + $0x148] sm:$0x3] 0.0
      %242 = vst [vmem:[#allocation2 + $0x150] sm:$0xff] 0.0
      %243 = vst [vmem:[#allocation2 + $0x158] sm:$0xff] 0.0
      %244 = vst [vmem:[#allocation2 + $0x160] sm:$0x3] 0.0
      %245 = vst [vmem:[#allocation2 + $0x168] sm:$0xff] 0.0
      %246 = vst [vmem:[#allocation2 + $0x170] sm:$0xff] 0.0
      %247 = vst [vmem:[#allocation2 + $0x178] sm:$0x3] 0.0
      %248 = vst [vmem:[#allocation2 + $0x180] sm:$0xff] 0.0
      %249 = vst [vmem:[#allocation2 + $0x188] sm:$0xff] 0.0
      %250 = vst [vmem:[#allocation2 + $0x190] sm:$0x3] 0.0
      %251 = vst [vmem:[#allocation2 + $0x198] sm:$0xff] 0.0
      %252 = vst [vmem:[#allocation2 + $0x1a0] sm:$0xff] 0.0
      %253 = vst [vmem:[#allocation2 + $0x1a8] sm:$0x3] 0.0
      %v254 = vld [vmem:[%s192] sm:$0xf]
      %v255 = vld [vmem:[%s192 + $0x4] sm:$0xf]
      %v256 = vld [vmem:[%s192 + $0x8] sm:$0xf]
      %v257 = vld [vmem:[%s192 + $0xc] sm:$0xf]
      %v258 = vld [vmem:[%s192 + $0x10] sm:$0xf]
      %v259 = vld [vmem:[%s192 + $0x14] sm:$0xf]
      %v260 = vld [vmem:[%s192 + $0x18] sm:$0xf]
      %v261 = vld [vmem:[%s192 + $0x1c] sm:$0xf]
      %v262 = vld [vmem:[%s192 + $0x20] sm:$0xf]
      %v263 = vld [vmem:[%s192 + $0x24] sm:$0xf]
      %v264 = vld [vmem:[%s192 + $0x28] sm:$0xf]
      %v265 = vld [vmem:[%s192 + $0x2c] sm:$0xf]
      %v266 = vld [vmem:[%s192 + $0x30] sm:$0xf]
      %v267 = vld [vmem:[%s192 + $0x34] sm:$0xf]
      %v268 = vld [vmem:[%s192 + $0x38] sm:$0xf]
      %v269 = vld [vmem:[%s192 + $0x3c] sm:$0xf]
      %v270 = vld [vmem:[%s192 + $0x40] sm:$0xf]
      %v271 = vld [vmem:[%s192 + $0x44] sm:$0xf]
      %v272 = vld [vmem:[%s192 + $0x48] sm:$0xf]
      %v273 = vld [vmem:[%s192 + $0x4c] sm:$0xf]
      %v274 = vld [vmem:[%s192 + $0x50] sm:$0xf]
      %v275 = vld [vmem:[%s192 + $0x54] sm:$0xf]
      %v276 = vld [vmem:[%s192 + $0x58] sm:$0xf]
      %v277 = vld [vmem:[%s192 + $0x5c] sm:$0xf]
      %v278 = vld [vmem:[%s192 + $0x60] sm:$0xf]
      %v279 = vld [vmem:[%s192 + $0x64] sm:$0xf]
      %v280 = vld [vmem:[%s192 + $0x68] sm:$0xf]
      %v281 = vld [vmem:[%s192 + $0x6c] sm:$0xf]
      %v282 = vld [vmem:[%s192 + $0x70] sm:$0xf]
      %v283 = vld [vmem:[%s192 + $0x74] sm:$0xf]
      %v284 = vld [vmem:[%s192 + $0x78] sm:$0xf]
      %v285 = vld [vmem:[%s192 + $0x7c] sm:$0xf]
      %v286 = vunpack.c.l.bf16 %v254
      %v287 = vunpack.c.l.bf16 %v255
      %v288 = vunpack.c.l.bf16 %v256
      %v289 = vunpack.c.l.bf16 %v257
      %v290 = vunpack.c.l.bf16 %v258
      %v291 = vunpack.c.l.bf16 %v259
      %v292 = vunpack.c.l.bf16 %v260
      %v293 = vunpack.c.l.bf16 %v261
      %v294 = vunpack.c.l.bf16 %v262
      %v295 = vunpack.c.l.bf16 %v263
      %v296 = vunpack.c.l.bf16 %v264
      %v297 = vunpack.c.l.bf16 %v265
      %v298 = vunpack.c.l.bf16 %v266
      %v299 = vunpack.c.l.bf16 %v267
      %v300 = vunpack.c.l.bf16 %v268
      %v301 = vunpack.c.l.bf16 %v269
      %v302 = vunpack.c.l.bf16 %v270
      %v303 = vunpack.c.l.bf16 %v271
      %v304 = vunpack.c.l.bf16 %v272
      %v305 = vunpack.c.l.bf16 %v273
      %v306 = vunpack.c.l.bf16 %v274
      %v307 = vunpack.c.l.bf16 %v275
      %v308 = vunpack.c.l.bf16 %v276
      %v309 = vunpack.c.l.bf16 %v277
      %v310 = vunpack.c.l.bf16 %v278
      %v311 = vunpack.c.l.bf16 %v279
      %v312 = vunpack.c.l.bf16 %v280
      %v313 = vunpack.c.l.bf16 %v281
      %v314 = vunpack.c.l.bf16 %v282
      %v315 = vunpack.c.l.bf16 %v283
      %v316 = vunpack.c.l.bf16 %v284
      %v317 = vunpack.c.l.bf16 %v285
      %v319 = vlaneseq
      %v320 = vshrl.u32 %v319, 7
      %v321 = vsub.s32 0, %v320
      %v322 = vrot.slane %v198, %v321
      %v324 = vmul.f32 %v286, %v322
      %v325 = vmul.f32 %v287, %v322
      %v326 = vmul.f32 %v288, %v322
      %v327 = vmul.f32 %v289, %v322
      %v328 = vmul.f32 %v290, %v322
      %v329 = vmul.f32 %v291, %v322
      %v330 = vmul.f32 %v292, %v322
      %v331 = vmul.f32 %v293, %v322
      %v332 = vmul.f32 %v294, %v322
      %v333 = vmul.f32 %v295, %v322
      %v334 = vmul.f32 %v296, %v322
      %v335 = vmul.f32 %v297, %v322
      %v336 = vmul.f32 %v298, %v322
      %v337 = vmul.f32 %v299, %v322
      %v338 = vmul.f32 %v300, %v322
      %v339 = vmul.f32 %v301, %v322
      %v340 = vmul.f32 %v302, %v322
      %v341 = vmul.f32 %v303, %v322
      %v342 = vmul.f32 %v304, %v322
      %v343 = vmul.f32 %v305, %v322
      %v344 = vmul.f32 %v306, %v322
      %v345 = vmul.f32 %v307, %v322
      %v346 = vmul.f32 %v308, %v322
      %v347 = vmul.f32 %v309, %v322
      %v348 = vmul.f32 %v310, %v322
      %v349 = vmul.f32 %v311, %v322
      %v350 = vmul.f32 %v312, %v322
      %v351 = vmul.f32 %v313, %v322
      %v352 = vmul.f32 %v314, %v322
      %v353 = vmul.f32 %v315, %v322
      %v354 = vmul.f32 %v316, %v322
      %v355 = vmul.f32 %v317, %v322
      %v357 = vlaneseq
      %v358 = vshrl.u32 %v357, 7
      %v359 = vsub.s32 0, %v358
      %v360 = vrot.slane %v199, %v359
      %v362 = vadd.f32 %v324, %v360
      %v363 = vadd.f32 %v325, %v360
      %v364 = vadd.f32 %v326, %v360
      %v365 = vadd.f32 %v327, %v360
      %v366 = vadd.f32 %v328, %v360
      %v367 = vadd.f32 %v329, %v360
      %v368 = vadd.f32 %v330, %v360
      %v369 = vadd.f32 %v331, %v360
      %v370 = vadd.f32 %v332, %v360
      %v371 = vadd.f32 %v333, %v360
      %v372 = vadd.f32 %v334, %v360
      %v373 = vadd.f32 %v335, %v360
      %v374 = vadd.f32 %v336, %v360
      %v375 = vadd.f32 %v337, %v360
      %v376 = vadd.f32 %v338, %v360
      %v377 = vadd.f32 %v339, %v360
      %v378 = vadd.f32 %v340, %v360
      %v379 = vadd.f32 %v341, %v360
      %v380 = vadd.f32 %v342, %v360
      %v381 = vadd.f32 %v343, %v360
      %v382 = vadd.f32 %v344, %v360
      %v383 = vadd.f32 %v345, %v360
      %v384 = vadd.f32 %v346, %v360
      %v385 = vadd.f32 %v347, %v360
      %v386 = vadd.f32 %v348, %v360
      %v387 = vadd.f32 %v349, %v360
      %v388 = vadd.f32 %v350, %v360
      %v389 = vadd.f32 %v351, %v360
      %v390 = vadd.f32 %v352, %v360
      %v391 = vadd.f32 %v353, %v360
      %v392 = vadd.f32 %v354, %v360
      %v393 = vadd.f32 %v355, %v360
      %s394 = scalar_lea.vmem [#allocation2], 24
      %395 = vst [vmem:[%s394 + $0x1] sm:$0xff] %v362
      %396 = vst [vmem:[%s394 + $0x9] sm:$0xff] %v363
      %397 = vst [vmem:[%s394 + $0x19] sm:$0xff] %v364
      %398 = vst [vmem:[%s394 + $0x21] sm:$0xff] %v365
      %399 = vst [vmem:[%s394 + $0x31] sm:$0xff] %v366
      %400 = vst [vmem:[%s394 + $0x39] sm:$0xff] %v367
      %401 = vst [vmem:[%s394 + $0x49] sm:$0xff] %v368
      %402 = vst [vmem:[%s394 + $0x51] sm:$0xff] %v369
      %403 = vst [vmem:[%s394 + $0x61] sm:$0xff] %v370
      %404 = vst [vmem:[%s394 + $0x69] sm:$0xff] %v371
      %405 = vst [vmem:[%s394 + $0x79] sm:$0xff] %v372
      %406 = vst [vmem:[%s394 + $0x81] sm:$0xff] %v373
      %407 = vst [vmem:[%s394 + $0x91] sm:$0xff] %v374
      %408 = vst [vmem:[%s394 + $0x99] sm:$0xff] %v375
      %409 = vst [vmem:[%s394 + $0xa9] sm:$0xff] %v376
      %410 = vst [vmem:[%s394 + $0xb1] sm:$0xff] %v377
      %411 = vst [vmem:[%s394 + $0xc1] sm:$0xff] %v378
      %412 = vst [vmem:[%s394 + $0xc9] sm:$0xff] %v379
      %413 = vst [vmem:[%s394 + $0xd9] sm:$0xff] %v380
      %414 = vst [vmem:[%s394 + $0xe1] sm:$0xff] %v381
      %415 = vst [vmem:[%s394 + $0xf1] sm:$0xff] %v382
      %416 = vst [vmem:[%s394 + $0xf9] sm:$0xff] %v383
      %417 = vst [vmem:[%s394 + $0x109] sm:$0xff] %v384
      %418 = vst [vmem:[%s394 + $0x111] sm:$0xff] %v385
      %419 = vst [vmem:[%s394 + $0x121] sm:$0xff] %v386
      %420 = vst [vmem:[%s394 + $0x129] sm:$0xff] %v387
      %421 = vst [vmem:[%s394 + $0x139] sm:$0xff] %v388
      %422 = vst [vmem:[%s394 + $0x141] sm:$0xff] %v389
      %423 = vst [vmem:[%s394 + $0x151] sm:$0xff] %v390
      %424 = vst [vmem:[%s394 + $0x159] sm:$0xff] %v391
      %425 = vst [vmem:[%s394 + $0x169] sm:$0xff] %v392
      %426 = vst [vmem:[%s394 + $0x171] sm:$0xff] %v393
      %v427 = vld [vmem:[%s3] sm:$0xff]
      %v428 = vld [vmem:[%s3 + $0x8] sm:$0x1]
      %v429 = vld [vmem:[#allocation2] sm:$0xff]
      %v430 = vld [vmem:[#allocation2 + $0x8] sm:$0xff]
      %v431 = vld [vmem:[#allocation2 + $0x18] sm:$0xff]
      %v432 = vld [vmem:[#allocation2 + $0x20] sm:$0xff]
      %v433 = vld [vmem:[#allocation2 + $0x30] sm:$0xff]
      %v434 = vld [vmem:[#allocation2 + $0x38] sm:$0xff]
      %v435 = vld [vmem:[#allocation2 + $0x48] sm:$0xff]
      %v436 = vld [vmem:[#allocation2 + $0x50] sm:$0xff]
      %v437 = vld [vmem:[#allocation2 + $0x60] sm:$0xff]
      %v438 = vld [vmem:[#allocation2 + $0x68] sm:$0xff]
      %v439 = vld [vmem:[#allocation2 + $0x78] sm:$0xff]
      %v440 = vld [vmem:[#allocation2 + $0x80] sm:$0xff]
      %v441 = vld [vmem:[#allocation2 + $0x90] sm:$0xff]
      %v442 = vld [vmem:[#allocation2 + $0x98] sm:$0xff]
      %v443 = vld [vmem:[#allocation2 + $0xa8] sm:$0xff]
      %v444 = vld [vmem:[#allocation2 + $0xb0] sm:$0xff]
      %v445 = vld [vmem:[#allocation2 + $0xc0] sm:$0xff]
      %v446 = vld [vmem:[#allocation2 + $0xc8] sm:$0xff]
      %v447 = vld [vmem:[#allocation2 + $0xd8] sm:$0xff]
      %v448 = vld [vmem:[#allocation2 + $0xe0] sm:$0xff]
      %v449 = vld [vmem:[#allocation2 + $0xf0] sm:$0xff]
      %v450 = vld [vmem:[#allocation2 + $0xf8] sm:$0xff]
      %v451 = vld [vmem:[#allocation2 + $0x108] sm:$0xff]
      %v452 = vld [vmem:[#allocation2 + $0x110] sm:$0xff]
      %v453 = vld [vmem:[#allocation2 + $0x120] sm:$0xff]
      %v454 = vld [vmem:[#allocation2 + $0x128] sm:$0xff]
      %v455 = vld [vmem:[#allocation2 + $0x138] sm:$0xff]
      %v456 = vld [vmem:[#allocation2 + $0x140] sm:$0xff]
      %v457 = vld [vmem:[#allocation2 + $0x150] sm:$0xff]
      %v458 = vld [vmem:[#allocation2 + $0x158] sm:$0xff]
      %v459 = vld [vmem:[#allocation2 + $0x168] sm:$0xff]
      %v460 = vld [vmem:[#allocation2 + $0x170] sm:$0xff]
      %v461 = vlaneseq
      %v462 = vshrl.u32 %v461, 7
      %v463 = vsub.s32 0, %v462
      %v464 = vrot.slane %v427, %v463
      %v465 = vmul.f32 %v429, %v464
      %v466 = vmul.f32 %v430, %v464
      %v467 = vmul.f32 %v431, %v464
      %v468 = vmul.f32 %v432, %v464
      %v469 = vmul.f32 %v433, %v464
      %v470 = vmul.f32 %v434, %v464
      %v471 = vmul.f32 %v435, %v464
      %v472 = vmul.f32 %v436, %v464
      %v473 = vmul.f32 %v437, %v464
      %v474 = vmul.f32 %v438, %v464
      %v475 = vmul.f32 %v439, %v464
      %v476 = vmul.f32 %v440, %v464
      %v477 = vmul.f32 %v441, %v464
      %v478 = vmul.f32 %v442, %v464
      %v479 = vmul.f32 %v443, %v464
      %v480 = vmul.f32 %v444, %v464
      %v481 = vmul.f32 %v445, %v464
      %v482 = vmul.f32 %v446, %v464
      %v483 = vmul.f32 %v447, %v464
      %v484 = vmul.f32 %v448, %v464
      %v485 = vmul.f32 %v449, %v464
      %v486 = vmul.f32 %v450, %v464
      %v487 = vmul.f32 %v451, %v464
      %v488 = vmul.f32 %v452, %v464
      %v489 = vmul.f32 %v453, %v464
      %v490 = vmul.f32 %v454, %v464
      %v491 = vmul.f32 %v455, %v464
      %v492 = vmul.f32 %v456, %v464
      %v493 = vmul.f32 %v457, %v464
      %v494 = vmul.f32 %v458, %v464
      %v495 = vmul.f32 %v459, %v464
      %v496 = vmul.f32 %v460, %v464
      %v497 = vadd.f32 %v465, 0.0
      %v498 = vadd.f32 %v466, 0.0
      %v499 = vadd.f32 %v467, 0.0
      %v500 = vadd.f32 %v468, 0.0
      %v501 = vadd.f32 %v469, 0.0
      %v502 = vadd.f32 %v470, 0.0
      %v503 = vadd.f32 %v471, 0.0
      %v504 = vadd.f32 %v472, 0.0
      %v505 = vadd.f32 %v473, 0.0
      %v506 = vadd.f32 %v474, 0.0
      %v507 = vadd.f32 %v475, 0.0
      %v508 = vadd.f32 %v476, 0.0
      %v509 = vadd.f32 %v477, 0.0
      %v510 = vadd.f32 %v478, 0.0
      %v511 = vadd.f32 %v479, 0.0
      %v512 = vadd.f32 %v480, 0.0
      %v513 = vadd.f32 %v481, 0.0
      %v514 = vadd.f32 %v482, 0.0
      %v515 = vadd.f32 %v483, 0.0
      %v516 = vadd.f32 %v484, 0.0
      %v517 = vadd.f32 %v485, 0.0
      %v518 = vadd.f32 %v486, 0.0
      %v519 = vadd.f32 %v487, 0.0
      %v520 = vadd.f32 %v488, 0.0
      %v521 = vadd.f32 %v489, 0.0
      %v522 = vadd.f32 %v490, 0.0
      %v523 = vadd.f32 %v491, 0.0
      %v524 = vadd.f32 %v492, 0.0
      %v525 = vadd.f32 %v493, 0.0
      %v526 = vadd.f32 %v494, 0.0
      %v527 = vadd.f32 %v495, 0.0
      %v528 = vadd.f32 %v496, 0.0
      %v529 = vld [vmem:[#allocation2 + $0x1] sm:$0xff]
      %v530 = vld [vmem:[#allocation2 + $0x9] sm:$0xff]
      %v531 = vld [vmem:[#allocation2 + $0x19] sm:$0xff]
      %v532 = vld [vmem:[#allocation2 + $0x21] sm:$0xff]
      %v533 = vld [vmem:[#allocation2 + $0x31] sm:$0xff]
      %v534 = vld [vmem:[#allocation2 + $0x39] sm:$0xff]
      %v535 = vld [vmem:[#allocation2 + $0x49] sm:$0xff]
      %v536 = vld [vmem:[#allocation2 + $0x51] sm:$0xff]
      %v537 = vld [vmem:[#allocation2 + $0x61] sm:$0xff]
      %v538 = vld [vmem:[#allocation2 + $0x69] sm:$0xff]
      %v539 = vld [vmem:[#allocation2 + $0x79] sm:$0xff]
      %v540 = vld [vmem:[#allocation2 + $0x81] sm:$0xff]
      %v541 = vld [vmem:[#allocation2 + $0x91] sm:$0xff]
      %v542 = vld [vmem:[#allocation2 + $0x99] sm:$0xff]
      %v543 = vld [vmem:[#allocation2 + $0xa9] sm:$0xff]
      %v544 = vld [vmem:[#allocation2 + $0xb1] sm:$0xff]
      %v545 = vld [vmem:[#allocation2 + $0xc1] sm:$0xff]
      %v546 = vld [vmem:[#allocation2 + $0xc9] sm:$0xff]
      %v547 = vld [vmem:[#allocation2 + $0xd9] sm:$0xff]
      %v548 = vld [vmem:[#allocation2 + $0xe1] sm:$0xff]
      %v549 = vld [vmem:[#allocation2 + $0xf1] sm:$0xff]
      %v550 = vld [vmem:[#allocation2 + $0xf9] sm:$0xff]
      %v551 = vld [vmem:[#allocation2 + $0x109] sm:$0xff]
      %v552 = vld [vmem:[#allocation2 + $0x111] sm:$0xff]
      %v553 = vld [vmem:[#allocation2 + $0x121] sm:$0xff]
      %v554 = vld [vmem:[#allocation2 + $0x129] sm:$0xff]
      %v555 = vld [vmem:[#allocation2 + $0x139] sm:$0xff]
      %v556 = vld [vmem:[#allocation2 + $0x141] sm:$0xff]
      %v557 = vld [vmem:[#allocation2 + $0x151] sm:$0xff]
      %v558 = vld [vmem:[#allocation2 + $0x159] sm:$0xff]
      %v559 = vld [vmem:[#allocation2 + $0x169] sm:$0xff]
      %v560 = vld [vmem:[#allocation2 + $0x171] sm:$0xff]
      %v561 = vlaneseq
      %v562 = vshrl.u32 %v561, 7
      %v563 = vsub.s32 1, %v562
      %v564 = vrot.slane %v427, %v563
      %v565 = vmul.f32 %v529, %v564
      %v566 = vmul.f32 %v530, %v564
      %v567 = vmul.f32 %v531, %v564
      %v568 = vmul.f32 %v532, %v564
      %v569 = vmul.f32 %v533, %v564
      %v570 = vmul.f32 %v534, %v564
      %v571 = vmul.f32 %v535, %v564
      %v572 = vmul.f32 %v536, %v564
      %v573 = vmul.f32 %v537, %v564
      %v574 = vmul.f32 %v538, %v564
      %v575 = vmul.f32 %v539, %v564
      %v576 = vmul.f32 %v540, %v564
      %v577 = vmul.f32 %v541, %v564
      %v578 = vmul.f32 %v542, %v564
      %v579 = vmul.f32 %v543, %v564
      %v580 = vmul.f32 %v544, %v564
      %v581 = vmul.f32 %v545, %v564
      %v582 = vmul.f32 %v546, %v564
      %v583 = vmul.f32 %v547, %v564
      %v584 = vmul.f32 %v548, %v564
      %v585 = vmul.f32 %v549, %v564
      %v586 = vmul.f32 %v550, %v564
      %v587 = vmul.f32 %v551, %v564
      %v588 = vmul.f32 %v552, %v564
      %v589 = vmul.f32 %v553, %v564
      %v590 = vmul.f32 %v554, %v564
      %v591 = vmul.f32 %v555, %v564
      %v592 = vmul.f32 %v556, %v564
      %v593 = vmul.f32 %v557, %v564
      %v594 = vmul.f32 %v558, %v564
      %v595 = vmul.f32 %v559, %v564
      %v596 = vmul.f32 %v560, %v564
      %v597 = vadd.f32 %v497, %v565
      %v598 = vadd.f32 %v498, %v566
      %v599 = vadd.f32 %v499, %v567
      %v600 = vadd.f32 %v500, %v568
      %v601 = vadd.f32 %v501, %v569
      %v602 = vadd.f32 %v502, %v570
      %v603 = vadd.f32 %v503, %v571
      %v604 = vadd.f32 %v504, %v572
      %v605 = vadd.f32 %v505, %v573
      %v606 = vadd.f32 %v506, %v574
      %v607 = vadd.f32 %v507, %v575
      %v608 = vadd.f32 %v508, %v576
      %v609 = vadd.f32 %v509, %v577
      %v610 = vadd.f32 %v510, %v578
      %v611 = vadd.f32 %v511, %v579
      %v612 = vadd.f32 %v512, %v580
      %v613 = vadd.f32 %v513, %v581
      %v614 = vadd.f32 %v514, %v582
      %v615 = vadd.f32 %v515, %v583
      %v616 = vadd.f32 %v516, %v584
      %v617 = vadd.f32 %v517, %v585
      %v618 = vadd.f32 %v518, %v586
      %v619 = vadd.f32 %v519, %v587
      %v620 = vadd.f32 %v520, %v588
      %v621 = vadd.f32 %v521, %v589
      %v622 = vadd.f32 %v522, %v590
      %v623 = vadd.f32 %v523, %v591
      %v624 = vadd.f32 %v524, %v592
      %v625 = vadd.f32 %v525, %v593
      %v626 = vadd.f32 %v526, %v594
      %v627 = vadd.f32 %v527, %v595
      %v628 = vadd.f32 %v528, %v596
      %v629 = vld [vmem:[#allocation2 + $0x2] sm:$0xff]
      %v630 = vld [vmem:[#allocation2 + $0xa] sm:$0xff]
      %v631 = vld [vmem:[#allocation2 + $0x1a] sm:$0xff]
      %v632 = vld [vmem:[#allocation2 + $0x22] sm:$0xff]
      %v633 = vld [vmem:[#allocation2 + $0x32] sm:$0xff]
      %v634 = vld [vmem:[#allocation2 + $0x3a] sm:$0xff]
      %v635 = vld [vmem:[#allocation2 + $0x4a] sm:$0xff]
      %v636 = vld [vmem:[#allocation2 + $0x52] sm:$0xff]
      %v637 = vld [vmem:[#allocation2 + $0x62] sm:$0xff]
      %v638 = vld [vmem:[#allocation2 + $0x6a] sm:$0xff]
      %v639 = vld [vmem:[#allocation2 + $0x7a] sm:$0xff]
      %v640 = vld [vmem:[#allocation2 + $0x82] sm:$0xff]
      %v641 = vld [vmem:[#allocation2 + $0x92] sm:$0xff]
      %v642 = vld [vmem:[#allocation2 + $0x9a] sm:$0xff]
      %v643 = vld [vmem:[#allocation2 + $0xaa] sm:$0xff]
      %v644 = vld [vmem:[#allocation2 + $0xb2] sm:$0xff]
      %v645 = vld [vmem:[#allocation2 + $0xc2] sm:$0xff]
      %v646 = vld [vmem:[#allocation2 + $0xca] sm:$0xff]
      %v647 = vld [vmem:[#allocation2 + $0xda] sm:$0xff]
      %v648 = vld [vmem:[#allocation2 + $0xe2] sm:$0xff]
      %v649 = vld [vmem:[#allocation2 + $0xf2] sm:$0xff]
      %v650 = vld [vmem:[#allocation2 + $0xfa] sm:$0xff]
      %v651 = vld [vmem:[#allocation2 + $0x10a] sm:$0xff]
      %v652 = vld [vmem:[#allocation2 + $0x112] sm:$0xff]
      %v653 = vld [vmem:[#allocation2 + $0x122] sm:$0xff]
      %v654 = vld [vmem:[#allocation2 + $0x12a] sm:$0xff]
      %v655 = vld [vmem:[#allocation2 + $0x13a] sm:$0xff]
      %v656 = vld [vmem:[#allocation2 + $0x142] sm:$0xff]
      %v657 = vld [vmem:[#allocation2 + $0x152] sm:$0xff]
      %v658 = vld [vmem:[#allocation2 + $0x15a] sm:$0xff]
      %v659 = vld [vmem:[#allocation2 + $0x16a] sm:$0xff]
      %v660 = vld [vmem:[#allocation2 + $0x172] sm:$0xff]
      %v661 = vlaneseq
      %v662 = vshrl.u32 %v661, 7
      %v663 = vsub.s32 2, %v662
      %v664 = vrot.slane %v427, %v663
      %v665 = vmul.f32 %v629, %v664
      %v666 = vmul.f32 %v630, %v664
      %v667 = vmul.f32 %v631, %v664
      %v668 = vmul.f32 %v632, %v664
      %v669 = vmul.f32 %v633, %v664
      %v670 = vmul.f32 %v634, %v664
      %v671 = vmul.f32 %v635, %v664
      %v672 = vmul.f32 %v636, %v664
      %v673 = vmul.f32 %v637, %v664
      %v674 = vmul.f32 %v638, %v664
      %v675 = vmul.f32 %v639, %v664
      %v676 = vmul.f32 %v640, %v664
      %v677 = vmul.f32 %v641, %v664
      %v678 = vmul.f32 %v642, %v664
      %v679 = vmul.f32 %v643, %v664
      %v680 = vmul.f32 %v644, %v664
      %v681 = vmul.f32 %v645, %v664
      %v682 = vmul.f32 %v646, %v664
      %v683 = vmul.f32 %v647, %v664
      %v684 = vmul.f32 %v648, %v664
      %v685 = vmul.f32 %v649, %v664
      %v686 = vmul.f32 %v650, %v664
      %v687 = vmul.f32 %v651, %v664
      %v688 = vmul.f32 %v652, %v664
      %v689 = vmul.f32 %v653, %v664
      %v690 = vmul.f32 %v654, %v664
      %v691 = vmul.f32 %v655, %v664
      %v692 = vmul.f32 %v656, %v664
      %v693 = vmul.f32 %v657, %v664
      %v694 = vmul.f32 %v658, %v664
      %v695 = vmul.f32 %v659, %v664
      %v696 = vmul.f32 %v660, %v664
      %v697 = vadd.f32 %v597, %v665
      %v698 = vadd.f32 %v598, %v666
      %v699 = vadd.f32 %v599, %v667
      %v700 = vadd.f32 %v600, %v668
      %v701 = vadd.f32 %v601, %v669
      %v702 = vadd.f32 %v602, %v670
      %v703 = vadd.f32 %v603, %v671
      %v704 = vadd.f32 %v604, %v672
      %v705 = vadd.f32 %v605, %v673
      %v706 = vadd.f32 %v606, %v674
      %v707 = vadd.f32 %v607, %v675
      %v708 = vadd.f32 %v608, %v676
      %v709 = vadd.f32 %v609, %v677
      %v710 = vadd.f32 %v610, %v678
      %v711 = vadd.f32 %v611, %v679
      %v712 = vadd.f32 %v612, %v680
      %v713 = vadd.f32 %v613, %v681
      %v714 = vadd.f32 %v614, %v682
      %v715 = vadd.f32 %v615, %v683
      %v716 = vadd.f32 %v616, %v684
      %v717 = vadd.f32 %v617, %v685
      %v718 = vadd.f32 %v618, %v686
      %v719 = vadd.f32 %v619, %v687
      %v720 = vadd.f32 %v620, %v688
      %v721 = vadd.f32 %v621, %v689
      %v722 = vadd.f32 %v622, %v690
      %v723 = vadd.f32 %v623, %v691
      %v724 = vadd.f32 %v624, %v692
      %v725 = vadd.f32 %v625, %v693
      %v726 = vadd.f32 %v626, %v694
      %v727 = vadd.f32 %v627, %v695
      %v728 = vadd.f32 %v628, %v696
      %v729 = vld [vmem:[%s394] sm:$0xff]
      %v730 = vld [vmem:[%s394 + $0x8] sm:$0xff]
      %v731 = vld [vmem:[%s394 + $0x18] sm:$0xff]
      %v732 = vld [vmem:[%s394 + $0x20] sm:$0xff]
      %v733 = vld [vmem:[%s394 + $0x30] sm:$0xff]
      %v734 = vld [vmem:[%s394 + $0x38] sm:$0xff]
      %v735 = vld [vmem:[%s394 + $0x48] sm:$0xff]
      %v736 = vld [vmem:[%s394 + $0x50] sm:$0xff]
      %v737 = vld [vmem:[%s394 + $0x60] sm:$0xff]
      %v738 = vld [vmem:[%s394 + $0x68] sm:$0xff]
      %v739 = vld [vmem:[%s394 + $0x78] sm:$0xff]
      %v740 = vld [vmem:[%s394 + $0x80] sm:$0xff]
      %v741 = vld [vmem:[%s394 + $0x90] sm:$0xff]
      %v742 = vld [vmem:[%s394 + $0x98] sm:$0xff]
      %v743 = vld [vmem:[%s394 + $0xa8] sm:$0xff]
      %v744 = vld [vmem:[%s394 + $0xb0] sm:$0xff]
      %v745 = vld [vmem:[%s394 + $0xc0] sm:$0xff]
      %v746 = vld [vmem:[%s394 + $0xc8] sm:$0xff]
      %v747 = vld [vmem:[%s394 + $0xd8] sm:$0xff]
      %v748 = vld [vmem:[%s394 + $0xe0] sm:$0xff]
      %v749 = vld [vmem:[%s394 + $0xf0] sm:$0xff]
      %v750 = vld [vmem:[%s394 + $0xf8] sm:$0xff]
      %v751 = vld [vmem:[%s394 + $0x108] sm:$0xff]
      %v752 = vld [vmem:[%s394 + $0x110] sm:$0xff]
      %v753 = vld [vmem:[%s394 + $0x120] sm:$0xff]
      %v754 = vld [vmem:[%s394 + $0x128] sm:$0xff]
      %v755 = vld [vmem:[%s394 + $0x138] sm:$0xff]
      %v756 = vld [vmem:[%s394 + $0x140] sm:$0xff]
      %v757 = vld [vmem:[%s394 + $0x150] sm:$0xff]
      %v758 = vld [vmem:[%s394 + $0x158] sm:$0xff]
      %v759 = vld [vmem:[%s394 + $0x168] sm:$0xff]
      %v760 = vld [vmem:[%s394 + $0x170] sm:$0xff]
      %v761 = vlaneseq
      %v762 = vshrl.u32 %v761, 7
      %v763 = vsub.s32 3, %v762
      %v764 = vrot.slane %v427, %v763
      %v765 = vmul.f32 %v729, %v764
      %v766 = vmul.f32 %v730, %v764
      %v767 = vmul.f32 %v731, %v764
      %v768 = vmul.f32 %v732, %v764
      %v769 = vmul.f32 %v733, %v764
      %v770 = vmul.f32 %v734, %v764
      %v771 = vmul.f32 %v735, %v764
      %v772 = vmul.f32 %v736, %v764
      %v773 = vmul.f32 %v737, %v764
      %v774 = vmul.f32 %v738, %v764
      %v775 = vmul.f32 %v739, %v764
      %v776 = vmul.f32 %v740, %v764
      %v777 = vmul.f32 %v741, %v764
      %v778 = vmul.f32 %v742, %v764
      %v779 = vmul.f32 %v743, %v764
      %v780 = vmul.f32 %v744, %v764
      %v781 = vmul.f32 %v745, %v764
      %v782 = vmul.f32 %v746, %v764
      %v783 = vmul.f32 %v747, %v764
      %v784 = vmul.f32 %v748, %v764
      %v785 = vmul.f32 %v749, %v764
      %v786 = vmul.f32 %v750, %v764
      %v787 = vmul.f32 %v751, %v764
      %v788 = vmul.f32 %v752, %v764
      %v789 = vmul.f32 %v753, %v764
      %v790 = vmul.f32 %v754, %v764
      %v791 = vmul.f32 %v755, %v764
      %v792 = vmul.f32 %v756, %v764
      %v793 = vmul.f32 %v757, %v764
      %v794 = vmul.f32 %v758, %v764
      %v795 = vmul.f32 %v759, %v764
      %v796 = vmul.f32 %v760, %v764
      %v797 = vadd.f32 %v697, %v765
      %v798 = vadd.f32 %v698, %v766
      %v799 = vadd.f32 %v699, %v767
      %v800 = vadd.f32 %v700, %v768
      %v801 = vadd.f32 %v701, %v769
      %v802 = vadd.f32 %v702, %v770
      %v803 = vadd.f32 %v703, %v771
      %v804 = vadd.f32 %v704, %v772
      %v805 = vadd.f32 %v705, %v773
      %v806 = vadd.f32 %v706, %v774
      %v807 = vadd.f32 %v707, %v775
      %v808 = vadd.f32 %v708, %v776
      %v809 = vadd.f32 %v709, %v777
      %v810 = vadd.f32 %v710, %v778
      %v811 = vadd.f32 %v711, %v779
      %v812 = vadd.f32 %v712, %v780
      %v813 = vadd.f32 %v713, %v781
      %v814 = vadd.f32 %v714, %v782
      %v815 = vadd.f32 %v715, %v783
      %v816 = vadd.f32 %v716, %v784
      %v817 = vadd.f32 %v717, %v785
      %v818 = vadd.f32 %v718, %v786
      %v819 = vadd.f32 %v719, %v787
      %v820 = vadd.f32 %v720, %v788
      %v821 = vadd.f32 %v721, %v789
      %v822 = vadd.f32 %v722, %v790
      %v823 = vadd.f32 %v723, %v791
      %v824 = vadd.f32 %v724, %v792
      %v825 = vadd.f32 %v725, %v793
      %v826 = vadd.f32 %v726, %v794
      %v827 = vadd.f32 %v727, %v795
      %v828 = vadd.f32 %v728, %v796
      %v829 = vld [vmem:[%s394 + $0x1] sm:$0xff]
      %v830 = vld [vmem:[%s394 + $0x9] sm:$0xff]
      %v831 = vld [vmem:[%s394 + $0x19] sm:$0xff]
      %v832 = vld [vmem:[%s394 + $0x21] sm:$0xff]
      %v833 = vld [vmem:[%s394 + $0x31] sm:$0xff]
      %v834 = vld [vmem:[%s394 + $0x39] sm:$0xff]
      %v835 = vld [vmem:[%s394 + $0x49] sm:$0xff]
      %v836 = vld [vmem:[%s394 + $0x51] sm:$0xff]
      %v837 = vld [vmem:[%s394 + $0x61] sm:$0xff]
      %v838 = vld [vmem:[%s394 + $0x69] sm:$0xff]
      %v839 = vld [vmem:[%s394 + $0x79] sm:$0xff]
      %v840 = vld [vmem:[%s394 + $0x81] sm:$0xff]
      %v841 = vld [vmem:[%s394 + $0x91] sm:$0xff]
      %v842 = vld [vmem:[%s394 + $0x99] sm:$0xff]
      %v843 = vld [vmem:[%s394 + $0xa9] sm:$0xff]
      %v844 = vld [vmem:[%s394 + $0xb1] sm:$0xff]
      %v845 = vld [vmem:[%s394 + $0xc1] sm:$0xff]
      %v846 = vld [vmem:[%s394 + $0xc9] sm:$0xff]
      %v847 = vld [vmem:[%s394 + $0xd9] sm:$0xff]
      %v848 = vld [vmem:[%s394 + $0xe1] sm:$0xff]
      %v849 = vld [vmem:[%s394 + $0xf1] sm:$0xff]
      %v850 = vld [vmem:[%s394 + $0xf9] sm:$0xff]
      %v851 = vld [vmem:[%s394 + $0x109] sm:$0xff]
      %v852 = vld [vmem:[%s394 + $0x111] sm:$0xff]
      %v853 = vld [vmem:[%s394 + $0x121] sm:$0xff]
      %v854 = vld [vmem:[%s394 + $0x129] sm:$0xff]
      %v855 = vld [vmem:[%s394 + $0x139] sm:$0xff]
      %v856 = vld [vmem:[%s394 + $0x141] sm:$0xff]
      %v857 = vld [vmem:[%s394 + $0x151] sm:$0xff]
      %v858 = vld [vmem:[%s394 + $0x159] sm:$0xff]
      %v859 = vld [vmem:[%s394 + $0x169] sm:$0xff]
      %v860 = vld [vmem:[%s394 + $0x171] sm:$0xff]
      %v861 = vlaneseq
      %v862 = vshrl.u32 %v861, 7
      %v863 = vsub.s32 4, %v862
      %v864 = vrot.slane %v427, %v863
      %v865 = vmul.f32 %v829, %v864
      %v866 = vmul.f32 %v830, %v864
      %v867 = vmul.f32 %v831, %v864
      %v868 = vmul.f32 %v832, %v864
      %v869 = vmul.f32 %v833, %v864
      %v870 = vmul.f32 %v834, %v864
      %v871 = vmul.f32 %v835, %v864
      %v872 = vmul.f32 %v836, %v864
      %v873 = vmul.f32 %v837, %v864
      %v874 = vmul.f32 %v838, %v864
      %v875 = vmul.f32 %v839, %v864
      %v876 = vmul.f32 %v840, %v864
      %v877 = vmul.f32 %v841, %v864
      %v878 = vmul.f32 %v842, %v864
      %v879 = vmul.f32 %v843, %v864
      %v880 = vmul.f32 %v844, %v864
      %v881 = vmul.f32 %v845, %v864
      %v882 = vmul.f32 %v846, %v864
      %v883 = vmul.f32 %v847, %v864
      %v884 = vmul.f32 %v848, %v864
      %v885 = vmul.f32 %v849, %v864
      %v886 = vmul.f32 %v850, %v864
      %v887 = vmul.f32 %v851, %v864
      %v888 = vmul.f32 %v852, %v864
      %v889 = vmul.f32 %v853, %v864
      %v890 = vmul.f32 %v854, %v864
      %v891 = vmul.f32 %v855, %v864
      %v892 = vmul.f32 %v856, %v864
      %v893 = vmul.f32 %v857, %v864
      %v894 = vmul.f32 %v858, %v864
      %v895 = vmul.f32 %v859, %v864
      %v896 = vmul.f32 %v860, %v864
      %v897 = vadd.f32 %v797, %v865
      %v898 = vadd.f32 %v798, %v866
      %v899 = vadd.f32 %v799, %v867
      %v900 = vadd.f32 %v800, %v868
      %v901 = vadd.f32 %v801, %v869
      %v902 = vadd.f32 %v802, %v870
      %v903 = vadd.f32 %v803, %v871
      %v904 = vadd.f32 %v804, %v872
      %v905 = vadd.f32 %v805, %v873
      %v906 = vadd.f32 %v806, %v874
      %v907 = vadd.f32 %v807, %v875
      %v908 = vadd.f32 %v808, %v876
      %v909 = vadd.f32 %v809, %v877
      %v910 = vadd.f32 %v810, %v878
      %v911 = vadd.f32 %v811, %v879
      %v912 = vadd.f32 %v812, %v880
      %v913 = vadd.f32 %v813, %v881
      %v914 = vadd.f32 %v814, %v882
      %v915 = vadd.f32 %v815, %v883
      %v916 = vadd.f32 %v816, %v884
      %v917 = vadd.f32 %v817, %v885
      %v918 = vadd.f32 %v818, %v886
      %v919 = vadd.f32 %v819, %v887
      %v920 = vadd.f32 %v820, %v888
      %v921 = vadd.f32 %v821, %v889
      %v922 = vadd.f32 %v822, %v890
      %v923 = vadd.f32 %v823, %v891
      %v924 = vadd.f32 %v824, %v892
      %v925 = vadd.f32 %v825, %v893
      %v926 = vadd.f32 %v826, %v894
      %v927 = vadd.f32 %v827, %v895
      %v928 = vadd.f32 %v828, %v896
      %v929 = vld [vmem:[%s394 + $0x2] sm:$0xff]
      %v930 = vld [vmem:[%s394 + $0xa] sm:$0xff]
      %v931 = vld [vmem:[%s394 + $0x1a] sm:$0xff]
      %v932 = vld [vmem:[%s394 + $0x22] sm:$0xff]
      %v933 = vld [vmem:[%s394 + $0x32] sm:$0xff]
      %v934 = vld [vmem:[%s394 + $0x3a] sm:$0xff]
      %v935 = vld [vmem:[%s394 + $0x4a] sm:$0xff]
      %v936 = vld [vmem:[%s394 + $0x52] sm:$0xff]
      %v937 = vld [vmem:[%s394 + $0x62] sm:$0xff]
      %v938 = vld [vmem:[%s394 + $0x6a] sm:$0xff]
      %v939 = vld [vmem:[%s394 + $0x7a] sm:$0xff]
      %v940 = vld [vmem:[%s394 + $0x82] sm:$0xff]
      %v941 = vld [vmem:[%s394 + $0x92] sm:$0xff]
      %v942 = vld [vmem:[%s394 + $0x9a] sm:$0xff]
      %v943 = vld [vmem:[%s394 + $0xaa] sm:$0xff]
      %v944 = vld [vmem:[%s394 + $0xb2] sm:$0xff]
      %v945 = vld [vmem:[%s394 + $0xc2] sm:$0xff]
      %v946 = vld [vmem:[%s394 + $0xca] sm:$0xff]
      %v947 = vld [vmem:[%s394 + $0xda] sm:$0xff]
      %v948 = vld [vmem:[%s394 + $0xe2] sm:$0xff]
      %v949 = vld [vmem:[%s394 + $0xf2] sm:$0xff]
      %v950 = vld [vmem:[%s394 + $0xfa] sm:$0xff]
      %v951 = vld [vmem:[%s394 + $0x10a] sm:$0xff]
      %v952 = vld [vmem:[%s394 + $0x112] sm:$0xff]
      %v953 = vld [vmem:[%s394 + $0x122] sm:$0xff]
      %v954 = vld [vmem:[%s394 + $0x12a] sm:$0xff]
      %v955 = vld [vmem:[%s394 + $0x13a] sm:$0xff]
      %v956 = vld [vmem:[%s394 + $0x142] sm:$0xff]
      %v957 = vld [vmem:[%s394 + $0x152] sm:$0xff]
      %v958 = vld [vmem:[%s394 + $0x15a] sm:$0xff]
      %v959 = vld [vmem:[%s394 + $0x16a] sm:$0xff]
      %v960 = vld [vmem:[%s394 + $0x172] sm:$0xff]
      %v961 = vlaneseq
      %v962 = vshrl.u32 %v961, 7
      %v963 = vsub.s32 5, %v962
      %v964 = vrot.slane %v427, %v963
      %v965 = vmul.f32 %v929, %v964
      %v966 = vmul.f32 %v930, %v964
      %v967 = vmul.f32 %v931, %v964
      %v968 = vmul.f32 %v932, %v964
      %v969 = vmul.f32 %v933, %v964
      %v970 = vmul.f32 %v934, %v964
      %v971 = vmul.f32 %v935, %v964
      %v972 = vmul.f32 %v936, %v964
      %v973 = vmul.f32 %v937, %v964
      %v974 = vmul.f32 %v938, %v964
      %v975 = vmul.f32 %v939, %v964
      %v976 = vmul.f32 %v940, %v964
      %v977 = vmul.f32 %v941, %v964
      %v978 = vmul.f32 %v942, %v964
      %v979 = vmul.f32 %v943, %v964
      %v980 = vmul.f32 %v944, %v964
      %v981 = vmul.f32 %v945, %v964
      %v982 = vmul.f32 %v946, %v964
      %v983 = vmul.f32 %v947, %v964
      %v984 = vmul.f32 %v948, %v964
      %v985 = vmul.f32 %v949, %v964
      %v986 = vmul.f32 %v950, %v964
      %v987 = vmul.f32 %v951, %v964
      %v988 = vmul.f32 %v952, %v964
      %v989 = vmul.f32 %v953, %v964
      %v990 = vmul.f32 %v954, %v964
      %v991 = vmul.f32 %v955, %v964
      %v992 = vmul.f32 %v956, %v964
      %v993 = vmul.f32 %v957, %v964
      %v994 = vmul.f32 %v958, %v964
      %v995 = vmul.f32 %v959, %v964
      %v996 = vmul.f32 %v960, %v964
      %v997 = vadd.f32 %v897, %v965
      %v998 = vadd.f32 %v898, %v966
      %v999 = vadd.f32 %v899, %v967
      %v1000 = vadd.f32 %v900, %v968
      %v1001 = vadd.f32 %v901, %v969
      %v1002 = vadd.f32 %v902, %v970
      %v1003 = vadd.f32 %v903, %v971
      %v1004 = vadd.f32 %v904, %v972
      %v1005 = vadd.f32 %v905, %v973
      %v1006 = vadd.f32 %v906, %v974
      %v1007 = vadd.f32 %v907, %v975
      %v1008 = vadd.f32 %v908, %v976
      %v1009 = vadd.f32 %v909, %v977
      %v1010 = vadd.f32 %v910, %v978
      %v1011 = vadd.f32 %v911, %v979
      %v1012 = vadd.f32 %v912, %v980
      %v1013 = vadd.f32 %v913, %v981
      %v1014 = vadd.f32 %v914, %v982
      %v1015 = vadd.f32 %v915, %v983
      %v1016 = vadd.f32 %v916, %v984
      %v1017 = vadd.f32 %v917, %v985
      %v1018 = vadd.f32 %v918, %v986
      %v1019 = vadd.f32 %v919, %v987
      %v1020 = vadd.f32 %v920, %v988
      %v1021 = vadd.f32 %v921, %v989
      %v1022 = vadd.f32 %v922, %v990
      %v1023 = vadd.f32 %v923, %v991
      %v1024 = vadd.f32 %v924, %v992
      %v1025 = vadd.f32 %v925, %v993
      %v1026 = vadd.f32 %v926, %v994
      %v1027 = vadd.f32 %v927, %v995
      %v1028 = vadd.f32 %v928, %v996
      %s1029 = scalar_lea.vmem [#allocation2], 48
      %v1030 = vld [vmem:[%s1029] sm:$0xff]
      %v1031 = vld [vmem:[%s1029 + $0x8] sm:$0xff]
      %v1032 = vld [vmem:[%s1029 + $0x18] sm:$0xff]
      %v1033 = vld [vmem:[%s1029 + $0x20] sm:$0xff]
      %v1034 = vld [vmem:[%s1029 + $0x30] sm:$0xff]
      %v1035 = vld [vmem:[%s1029 + $0x38] sm:$0xff]
      %v1036 = vld [vmem:[%s1029 + $0x48] sm:$0xff]
      %v1037 = vld [vmem:[%s1029 + $0x50] sm:$0xff]
      %v1038 = vld [vmem:[%s1029 + $0x60] sm:$0xff]
      %v1039 = vld [vmem:[%s1029 + $0x68] sm:$0xff]
      %v1040 = vld [vmem:[%s1029 + $0x78] sm:$0xff]
      %v1041 = vld [vmem:[%s1029 + $0x80] sm:$0xff]
      %v1042 = vld [vmem:[%s1029 + $0x90] sm:$0xff]
      %v1043 = vld [vmem:[%s1029 + $0x98] sm:$0xff]
      %v1044 = vld [vmem:[%s1029 + $0xa8] sm:$0xff]
      %v1045 = vld [vmem:[%s1029 + $0xb0] sm:$0xff]
      %v1046 = vld [vmem:[%s1029 + $0xc0] sm:$0xff]
      %v1047 = vld [vmem:[%s1029 + $0xc8] sm:$0xff]
      %v1048 = vld [vmem:[%s1029 + $0xd8] sm:$0xff]
      %v1049 = vld [vmem:[%s1029 + $0xe0] sm:$0xff]
      %v1050 = vld [vmem:[%s1029 + $0xf0] sm:$0xff]
      %v1051 = vld [vmem:[%s1029 + $0xf8] sm:$0xff]
      %v1052 = vld [vmem:[%s1029 + $0x108] sm:$0xff]
      %v1053 = vld [vmem:[%s1029 + $0x110] sm:$0xff]
      %v1054 = vld [vmem:[%s1029 + $0x120] sm:$0xff]
      %v1055 = vld [vmem:[%s1029 + $0x128] sm:$0xff]
      %v1056 = vld [vmem:[%s1029 + $0x138] sm:$0xff]
      %v1057 = vld [vmem:[%s1029 + $0x140] sm:$0xff]
      %v1058 = vld [vmem:[%s1029 + $0x150] sm:$0xff]
      %v1059 = vld [vmem:[%s1029 + $0x158] sm:$0xff]
      %v1060 = vld [vmem:[%s1029 + $0x168] sm:$0xff]
      %v1061 = vld [vmem:[%s1029 + $0x170] sm:$0xff]
      %v1062 = vlaneseq
      %v1063 = vshrl.u32 %v1062, 7
      %v1064 = vsub.s32 6, %v1063
      %v1065 = vrot.slane %v427, %v1064
      %v1066 = vmul.f32 %v1030, %v1065
      %v1067 = vmul.f32 %v1031, %v1065
      %v1068 = vmul.f32 %v1032, %v1065
      %v1069 = vmul.f32 %v1033, %v1065
      %v1070 = vmul.f32 %v1034, %v1065
      %v1071 = vmul.f32 %v1035, %v1065
      %v1072 = vmul.f32 %v1036, %v1065
      %v1073 = vmul.f32 %v1037, %v1065
      %v1074 = vmul.f32 %v1038, %v1065
      %v1075 = vmul.f32 %v1039, %v1065
      %v1076 = vmul.f32 %v1040, %v1065
      %v1077 = vmul.f32 %v1041, %v1065
      %v1078 = vmul.f32 %v1042, %v1065
      %v1079 = vmul.f32 %v1043, %v1065
      %v1080 = vmul.f32 %v1044, %v1065
      %v1081 = vmul.f32 %v1045, %v1065
      %v1082 = vmul.f32 %v1046, %v1065
      %v1083 = vmul.f32 %v1047, %v1065
      %v1084 = vmul.f32 %v1048, %v1065
      %v1085 = vmul.f32 %v1049, %v1065
      %v1086 = vmul.f32 %v1050, %v1065
      %v1087 = vmul.f32 %v1051, %v1065
      %v1088 = vmul.f32 %v1052, %v1065
      %v1089 = vmul.f32 %v1053, %v1065
      %v1090 = vmul.f32 %v1054, %v1065
      %v1091 = vmul.f32 %v1055, %v1065
      %v1092 = vmul.f32 %v1056, %v1065
      %v1093 = vmul.f32 %v1057, %v1065
      %v1094 = vmul.f32 %v1058, %v1065
      %v1095 = vmul.f32 %v1059, %v1065
      %v1096 = vmul.f32 %v1060, %v1065
      %v1097 = vmul.f32 %v1061, %v1065
      %v1098 = vadd.f32 %v997, %v1066
      %v1099 = vadd.f32 %v998, %v1067
      %v1100 = vadd.f32 %v999, %v1068
      %v1101 = vadd.f32 %v1000, %v1069
      %v1102 = vadd.f32 %v1001, %v1070
      %v1103 = vadd.f32 %v1002, %v1071
      %v1104 = vadd.f32 %v1003, %v1072
      %v1105 = vadd.f32 %v1004, %v1073
      %v1106 = vadd.f32 %v1005, %v1074
      %v1107 = vadd.f32 %v1006, %v1075
      %v1108 = vadd.f32 %v1007, %v1076
      %v1109 = vadd.f32 %v1008, %v1077
      %v1110 = vadd.f32 %v1009, %v1078
      %v1111 = vadd.f32 %v1010, %v1079
      %v1112 = vadd.f32 %v1011, %v1080
      %v1113 = vadd.f32 %v1012, %v1081
      %v1114 = vadd.f32 %v1013, %v1082
      %v1115 = vadd.f32 %v1014, %v1083
      %v1116 = vadd.f32 %v1015, %v1084
      %v1117 = vadd.f32 %v1016, %v1085
      %v1118 = vadd.f32 %v1017, %v1086
      %v1119 = vadd.f32 %v1018, %v1087
      %v1120 = vadd.f32 %v1019, %v1088
      %v1121 = vadd.f32 %v1020, %v1089
      %v1122 = vadd.f32 %v1021, %v1090
      %v1123 = vadd.f32 %v1022, %v1091
      %v1124 = vadd.f32 %v1023, %v1092
      %v1125 = vadd.f32 %v1024, %v1093
      %v1126 = vadd.f32 %v1025, %v1094
      %v1127 = vadd.f32 %v1026, %v1095
      %v1128 = vadd.f32 %v1027, %v1096
      %v1129 = vadd.f32 %v1028, %v1097
      %v1130 = vld [vmem:[%s1029 + $0x1] sm:$0xff]
      %v1131 = vld [vmem:[%s1029 + $0x9] sm:$0xff]
      %v1132 = vld [vmem:[%s1029 + $0x19] sm:$0xff]
      %v1133 = vld [vmem:[%s1029 + $0x21] sm:$0xff]
      %v1134 = vld [vmem:[%s1029 + $0x31] sm:$0xff]
      %v1135 = vld [vmem:[%s1029 + $0x39] sm:$0xff]
      %v1136 = vld [vmem:[%s1029 + $0x49] sm:$0xff]
      %v1137 = vld [vmem:[%s1029 + $0x51] sm:$0xff]
      %v1138 = vld [vmem:[%s1029 + $0x61] sm:$0xff]
      %v1139 = vld [vmem:[%s1029 + $0x69] sm:$0xff]
      %v1140 = vld [vmem:[%s1029 + $0x79] sm:$0xff]
      %v1141 = vld [vmem:[%s1029 + $0x81] sm:$0xff]
      %v1142 = vld [vmem:[%s1029 + $0x91] sm:$0xff]
      %v1143 = vld [vmem:[%s1029 + $0x99] sm:$0xff]
      %v1144 = vld [vmem:[%s1029 + $0xa9] sm:$0xff]
      %v1145 = vld [vmem:[%s1029 + $0xb1] sm:$0xff]
      %v1146 = vld [vmem:[%s1029 + $0xc1] sm:$0xff]
      %v1147 = vld [vmem:[%s1029 + $0xc9] sm:$0xff]
      %v1148 = vld [vmem:[%s1029 + $0xd9] sm:$0xff]
      %v1149 = vld [vmem:[%s1029 + $0xe1] sm:$0xff]
      %v1150 = vld [vmem:[%s1029 + $0xf1] sm:$0xff]
      %v1151 = vld [vmem:[%s1029 + $0xf9] sm:$0xff]
      %v1152 = vld [vmem:[%s1029 + $0x109] sm:$0xff]
      %v1153 = vld [vmem:[%s1029 + $0x111] sm:$0xff]
      %v1154 = vld [vmem:[%s1029 + $0x121] sm:$0xff]
      %v1155 = vld [vmem:[%s1029 + $0x129] sm:$0xff]
      %v1156 = vld [vmem:[%s1029 + $0x139] sm:$0xff]
      %v1157 = vld [vmem:[%s1029 + $0x141] sm:$0xff]
      %v1158 = vld [vmem:[%s1029 + $0x151] sm:$0xff]
      %v1159 = vld [vmem:[%s1029 + $0x159] sm:$0xff]
      %v1160 = vld [vmem:[%s1029 + $0x169] sm:$0xff]
      %v1161 = vld [vmem:[%s1029 + $0x171] sm:$0xff]
      %v1162 = vlaneseq
      %v1163 = vshrl.u32 %v1162, 7
      %v1164 = vsub.s32 7, %v1163
      %v1165 = vrot.slane %v427, %v1164
      %v1166 = vmul.f32 %v1130, %v1165
      %v1167 = vmul.f32 %v1131, %v1165
      %v1168 = vmul.f32 %v1132, %v1165
      %v1169 = vmul.f32 %v1133, %v1165
      %v1170 = vmul.f32 %v1134, %v1165
      %v1171 = vmul.f32 %v1135, %v1165
      %v1172 = vmul.f32 %v1136, %v1165
      %v1173 = vmul.f32 %v1137, %v1165
      %v1174 = vmul.f32 %v1138, %v1165
      %v1175 = vmul.f32 %v1139, %v1165
      %v1176 = vmul.f32 %v1140, %v1165
      %v1177 = vmul.f32 %v1141, %v1165
      %v1178 = vmul.f32 %v1142, %v1165
      %v1179 = vmul.f32 %v1143, %v1165
      %v1180 = vmul.f32 %v1144, %v1165
      %v1181 = vmul.f32 %v1145, %v1165
      %v1182 = vmul.f32 %v1146, %v1165
      %v1183 = vmul.f32 %v1147, %v1165
      %v1184 = vmul.f32 %v1148, %v1165
      %v1185 = vmul.f32 %v1149, %v1165
      %v1186 = vmul.f32 %v1150, %v1165
      %v1187 = vmul.f32 %v1151, %v1165
      %v1188 = vmul.f32 %v1152, %v1165
      %v1189 = vmul.f32 %v1153, %v1165
      %v1190 = vmul.f32 %v1154, %v1165
      %v1191 = vmul.f32 %v1155, %v1165
      %v1192 = vmul.f32 %v1156, %v1165
      %v1193 = vmul.f32 %v1157, %v1165
      %v1194 = vmul.f32 %v1158, %v1165
      %v1195 = vmul.f32 %v1159, %v1165
      %v1196 = vmul.f32 %v1160, %v1165
      %v1197 = vmul.f32 %v1161, %v1165
      %v1198 = vadd.f32 %v1098, %v1166
      %v1199 = vadd.f32 %v1099, %v1167
      %v1200 = vadd.f32 %v1100, %v1168
      %v1201 = vadd.f32 %v1101, %v1169
      %v1202 = vadd.f32 %v1102, %v1170
      %v1203 = vadd.f32 %v1103, %v1171
      %v1204 = vadd.f32 %v1104, %v1172
      %v1205 = vadd.f32 %v1105, %v1173
      %v1206 = vadd.f32 %v1106, %v1174
      %v1207 = vadd.f32 %v1107, %v1175
      %v1208 = vadd.f32 %v1108, %v1176
      %v1209 = vadd.f32 %v1109, %v1177
      %v1210 = vadd.f32 %v1110, %v1178
      %v1211 = vadd.f32 %v1111, %v1179
      %v1212 = vadd.f32 %v1112, %v1180
      %v1213 = vadd.f32 %v1113, %v1181
      %v1214 = vadd.f32 %v1114, %v1182
      %v1215 = vadd.f32 %v1115, %v1183
      %v1216 = vadd.f32 %v1116, %v1184
      %v1217 = vadd.f32 %v1117, %v1185
      %v1218 = vadd.f32 %v1118, %v1186
      %v1219 = vadd.f32 %v1119, %v1187
      %v1220 = vadd.f32 %v1120, %v1188
      %v1221 = vadd.f32 %v1121, %v1189
      %v1222 = vadd.f32 %v1122, %v1190
      %v1223 = vadd.f32 %v1123, %v1191
      %v1224 = vadd.f32 %v1124, %v1192
      %v1225 = vadd.f32 %v1125, %v1193
      %v1226 = vadd.f32 %v1126, %v1194
      %v1227 = vadd.f32 %v1127, %v1195
      %v1228 = vadd.f32 %v1128, %v1196
      %v1229 = vadd.f32 %v1129, %v1197
      %v1230 = vld [vmem:[%s1029 + $0x2] sm:$0xff]
      %v1231 = vld [vmem:[%s1029 + $0xa] sm:$0xff]
      %v1232 = vld [vmem:[%s1029 + $0x1a] sm:$0xff]
      %v1233 = vld [vmem:[%s1029 + $0x22] sm:$0xff]
      %v1234 = vld [vmem:[%s1029 + $0x32] sm:$0xff]
      %v1235 = vld [vmem:[%s1029 + $0x3a] sm:$0xff]
      %v1236 = vld [vmem:[%s1029 + $0x4a] sm:$0xff]
      %v1237 = vld [vmem:[%s1029 + $0x52] sm:$0xff]
      %v1238 = vld [vmem:[%s1029 + $0x62] sm:$0xff]
      %v1239 = vld [vmem:[%s1029 + $0x6a] sm:$0xff]
      %v1240 = vld [vmem:[%s1029 + $0x7a] sm:$0xff]
      %v1241 = vld [vmem:[%s1029 + $0x82] sm:$0xff]
      %v1242 = vld [vmem:[%s1029 + $0x92] sm:$0xff]
      %v1243 = vld [vmem:[%s1029 + $0x9a] sm:$0xff]
      %v1244 = vld [vmem:[%s1029 + $0xaa] sm:$0xff]
      %v1245 = vld [vmem:[%s1029 + $0xb2] sm:$0xff]
      %v1246 = vld [vmem:[%s1029 + $0xc2] sm:$0xff]
      %v1247 = vld [vmem:[%s1029 + $0xca] sm:$0xff]
      %v1248 = vld [vmem:[%s1029 + $0xda] sm:$0xff]
      %v1249 = vld [vmem:[%s1029 + $0xe2] sm:$0xff]
      %v1250 = vld [vmem:[%s1029 + $0xf2] sm:$0xff]
      %v1251 = vld [vmem:[%s1029 + $0xfa] sm:$0xff]
      %v1252 = vld [vmem:[%s1029 + $0x10a] sm:$0xff]
      %v1253 = vld [vmem:[%s1029 + $0x112] sm:$0xff]
      %v1254 = vld [vmem:[%s1029 + $0x122] sm:$0xff]
      %v1255 = vld [vmem:[%s1029 + $0x12a] sm:$0xff]
      %v1256 = vld [vmem:[%s1029 + $0x13a] sm:$0xff]
      %v1257 = vld [vmem:[%s1029 + $0x142] sm:$0xff]
      %v1258 = vld [vmem:[%s1029 + $0x152] sm:$0xff]
      %v1259 = vld [vmem:[%s1029 + $0x15a] sm:$0xff]
      %v1260 = vld [vmem:[%s1029 + $0x16a] sm:$0xff]
      %v1261 = vld [vmem:[%s1029 + $0x172] sm:$0xff]
      %v1262 = vlaneseq
      %v1263 = vshrl.u32 %v1262, 7
      %v1264 = vsub.s32 0, %v1263
      %v1265 = vrot.slane %v428, %v1264
      %v1266 = vmul.f32 %v1230, %v1265
      %v1267 = vmul.f32 %v1231, %v1265
      %v1268 = vmul.f32 %v1232, %v1265
      %v1269 = vmul.f32 %v1233, %v1265
      %v1270 = vmul.f32 %v1234, %v1265
      %v1271 = vmul.f32 %v1235, %v1265
      %v1272 = vmul.f32 %v1236, %v1265
      %v1273 = vmul.f32 %v1237, %v1265
      %v1274 = vmul.f32 %v1238, %v1265
      %v1275 = vmul.f32 %v1239, %v1265
      %v1276 = vmul.f32 %v1240, %v1265
      %v1277 = vmul.f32 %v1241, %v1265
      %v1278 = vmul.f32 %v1242, %v1265
      %v1279 = vmul.f32 %v1243, %v1265
      %v1280 = vmul.f32 %v1244, %v1265
      %v1281 = vmul.f32 %v1245, %v1265
      %v1282 = vmul.f32 %v1246, %v1265
      %v1283 = vmul.f32 %v1247, %v1265
      %v1284 = vmul.f32 %v1248, %v1265
      %v1285 = vmul.f32 %v1249, %v1265
      %v1286 = vmul.f32 %v1250, %v1265
      %v1287 = vmul.f32 %v1251, %v1265
      %v1288 = vmul.f32 %v1252, %v1265
      %v1289 = vmul.f32 %v1253, %v1265
      %v1290 = vmul.f32 %v1254, %v1265
      %v1291 = vmul.f32 %v1255, %v1265
      %v1292 = vmul.f32 %v1256, %v1265
      %v1293 = vmul.f32 %v1257, %v1265
      %v1294 = vmul.f32 %v1258, %v1265
      %v1295 = vmul.f32 %v1259, %v1265
      %v1296 = vmul.f32 %v1260, %v1265
      %v1297 = vmul.f32 %v1261, %v1265
      %v1298 = vadd.f32 %v1198, %v1266
      %v1299 = vadd.f32 %v1199, %v1267
      %v1300 = vadd.f32 %v1200, %v1268
      %v1301 = vadd.f32 %v1201, %v1269
      %v1302 = vadd.f32 %v1202, %v1270
      %v1303 = vadd.f32 %v1203, %v1271
      %v1304 = vadd.f32 %v1204, %v1272
      %v1305 = vadd.f32 %v1205, %v1273
      %v1306 = vadd.f32 %v1206, %v1274
      %v1307 = vadd.f32 %v1207, %v1275
      %v1308 = vadd.f32 %v1208, %v1276
      %v1309 = vadd.f32 %v1209, %v1277
      %v1310 = vadd.f32 %v1210, %v1278
      %v1311 = vadd.f32 %v1211, %v1279
      %v1312 = vadd.f32 %v1212, %v1280
      %v1313 = vadd.f32 %v1213, %v1281
      %v1314 = vadd.f32 %v1214, %v1282
      %v1315 = vadd.f32 %v1215, %v1283
      %v1316 = vadd.f32 %v1216, %v1284
      %v1317 = vadd.f32 %v1217, %v1285
      %v1318 = vadd.f32 %v1218, %v1286
      %v1319 = vadd.f32 %v1219, %v1287
      %v1320 = vadd.f32 %v1220, %v1288
      %v1321 = vadd.f32 %v1221, %v1289
      %v1322 = vadd.f32 %v1222, %v1290
      %v1323 = vadd.f32 %v1223, %v1291
      %v1324 = vadd.f32 %v1224, %v1292
      %v1325 = vadd.f32 %v1225, %v1293
      %v1326 = vadd.f32 %v1226, %v1294
      %v1327 = vadd.f32 %v1227, %v1295
      %v1328 = vadd.f32 %v1228, %v1296
      %v1329 = vadd.f32 %v1229, %v1297
      %v1330 = vpack.c.bf16 %v1299, %v1298
      %v1331 = vpack.c.bf16 %v1301, %v1300
      %v1332 = vpack.c.bf16 %v1303, %v1302
      %v1333 = vpack.c.bf16 %v1305, %v1304
      %v1334 = vpack.c.bf16 %v1307, %v1306
      %v1335 = vpack.c.bf16 %v1309, %v1308
      %v1336 = vpack.c.bf16 %v1311, %v1310
      %v1337 = vpack.c.bf16 %v1313, %v1312
      %v1338 = vpack.c.bf16 %v1315, %v1314
      %v1339 = vpack.c.bf16 %v1317, %v1316
      %v1340 = vpack.c.bf16 %v1319, %v1318
      %v1341 = vpack.c.bf16 %v1321, %v1320
      %v1342 = vpack.c.bf16 %v1323, %v1322
      %v1343 = vpack.c.bf16 %v1325, %v1324
      %v1344 = vpack.c.bf16 %v1327, %v1326
      %v1345 = vpack.c.bf16 %v1329, %v1328
      %v1362 = vunpack.c.l.b16 %v1330
      %v1363 = vunpack.c.h.b16 %v1330
      %v1364 = vunpack.c.l.b16 %v1331
      %v1365 = vunpack.c.h.b16 %v1331
      %v1366 = vunpack.c.l.b16 %v1332
      %v1367 = vunpack.c.h.b16 %v1332
      %v1368 = vunpack.c.l.b16 %v1333
      %v1369 = vunpack.c.h.b16 %v1333
      %v1370 = vunpack.c.l.b16 %v1334
      %v1371 = vunpack.c.h.b16 %v1334
      %v1372 = vunpack.c.l.b16 %v1335
      %v1373 = vunpack.c.h.b16 %v1335
      %v1374 = vunpack.c.l.b16 %v1336
      %v1375 = vunpack.c.h.b16 %v1336
      %v1376 = vunpack.c.l.b16 %v1337
      %v1377 = vunpack.c.h.b16 %v1337
      %v1378 = vunpack.c.l.b16 %v1338
      %v1379 = vunpack.c.h.b16 %v1338
      %v1380 = vunpack.c.l.b16 %v1339
      %v1381 = vunpack.c.h.b16 %v1339
      %v1382 = vunpack.c.l.b16 %v1340
      %v1383 = vunpack.c.h.b16 %v1340
      %v1384 = vunpack.c.l.b16 %v1341
      %v1385 = vunpack.c.h.b16 %v1341
      %v1386 = vunpack.c.l.b16 %v1342
      %v1387 = vunpack.c.h.b16 %v1342
      %v1388 = vunpack.c.l.b16 %v1343
      %v1389 = vunpack.c.h.b16 %v1343
      %v1390 = vunpack.c.l.b16 %v1344
      %v1391 = vunpack.c.h.b16 %v1344
      %v1392 = vunpack.c.l.b16 %v1345
      %v1393 = vunpack.c.h.b16 %v1345
      %v1394 = vpack.c.b16 %v1362, %v1362
      %v1395 = vpack.c.b16 %v1363, %v1363
      %v1396 = vpack.c.b16 %v1364, %v1364
      %v1397 = vpack.c.b16 %v1365, %v1365
      %v1398 = vpack.c.b16 %v1366, %v1366
      %v1399 = vpack.c.b16 %v1367, %v1367
      %v1400 = vpack.c.b16 %v1368, %v1368
      %v1401 = vpack.c.b16 %v1369, %v1369
      %v1402 = vpack.c.b16 %v1370, %v1370
      %v1403 = vpack.c.b16 %v1371, %v1371
      %v1404 = vpack.c.b16 %v1372, %v1372
      %v1405 = vpack.c.b16 %v1373, %v1373
      %v1406 = vpack.c.b16 %v1374, %v1374
      %v1407 = vpack.c.b16 %v1375, %v1375
      %v1408 = vpack.c.b16 %v1376, %v1376
      %v1409 = vpack.c.b16 %v1377, %v1377
      %v1410 = vpack.c.b16 %v1378, %v1378
      %v1411 = vpack.c.b16 %v1379, %v1379
      %v1412 = vpack.c.b16 %v1380, %v1380
      %v1413 = vpack.c.b16 %v1381, %v1381
      %v1414 = vpack.c.b16 %v1382, %v1382
      %v1415 = vpack.c.b16 %v1383, %v1383
      %v1416 = vpack.c.b16 %v1384, %v1384
      %v1417 = vpack.c.b16 %v1385, %v1385
      %v1418 = vpack.c.b16 %v1386, %v1386
      %v1419 = vpack.c.b16 %v1387, %v1387
      %v1420 = vpack.c.b16 %v1388, %v1388
      %v1421 = vpack.c.b16 %v1389, %v1389
      %v1422 = vpack.c.b16 %v1390, %v1390
      %v1423 = vpack.c.b16 %v1391, %v1391
      %v1424 = vpack.c.b16 %v1392, %v1392
      %v1425 = vpack.c.b16 %v1393, %v1393
      %1458 = vst [vmem:[%s197] sm:$0xf] %v1394
      %1459 = vst [vmem:[%s197 + $0x4] sm:$0xf] %v1395
      %1460 = vst [vmem:[%s197 + $0x8] sm:$0xf] %v1396
      %1461 = vst [vmem:[%s197 + $0xc] sm:$0xf] %v1397
      %1462 = vst [vmem:[%s197 + $0x10] sm:$0xf] %v1398
      %1463 = vst [vmem:[%s197 + $0x14] sm:$0xf] %v1399
      %1464 = vst [vmem:[%s197 + $0x18] sm:$0xf] %v1400
      %1465 = vst [vmem:[%s197 + $0x1c] sm:$0xf] %v1401
      %1466 = vst [vmem:[%s197 + $0x20] sm:$0xf] %v1402
      %1467 = vst [vmem:[%s197 + $0x24] sm:$0xf] %v1403
      %1468 = vst [vmem:[%s197 + $0x28] sm:$0xf] %v1404
      %1469 = vst [vmem:[%s197 + $0x2c] sm:$0xf] %v1405
      %1470 = vst [vmem:[%s197 + $0x30] sm:$0xf] %v1406
      %1471 = vst [vmem:[%s197 + $0x34] sm:$0xf] %v1407
      %1472 = vst [vmem:[%s197 + $0x38] sm:$0xf] %v1408
      %1473 = vst [vmem:[%s197 + $0x3c] sm:$0xf] %v1409
      %1474 = vst [vmem:[%s197 + $0x40] sm:$0xf] %v1410
      %1475 = vst [vmem:[%s197 + $0x44] sm:$0xf] %v1411
      %1476 = vst [vmem:[%s197 + $0x48] sm:$0xf] %v1412
      %1477 = vst [vmem:[%s197 + $0x4c] sm:$0xf] %v1413
      %1478 = vst [vmem:[%s197 + $0x50] sm:$0xf] %v1414
      %1479 = vst [vmem:[%s197 + $0x54] sm:$0xf] %v1415
      %1480 = vst [vmem:[%s197 + $0x58] sm:$0xf] %v1416
      %1481 = vst [vmem:[%s197 + $0x5c] sm:$0xf] %v1417
      %1482 = vst [vmem:[%s197 + $0x60] sm:$0xf] %v1418
      %1483 = vst [vmem:[%s197 + $0x64] sm:$0xf] %v1419
      %1484 = vst [vmem:[%s197 + $0x68] sm:$0xf] %v1420
      %1485 = vst [vmem:[%s197 + $0x6c] sm:$0xf] %v1421
      %1486 = vst [vmem:[%s197 + $0x70] sm:$0xf] %v1422
      %1487 = vst [vmem:[%s197 + $0x74] sm:$0xf] %v1423
      %1488 = vst [vmem:[%s197 + $0x78] sm:$0xf] %v1424
      %1489 = vst [vmem:[%s197 + $0x7c] sm:$0xf] %v1425
      %p1490 = scmp.lt.s32.totalorder %s15, 1
      %s1491 = scalar_select %p1490, %s15, 1
      %s1492 = smul.addr %s1491, 32
      %s1493 = smul.addr %s1492, 4
      %s1494 = scalar_lea.vmem %s4, %s1493
      // Predicated region
      $region37: #{block_mq_forward.7} parent=35 // pred_check
        %p1495 = pneg %p122
      $region38: #{block_mq_forward.7} parent=35 // pred_check_branch
        %1497 = sbr.rel (%p1495) target = $region40
      $region39: #{block_mq_forward.7} parent=35 // pred_region
        _
      $region40: #{block_mq_forward.7} parent=35 // pred_fallthru
        _
    $region36: #{block_mq_forward.7} parent=5 // pred_fallthru
      _
    %p1498 = scmp.le.s32.totalorder 2, %s10
    // Predicated region
    $region41: #{block_mq_forward.7} parent=5 // pred_check
      %p1499 = pneg %p1498
    $region42: #{block_mq_forward.7} parent=5 // pred_check_branch
      %1501 = sbr.rel (%p1499) target = $region44
    $region43: #{block_mq_forward.7} parent=5 // pred_region
      %s1502 = ssub.s32 %s10, 2
      // Predicated region
      $region45: #{block_mq_forward.7} parent=43 // pred_check
        %p1503 = pneg %p128
      $region46: #{block_mq_forward.7} parent=43 // pred_check_branch
        %1505 = sbr.rel (%p1503) target = $region48
      $region47: #{block_mq_forward.7} parent=43 // pred_region
        %p1506 = scmp.lt.s32.totalorder %s16, 1
        %s1507 = scalar_select %p1506, %s16, 1
        %s1508 = smul.addr %s1507, 32
        %s1509 = smul.addr %s1508, 4
        %s1510 = scalar_lea.vmem %s4, %s1509
      $region48: #{block_mq_forward.7} parent=43 // pred_fallthru
        _
    $region44: #{block_mq_forward.7} parent=5 // pred_fallthru
      _
  $region6: #{block_mq_forward.7} parent=0 // loop_footer
    %s14 = sadd.s32 1, %s10
  $region7: #{block_mq_forward.7} parent=0 // loop_footer_branch
    %9 = sbr.rel target = $region3
  $region8: #{block_mq_forward.7} parent=0 // loop_exit
    _

// kernel: block_mq_forward.11
$region0: #{block_mq_forward.11}
  #allocation0 [shape = 'u32[]', space=smem, size = 0x4, offset = 0x4, fixed_abs, tag = 'smem constant byte address 0x4 - core index']
  #allocation1 [shape = 'u32[144,128]{1,0:T(1,128)}', space=vmem, size = 0x12000, scoped, tag = 'internal scratch']
  %s0 = inlined_call_operand.vmem [shape: bf16[512,128], index: 0, kind: input, shape index: {}]
  %s1 = inlined_call_operand.vmem [shape: f32[1,128], index: 1, kind: input, shape index: {}]
  %s2 = inlined_call_operand.vmem [shape: f32[1,128], index: 2, kind: input, shape index: {}]
  %s3 = inlined_call_operand.vmem [shape: bf16[512,128], index: 3, kind: input, shape index: {}]
  %s4 = inlined_call_operand.vmem [shape: f32[1,128], index: 4, kind: input, shape index: {}]
  %s5 = inlined_call_operand.vmem [shape: f32[1,128], index: 5, kind: input, shape index: {}]
  %s6 = inlined_call_operand.vmem [shape: f32[512,128], index: 6, kind: output, shape index: {}]
  %s7 = sld [smem:[#allocation0]]
  $region57: #{block_mq_forward.11} parent=0
    _
  %s9 = ssub.s32 1, %s7
  %s10 = scalar_select 0, %s9, %s7
  loop: start=0, step=1, limit=18
  $region2: #{block_mq_forward.11} parent=0 // loop_pre_header
    _
  $region3: #{block_mq_forward.11} parent=0 // loop_header
    %s12 = sphi 0, %s16
    %p13 = scmp.ge.s32.totalorder %s12, 18
    %s22 = sphi 0, %s24
    %s25 = sphi 0, %s22
    %s26 = sphi 0, %s25
    %s42 = sphi 0, %s26
    %s46 = sphi 0, %s46
    %s48 = sphi 0, %s46
    %s49 = sphi 0, %s48
    %s63 = sphi 0, %s49
    %s67 = sphi 0, %s67
    %s69 = sphi 0, %s67
    %s70 = sphi 0, %s69
    %s84 = sphi 0, %s70
    %s90 = sphi 0, %s92
    %s93 = sphi 0, %s90
    %s94 = sphi 0, %s93
    %s110 = sphi 0, %s94
    %s114 = sphi 0, %s114
    %s116 = sphi 0, %s114
    %s117 = sphi 0, %s116
    %s131 = sphi 0, %s117
    %s135 = sphi 0, %s135
    %s137 = sphi 0, %s135
    %s138 = sphi 0, %s137
    %s152 = sphi 0, %s138
    %s158 = sphi 0, %s160
    %s161 = sphi 0, %s158
    %s162 = sphi 0, %s161
    %s178 = sphi 0, %s162
  $region4: #{block_mq_forward.11} parent=0 // loop_header_branch
    %15 = sbr.rel (%p13) target = $region8
  $region5: #{block_mq_forward.11} parent=0 // loop_body
    %s17 = ssub.s32 %s12, 1
    %s18 = ssub.s32 %s12, 2
    %s19 = sadd.s32 %s12, 1
    %s20 = ssub.s32 %s12, %s19
    %p21 = scmp.eq.s32.totalorder %s20, 0
    %s23 = sadd.s32 %s22, 1
    %s24 = scalar_select %p21, %s22, %s23
    %p27 = pneg %p21
    %p28 = scmp.eq.s32.totalorder %s12, 15
    %p29 = por %p27, %p28
    %p30 = scmp.ne.s32.totalorder %s22, %s25
    %p31 = scmp.eq.s32.totalorder %s12, 0
    %p32 = por %p30, %p31
    %p33 = scmp.ne.s32.totalorder %s22, %s25
    %p34 = scmp.eq.s32.totalorder %s17, 15
    %p35 = por %p33, %p34
    %p36 = scmp.ne.s32.totalorder %s25, %s26
    %p37 = scmp.eq.s32.totalorder %s17, 0
    %p38 = por %p36, %p37
    %p39 = scmp.ne.s32.totalorder %s25, %s26
    %p40 = scmp.eq.s32.totalorder %s18, 15
    %p41 = por %p39, %p40
    %p43 = scmp.ne.s32.totalorder %s26, %s42
    %p44 = scmp.eq.s32.totalorder %s18, 0
    %p45 = por %p43, %p44
    %s47 = sadd.s32 %s46, 1
    %p50 = scmp.eq.s32.totalorder %s12, 15
    %p51 = scmp.ne.s32.totalorder %s46, %s48
    %p52 = scmp.eq.s32.totalorder %s12, 0
    %p53 = por %p51, %p52
    %p54 = scmp.ne.s32.totalorder %s46, %s48
    %p55 = scmp.eq.s32.totalorder %s17, 15
    %p56 = por %p54, %p55
    %p57 = scmp.ne.s32.totalorder %s48, %s49
    %p58 = scmp.eq.s32.totalorder %s17, 0
    %p59 = por %p57, %p58
    %p60 = scmp.ne.s32.totalorder %s48, %s49
    %p61 = scmp.eq.s32.totalorder %s18, 15
    %p62 = por %p60, %p61
    %p64 = scmp.ne.s32.totalorder %s49, %s63
    %p65 = scmp.eq.s32.totalorder %s18, 0
    %p66 = por %p64, %p65
    %s68 = sadd.s32 %s67, 1
    %p71 = scmp.eq.s32.totalorder %s12, 15
    %p72 = scmp.ne.s32.totalorder %s67, %s69
    %p73 = scmp.eq.s32.totalorder %s12, 0
    %p74 = por %p72, %p73
    %p75 = scmp.ne.s32.totalorder %s67, %s69
    %p76 = scmp.eq.s32.totalorder %s17, 15
    %p77 = por %p75, %p76
    %p78 = scmp.ne.s32.totalorder %s69, %s70
    %p79 = scmp.eq.s32.totalorder %s17, 0
    %p80 = por %p78, %p79
    %p81 = scmp.ne.s32.totalorder %s69, %s70
    %p82 = scmp.eq.s32.totalorder %s18, 15
    %p83 = por %p81, %p82
    %p85 = scmp.ne.s32.totalorder %s70, %s84
    %p86 = scmp.eq.s32.totalorder %s18, 0
    %p87 = por %p85, %p86
    %s88 = ssub.s32 %s12, %s19
    %p89 = scmp.eq.s32.totalorder %s88, 0
    %s91 = sadd.s32 %s90, 1
    %s92 = scalar_select %p89, %s90, %s91
    %p95 = pneg %p89
    %p96 = scmp.eq.s32.totalorder %s12, 15
    %p97 = por %p95, %p96
    %p98 = scmp.ne.s32.totalorder %s90, %s93
    %p99 = scmp.eq.s32.totalorder %s12, 0
    %p100 = por %p98, %p99
    %p101 = scmp.ne.s32.totalorder %s90, %s93
    %p102 = scmp.eq.s32.totalorder %s17, 15
    %p103 = por %p101, %p102
    %p104 = scmp.ne.s32.totalorder %s93, %s94
    %p105 = scmp.eq.s32.totalorder %s17, 0
    %p106 = por %p104, %p105
    %p107 = scmp.ne.s32.totalorder %s93, %s94
    %p108 = scmp.eq.s32.totalorder %s18, 15
    %p109 = por %p107, %p108
    %p111 = scmp.ne.s32.totalorder %s94, %s110
    %p112 = scmp.eq.s32.totalorder %s18, 0
    %p113 = por %p111, %p112
    %s115 = sadd.s32 %s114, 1
    %p118 = scmp.eq.s32.totalorder %s12, 15
    %p119 = scmp.ne.s32.totalorder %s114, %s116
    %p120 = scmp.eq.s32.totalorder %s12, 0
    %p121 = por %p119, %p120
    %p122 = scmp.ne.s32.totalorder %s114, %s116
    %p123 = scmp.eq.s32.totalorder %s17, 15
    %p124 = por %p122, %p123
    %p125 = scmp.ne.s32.totalorder %s116, %s117
    %p126 = scmp.eq.s32.totalorder %s17, 0
    %p127 = por %p125, %p126
    %p128 = scmp.ne.s32.totalorder %s116, %s117
    %p129 = scmp.eq.s32.totalorder %s18, 15
    %p130 = por %p128, %p129
    %p132 = scmp.ne.s32.totalorder %s117, %s131
    %p133 = scmp.eq.s32.totalorder %s18, 0
    %p134 = por %p132, %p133
    %s136 = sadd.s32 %s135, 1
    %p139 = scmp.eq.s32.totalorder %s12, 15
    %p140 = scmp.ne.s32.totalorder %s135, %s137
    %p141 = scmp.eq.s32.totalorder %s12, 0
    %p142 = por %p140, %p141
    %p143 = scmp.ne.s32.totalorder %s135, %s137
    %p144 = scmp.eq.s32.totalorder %s17, 15
    %p145 = por %p143, %p144
    %p146 = scmp.ne.s32.totalorder %s137, %s138
    %p147 = scmp.eq.s32.totalorder %s17, 0
    %p148 = por %p146, %p147
    %p149 = scmp.ne.s32.totalorder %s137, %s138
    %p150 = scmp.eq.s32.totalorder %s18, 15
    %p151 = por %p149, %p150
    %p153 = scmp.ne.s32.totalorder %s138, %s152
    %p154 = scmp.eq.s32.totalorder %s18, 0
    %p155 = por %p153, %p154
    %s156 = ssub.s32 %s12, %s19
    %p157 = scmp.eq.s32.totalorder %s156, 0
    %s159 = sadd.s32 %s158, 1
    %s160 = scalar_select %p157, %s158, %s159
    %p163 = pneg %p157
    %p164 = scmp.eq.s32.totalorder %s12, 15
    %p165 = por %p163, %p164
    %p166 = scmp.ne.s32.totalorder %s158, %s161
    %p167 = scmp.eq.s32.totalorder %s12, 0
    %p168 = por %p166, %p167
    %p169 = scmp.ne.s32.totalorder %s158, %s161
    %p170 = scmp.eq.s32.totalorder %s17, 15
    %p171 = por %p169, %p170
    %p172 = scmp.ne.s32.totalorder %s161, %s162
    %p173 = scmp.eq.s32.totalorder %s17, 0
    %p174 = por %p172, %p173
    %p175 = scmp.ne.s32.totalorder %s161, %s162
    %p176 = scmp.eq.s32.totalorder %s18, 15
    %p177 = por %p175, %p176
    %p179 = scmp.ne.s32.totalorder %s162, %s178
    %p180 = scmp.eq.s32.totalorder %s18, 0
    %p181 = por %p179, %p180
    %p182 = scmp.le.s32.totalorder 1, %s12
    %p183 = scmp.lt.s32.totalorder %s12, 17
    %p184 = pnand %p182, %p183
    %p185 = pneg %p184
    // Predicated region
    $region9: #{block_mq_forward.11} parent=5 // pred_check
      _
    $region10: #{block_mq_forward.11} parent=5 // pred_check_branch
      %187 = sbr.rel (%p184) target = $region12
    $region11: #{block_mq_forward.11} parent=5 // pred_region
      %s188 = ssub.s32 %s12, 1
      // Predicated region
      $region13: #{block_mq_forward.11} parent=11 // pred_check
        %p189 = pneg %p59
      $region14: #{block_mq_forward.11} parent=11 // pred_check_branch
        %191 = sbr.rel (%p189) target = $region16
      $region15: #{block_mq_forward.11} parent=11 // pred_region
        _
      $region16: #{block_mq_forward.11} parent=11 // pred_fallthru
        _
      // Predicated region
      $region17: #{block_mq_forward.11} parent=11 // pred_check
        %p192 = pneg %p80
      $region18: #{block_mq_forward.11} parent=11 // pred_check_branch
        %194 = sbr.rel (%p192) target = $region20
      $region19: #{block_mq_forward.11} parent=11 // pred_region
        _
      $region20: #{block_mq_forward.11} parent=11 // pred_fallthru
        _
      // Predicated region
      $region21: #{block_mq_forward.11} parent=11 // pred_check
        %p195 = pneg %p127
      $region22: #{block_mq_forward.11} parent=11 // pred_check_branch
        %197 = sbr.rel (%p195) target = $region24
      $region23: #{block_mq_forward.11} parent=11 // pred_region
        _
      $region24: #{block_mq_forward.11} parent=11 // pred_fallthru
        _
      // Predicated region
      $region25: #{block_mq_forward.11} parent=11 // pred_check
        %p198 = pneg %p148
      $region26: #{block_mq_forward.11} parent=11 // pred_check_branch
        %200 = sbr.rel (%p198) target = $region28
      $region27: #{block_mq_forward.11} parent=11 // pred_region
        _
      $region28: #{block_mq_forward.11} parent=11 // pred_fallthru
        _
    $region12: #{block_mq_forward.11} parent=5 // pred_fallthru
      _
    %p201 = scmp.lt.s32.totalorder %s12, 16
    // Predicated region
    $region29: #{block_mq_forward.11} parent=5 // pred_check
      %p202 = pneg %p201
    $region30: #{block_mq_forward.11} parent=5 // pred_check_branch
      %204 = sbr.rel (%p202) target = $region32
    $region31: #{block_mq_forward.11} parent=5 // pred_region
      // Predicated region
      $region33: #{block_mq_forward.11} parent=31 // pred_check
        %p205 = pneg %p32
      $region34: #{block_mq_forward.11} parent=31 // pred_check_branch
        %207 = sbr.rel (%p205) target = $region36
      $region35: #{block_mq_forward.11} parent=31 // pred_region
        %s208 = smul.u32 4, %s12
        %p209 = scmp.lt.s32.totalorder %s208, 63
        %s210 = scalar_select %p209, %s208, 63
        %s211 = smul.addr %s210, 4
        %s212 = scalar_lea.vmem %s0, %s211
        %s213 = smul.u32 4, %s12
      $region36: #{block_mq_forward.11} parent=31 // pred_fallthru
        _
      // Predicated region
      $region37: #{block_mq_forward.11} parent=31 // pred_check
        %p214 = pneg %p100
      $region38: #{block_mq_forward.11} parent=31 // pred_check_branch
        %216 = sbr.rel (%p214) target = $region40
      $region39: #{block_mq_forward.11} parent=31 // pred_region
        %s217 = smul.u32 4, %s12
        %p218 = scmp.lt.s32.totalorder %s217, 63
        %s219 = scalar_select %p218, %s217, 63
        %s220 = smul.addr %s219, 4
        %s221 = scalar_lea.vmem %s3, %s220
        %s222 = smul.u32 4, %s12
      $region40: #{block_mq_forward.11} parent=31 // pred_fallthru
        _
    $region32: #{block_mq_forward.11} parent=5 // pred_fallthru
      _
    %p223 = scmp.le.s32.totalorder 1, %s12
    %p224 = scmp.lt.s32.totalorder %s12, 17
    %p225 = pnand %p223, %p224
    %p226 = pneg %p225
    // Predicated region
    $region41: #{block_mq_forward.11} parent=5 // pred_check
      _
    $region42: #{block_mq_forward.11} parent=5 // pred_check_branch
      %228 = sbr.rel (%p225) target = $region44
    $region43: #{block_mq_forward.11} parent=5 // pred_region
      %s229 = ssub.s32 %s12, 1
      %s230 = smul.u32 4, %s17
      %p231 = scmp.lt.s32.totalorder %s230, 63
      %s232 = scalar_select %p231, %s230, 63
      %s233 = smul.addr %s232, 4
      %s234 = scalar_lea.vmem %s0, %s233
      %p235 = pneg %p38
      %p236 = pneg %p35
      %p237 = pneg %p59
      %p238 = pneg %p56
      %p239 = pneg %p80
      %p240 = pneg %p77
      %s241 = smul.u32 4, %s17
      %p242 = scmp.lt.s32.totalorder %s241, 63
      %s243 = scalar_select %p242, %s241, 63
      %s244 = smul.addr %s243, 4
      %s245 = scalar_lea.vmem %s3, %s244
      %p246 = pneg %p106
      %p247 = pneg %p103
      %p248 = pneg %p127
      %p249 = pneg %p124
      %p250 = pneg %p148
      %p251 = pneg %p145
      %p252 = pneg %p174
      %p253 = pneg %p171
      %s254 = smul.u32 4, %s17
      %p255 = scmp.lt.s32.totalorder %s254, 63
      %s256 = scalar_select %p255, %s254, 63
      %s257 = smul.addr %s256, 8
      %s258 = scalar_lea.vmem %s6, %s257
      %s259 = smul.u32 4, %s17
      %p260 = scmp.lt.s32.totalorder %s259, 63
      %s261 = scalar_select %p260, %s259, 63
      %s262 = smul.addr %s261, 4
      %s263 = scalar_lea.vmem %s0, %s262
      %s264 = smul.u32 4, %s17
      %s265 = smul.u32 4, %s17
      %p266 = scmp.lt.s32.totalorder %s265, 63
      %s267 = scalar_select %p266, %s265, 63
      %s268 = smul.addr %s267, 4
      %s269 = scalar_lea.vmem %s3, %s268
      %s270 = smul.u32 4, %s17
      %s271 = smul.u32 4, %s17
      %p272 = scmp.lt.s32.totalorder %s271, 63
      %s273 = scalar_select %p272, %s271, 63
      %s274 = smul.addr %s273, 8
      %s275 = scalar_lea.vmem %s6, %s274
      %s276 = smul.u32 4, %s17
      %v277 = vld [vmem:[%s263] sm:$0xf]
      %v278 = vld [vmem:[%s263 + $0x4] sm:$0xf]
      %v279 = vld [vmem:[%s263 + $0x8] sm:$0xf]
      %v280 = vld [vmem:[%s263 + $0xc] sm:$0xf]
      %v281 = vunpack.c.l.bf16 %v277
      %v282 = vunpack.c.l.bf16 %v278
      %v283 = vunpack.c.l.bf16 %v279
      %v284 = vunpack.c.l.bf16 %v280
      %v285 = vld [vmem:[%s1] sm:$0x1]
      %v287 = vlaneseq
      %v288 = vshrl.u32 %v287, 7
      %v289 = vsub.s32 0, %v288
      %v290 = vrot.slane %v285, %v289
      %v292 = vmul.f32 %v281, %v290
      %v293 = vmul.f32 %v282, %v290
      %v294 = vmul.f32 %v283, %v290
      %v295 = vmul.f32 %v284, %v290
      %v296 = vld [vmem:[%s2] sm:$0x1]
      %v298 = vlaneseq
      %v299 = vshrl.u32 %v298, 7
      %v300 = vsub.s32 0, %v299
      %v301 = vrot.slane %v296, %v300
      %v303 = vadd.f32 %v292, %v301
      %v304 = vadd.f32 %v293, %v301
      %v305 = vadd.f32 %v294, %v301
      %v306 = vadd.f32 %v295, %v301
      %v307 = vld [vmem:[%s269] sm:$0xf]
      %v308 = vld [vmem:[%s269 + $0x4] sm:$0xf]
      %v309 = vld [vmem:[%s269 + $0x8] sm:$0xf]
      %v310 = vld [vmem:[%s269 + $0xc] sm:$0xf]
      %v311 = vunpack.c.l.bf16 %v307
      %v312 = vunpack.c.l.bf16 %v308
      %v313 = vunpack.c.l.bf16 %v309
      %v314 = vunpack.c.l.bf16 %v310
      %v315 = vld [vmem:[%s4] sm:$0x1]
      %v317 = vlaneseq
      %v318 = vshrl.u32 %v317, 7
      %v319 = vsub.s32 0, %v318
      %v320 = vrot.slane %v315, %v319
      %v322 = vmul.f32 %v311, %v320
      %v323 = vmul.f32 %v312, %v320
      %v324 = vmul.f32 %v313, %v320
      %v325 = vmul.f32 %v314, %v320
      %v326 = vadd.f32 %v303, %v322
      %v327 = vadd.f32 %v304, %v323
      %v328 = vadd.f32 %v305, %v324
      %v329 = vadd.f32 %v306, %v325
      %v330 = vld [vmem:[%s5] sm:$0x1]
      %v332 = vlaneseq
      %v333 = vshrl.u32 %v332, 7
      %v334 = vsub.s32 0, %v333
      %v335 = vrot.slane %v330, %v334
      %v337 = vadd.f32 %v326, %v335
      %v338 = vadd.f32 %v327, %v335
      %v339 = vadd.f32 %v328, %v335
      %v340 = vadd.f32 %v329, %v335
      %341 = vst [vmem:[%s275] sm:$0xff] %v337
      %342 = vst [vmem:[%s275 + $0x8] sm:$0xff] %v338
      %343 = vst [vmem:[%s275 + $0x10] sm:$0xff] %v339
      %344 = vst [vmem:[%s275 + $0x18] sm:$0xff] %v340
      %s345 = smul.u32 4, %s17
      %p346 = scmp.lt.s32.totalorder %s345, 63
      %s347 = scalar_select %p346, %s345, 63
      %s348 = smul.addr %s347, 8
      %s349 = scalar_lea.vmem %s6, %s348
      // Predicated region
      $region45: #{block_mq_forward.11} parent=43 // pred_check
        %p350 = pneg %p171
      $region46: #{block_mq_forward.11} parent=43 // pred_check_branch
        %352 = sbr.rel (%p350) target = $region48
      $region47: #{block_mq_forward.11} parent=43 // pred_region
        %s353 = smul.u32 4, %s17
      $region48: #{block_mq_forward.11} parent=43 // pred_fallthru
        _
    $region44: #{block_mq_forward.11} parent=5 // pred_fallthru
      _
    %p354 = scmp.le.s32.totalorder 2, %s12
    // Predicated region
    $region49: #{block_mq_forward.11} parent=5 // pred_check
      %p355 = pneg %p354
    $region50: #{block_mq_forward.11} parent=5 // pred_check_branch
      %357 = sbr.rel (%p355) target = $region52
    $region51: #{block_mq_forward.11} parent=5 // pred_region
      %s358 = ssub.s32 %s12, 2
      // Predicated region
      $region53: #{block_mq_forward.11} parent=51 // pred_check
        %p359 = pneg %p177
      $region54: #{block_mq_forward.11} parent=51 // pred_check_branch
        %361 = sbr.rel (%p359) target = $region56
      $region55: #{block_mq_forward.11} parent=51 // pred_region
        %s362 = smul.u32 4, %s18
        %p363 = scmp.lt.s32.totalorder %s362, 63
        %s364 = scalar_select %p363, %s362, 63
        %s365 = smul.addr %s364, 8
        %s366 = scalar_lea.vmem %s6, %s365
      $region56: #{block_mq_forward.11} parent=51 // pred_fallthru
        _
    $region52: #{block_mq_forward.11} parent=5 // pred_fallthru
      _
  $region6: #{block_mq_forward.11} parent=0 // loop_footer
    %s16 = sadd.s32 1, %s12
  $region7: #{block_mq_forward.11} parent=0 // loop_footer_branch
    %11 = sbr.rel target = $region3
  $region8: #{block_mq_forward.11} parent=0 // loop_exit
    _

</llo_original>
